<compile_context>
chip_gen: v7x
topology: tpu7x:2x2x1
jax: 0.10.0
libtpu: 0.0.40
codegen_flags: <defaults>
</compile_context>

<pallas_src>
import functools

import jax
import jax.numpy as jnp
from jax.experimental import pallas as pl
from jax.experimental.pallas import tpu as pltpu

SQRT1_2 = 0.7071067811865476
LN_EPS = 1e-5


# ----------------------------------------------------------------------------
# Hardware-aware tiling configuration
# ----------------------------------------------------------------------------
@functools.lru_cache(maxsize=1)
def _hw_config():
    vmem_bytes = None
    try:
        info = pltpu.get_tpu_info()
        vmem_bytes = getattr(info, "vmem_capacity_bytes", None)
    except Exception:
        vmem_bytes = None
    if vmem_bytes is None:
        vmem_bytes = 64 * 1024 * 1024  # conservative (v7x-sized) fallback
    if vmem_bytes >= 100 * 1024 * 1024:          # v5e / v6e (128 MiB physical)
        return {"tm": 512, "tn": 512, "tk": 1024,
                "vmem_limit": 96 * 1024 * 1024}
    if vmem_bytes >= 48 * 1024 * 1024:           # v7x (64 MiB per TC)
        return {"tm": 512, "tn": 512, "tk": 1024,
                "vmem_limit": 48 * 1024 * 1024}
    return {"tm": 256, "tn": 256, "tk": 512,
            "vmem_limit": 32 * 1024 * 1024}


def _pick_tile(dim, cap, quanta):
    """Largest divisor of `dim` <= cap that is a multiple of one of `quanta`
    (tried in order of preference); falls back to the full dim (block == full
    array extent is always legal)."""
    if dim <= cap:
        return dim
    for q in quanta:
        t = cap - (cap % q)
        while t >= q:
            if dim % t == 0:
                return t
            t -= q
    # TODO(synk): pad-and-mask epilogue instead of making the whole dim resident.
    return dim


def _cparams(sem):
    return pltpu.CompilerParams(dimension_semantics=sem,
                                vmem_limit_bytes=_hw_config()["vmem_limit"])


# ----------------------------------------------------------------------------
# Generic tiled matmul (optional bias / SiLU / fused residual, any out dtype)
# ----------------------------------------------------------------------------
def _apply_act(y, act):
    if act == "silu":
        # EUP-friendly SiLU: exp + approximate reciprocal, no VALU divide.
        y = y * pl.reciprocal(1.0 + jnp.exp(-y), approx=True)
    return y


def _mm_kernel(*refs, act, has_bias, has_res):
    x_ref, w_ref = refs[0], refs[1]
    idx = 2
    b_ref = None
    if has_bias:
        b_ref = refs[idx]
        idx += 1
    res_ref = None
    if has_res:
        res_ref = refs[idx]
        idx += 1
    o_ref, acc_ref = refs[idx], refs[idx + 1]

    k = pl.program_id(2)

    @pl.when(k == 0)
    def _():
        acc_ref[...] = jnp.zeros_like(acc_ref)

    acc_ref[...] += jnp.dot(x_ref[...].astype(jnp.bfloat16), w_ref[...],
                            preferred_element_type=jnp.float32)

    @pl.when(k == pl.num_programs(2) - 1)
    def _():
        y = acc_ref[...]
        if has_bias:
            y = y + b_ref[...]
        y = _apply_act(y, act)
        if has_res:
            y = y + res_ref[...].astype(jnp.float32)
        o_ref[...] = y.astype(o_ref.dtype)


def pallas_linear(x2d, w, b=None, residual=None, act="none",
                  out_dtype=jnp.bfloat16):
    """y = x @ W (+ b) (+ SiLU) (+ residual).  x2d: [M,K]; w: [K,N] bf16."""
    M, K = x2d.shape
    Kw, N = w.shape
    assert K == Kw
    cfg = _hw_config()
    tm = _pick_tile(M, cfg["tm"], (16, 8))
    tk = _pick_tile(K, cfg["tk"], (256, 128))
    tn = _pick_tile(N, cfg["tn"], (256, 128))
    grid = (M // tm, N // tn, K // tk)

    in_specs = [pl.BlockSpec((tm, tk), lambda i, j, k: (i, k)),
                pl.BlockSpec((tk, tn), lambda i, j, k: (k, j))]
    operands = [x2d, w]
    has_bias = b is not None
    if has_bias:
        in_specs.append(pl.BlockSpec((1, tn), lambda i, j, k: (0, j)))
        operands.append(jnp.asarray(b, jnp.float32).reshape(1, N))
    has_res = residual is not None
    if has_res:
        in_specs.append(pl.BlockSpec((tm, tn), lambda i, j, k: (i, j)))
        operands.append(residual)

    return pl.pallas_call(
        functools.partial(_mm_kernel, act=act, has_bias=has_bias,
                          has_res=has_res),
        out_shape=jax.ShapeDtypeStruct((M, N), out_dtype),
        grid=grid,
        in_specs=in_specs,
        out_specs=pl.BlockSpec((tm, tn), lambda i, j, k: (i, j)),
        scratch_shapes=[pltpu.VMEM((tm, tn), jnp.float32)],
        compiler_params=_cparams(("parallel", "parallel", "arbitrary")),
    )(*operands)


# ----------------------------------------------------------------------------
# AdaLayerNorm fused into a stacked projection (QKV / cross-attn Q)
# ----------------------------------------------------------------------------
def _adaln_stacked_mm_kernel(x_ref, sc_ref, sh_ref, w_ref, o_ref, xn_ref, *, eps):
    s = pl.program_id(2)
    j = pl.program_id(3)

    @pl.when(jnp.logical_and(s == 0, j == 0))
    def _():
        x = x_ref[0].astype(jnp.float32)
        mu = jnp.mean(x, axis=-1, keepdims=True)
        var = jnp.mean(jnp.square(x - mu), axis=-1, keepdims=True)
        xn = (x - mu) * jax.lax.rsqrt(var + eps)
        y = xn * (1.0 + sc_ref[0]) + sh_ref[0]
        xn_ref[...] = y.astype(xn_ref.dtype)

    o_ref[0, 0] = jnp.dot(xn_ref[...], w_ref[0],
                          preferred_element_type=jnp.float32).astype(o_ref.dtype)


def pallas_adaln_stacked_mm(h, scale, shift, w_stack, out_dtype=jnp.bfloat16):
    """AdaLN(h) @ w_stack[s] for every slab s.
    h: [B,N,D]; scale/shift: [B,1,D] f32; w_stack: [S,D,Dh] bf16 -> [S,B,N,Dh]."""
    B, N, D = h.shape
    S, Dk, Dh = w_stack.shape
    assert Dk == D
    cfg = _hw_config()
    tq = _pick_tile(N, cfg["tm"], (16, 8))
    tn = _pick_tile(Dh, cfg["tn"], (256, 128))
    grid = (B, N // tq, S, Dh // tn)
    return pl.pallas_call(
        functools.partial(_adaln_stacked_mm_kernel, eps=LN_EPS),
        out_shape=jax.ShapeDtypeStruct((S, B, N, Dh), out_dtype),
        grid=grid,
        in_specs=[
            pl.BlockSpec((1, tq, D), lambda b, i, s, j: (b, i, 0)),
            pl.BlockSpec((1, 1, D), lambda b, i, s, j: (b, 0, 0)),
            pl.BlockSpec((1, 1, D), lambda b, i, s, j: (b, 0, 0)),
            pl.BlockSpec((1, D, tn), lambda b, i, s, j: (s, 0, j)),
        ],
        out_specs=pl.BlockSpec((1, 1, tq, tn), lambda b, i, s, j: (s, b, i, j)),
        scratch_shapes=[pltpu.VMEM((tq, D), jnp.bfloat16)],
        compiler_params=_cparams(
            ("parallel", "parallel", "arbitrary", "arbitrary")),
    )(h, scale, shift, w_stack)


# ----------------------------------------------------------------------------
# Plain stacked projection (cross-attention K/V from the context)
# ----------------------------------------------------------------------------
def _stacked_mm_kernel(x_ref, w_ref, o_ref):
    o_ref[0, 0] = jnp.dot(x_ref[0].astype(jnp.bfloat16), w_ref[0],
                          preferred_element_type=jnp.float32).astype(o_ref.dtype)


def pallas_stacked_mm(x, w_stack, out_dtype=jnp.bfloat16):
    """x: [B,M,K]; w_stack: [S,K,Dh] bf16 -> [S,B,M,Dh]."""
    B, M, K = x.shape
    S, Kw, Dh = w_stack.shape
    assert Kw == K
    cfg = _hw_config()
    tq = _pick_tile(M, cfg["tm"], (16, 8))
    tn = _pick_tile(Dh, cfg["tn"], (256, 128))
    grid = (B, M // tq, S, Dh // tn)
    return pl.pallas_call(
        _stacked_mm_kernel,
        out_shape=jax.ShapeDtypeStruct((S, B, M, Dh), out_dtype),
        grid=grid,
        in_specs=[
            pl.BlockSpec((1, tq, K), lambda b, i, s, j: (b, i, 0)),
            pl.BlockSpec((1, K, tn), lambda b, i, s, j: (s, 0, j)),
        ],
        out_specs=pl.BlockSpec((1, 1, tq, tn), lambda b, i, s, j: (s, b, i, j)),
        compiler_params=_cparams(
            ("parallel", "parallel", "arbitrary", "arbitrary")),
    )(x, w_stack)


# ----------------------------------------------------------------------------
# AdaLayerNorm fused into FF1 + GEGLU
# ----------------------------------------------------------------------------
def _adaln_geglu_kernel(x_ref, sc_ref, sh_ref, wa_ref, wg_ref, ba_ref, bg_ref,
                        o_ref, xn_ref, *, eps):
    j = pl.program_id(2)

    @pl.when(j == 0)
    def _():
        x = x_ref[0].astype(jnp.float32)
        mu = jnp.mean(x, axis=-1, keepdims=True)
        var = jnp.mean(jnp.square(x - mu), axis=-1, keepdims=True)
        xn = (x - mu) * jax.lax.rsqrt(var + eps)
        y = xn * (1.0 + sc_ref[0]) + sh_ref[0]
        xn_ref[...] = y.astype(xn_ref.dtype)

    xn = xn_ref[...]
    a = jnp.dot(xn, wa_ref[...], preferred_element_type=jnp.float32) + ba_ref[...]
    g = jnp.dot(xn, wg_ref[...], preferred_element_type=jnp.float32) + bg_ref[...]
    gelu_g = 0.5 * g * (1.0 + jax.lax.erf(g * SQRT1_2))  # exact GELU (torch default)
    o_ref[0] = (a * gelu_g).astype(o_ref.dtype)


def pallas_adaln_ff1_geglu(h, scale, shift, wa, wg, ba, bg,
                           out_dtype=jnp.bfloat16):
    """GEGLU(AdaLN(h) @ [Wa|Wg] + [ba|bg]).  h: [B,N,D] -> [B,N,inner] bf16."""
    B, N, D = h.shape
    _, inner = wa.shape
    cfg = _hw_config()
    tq = _pick_tile(N, cfg["tm"], (16, 8))
    tn = _pick_tile(inner, cfg["tn"], (256, 128))
    grid = (B, N // tq, inner // tn)
    ba2 = jnp.asarray(ba, jnp.float32).reshape(1, inner)
    bg2 = jnp.asarray(bg, jnp.float32).reshape(1, inner)
    return pl.pallas_call(
        functools.partial(_adaln_geglu_kernel, eps=LN_EPS),
        out_shape=jax.ShapeDtypeStruct((B, N, inner), out_dtype),
        grid=grid,
        in_specs=[
            pl.BlockSpec((1, tq, D), lambda b, i, j: (b, i, 0)),
            pl.BlockSpec((1, 1, D), lambda b, i, j: (b, 0, 0)),
            pl.BlockSpec((1, 1, D), lambda b, i, j: (b, 0, 0)),
            pl.BlockSpec((D, tn), lambda b, i, j: (0, j)),
            pl.BlockSpec((D, tn), lambda b, i, j: (0, j)),
            pl.BlockSpec((1, tn), lambda b, i, j: (0, j)),
            pl.BlockSpec((1, tn), lambda b, i, j: (0, j)),
        ],
        out_specs=pl.BlockSpec((1, tq, tn), lambda b, i, j: (b, i, j)),
        scratch_shapes=[pltpu.VMEM((tq, D), jnp.bfloat16)],
        compiler_params=_cparams(("parallel", "parallel", "arbitrary")),
    )(h, scale, shift, wa, wg, ba2, bg2)


# ----------------------------------------------------------------------------
# Final affine LayerNorm fused into proj_out
# ----------------------------------------------------------------------------
def _ln_mm_kernel(x_ref, g_ref, b_ref, w_ref, o_ref, xn_ref, *, eps):
    j = pl.program_id(2)

    @pl.when(j == 0)
    def _():
        x = x_ref[0].astype(jnp.float32)
        mu = jnp.mean(x, axis=-1, keepdims=True)
        var = jnp.mean(jnp.square(x - mu), axis=-1, keepdims=True)
        xn = (x - mu) * jax.lax.rsqrt(var + eps)
        xn_ref[...] = (xn * g_ref[...] + b_ref[...]).astype(xn_ref.dtype)

    o_ref[0] = jnp.dot(xn_ref[...], w_ref[...],
                       preferred_element_type=jnp.float32).astype(o_ref.dtype)


def pallas_ln_mm(x, gamma, beta, w, out_dtype=jnp.float32):
    """LayerNorm(x) @ W.  x: [B,N,D]; w: [D,Dout] bf16 -> [B,N,Dout]."""
    B, N, D = x.shape
    _, Dout = w.shape
    cfg = _hw_config()
    tq = _pick_tile(N, cfg["tm"], (16, 8))
    tn = _pick_tile(Dout, cfg["tn"], (256, 128))
    grid = (B, N // tq, Dout // tn)
    g2 = jnp.asarray(gamma, jnp.float32).reshape(1, D)
    b2 = jnp.asarray(beta, jnp.float32).reshape(1, D)
    return pl.pallas_call(
        functools.partial(_ln_mm_kernel, eps=LN_EPS),
        out_shape=jax.ShapeDtypeStruct((B, N, Dout), out_dtype),
        grid=grid,
        in_specs=[
            pl.BlockSpec((1, tq, D), lambda b, i, j: (b, i, 0)),
            pl.BlockSpec((1, D), lambda b, i, j: (0, 0)),
            pl.BlockSpec((1, D), lambda b, i, j: (0, 0)),
            pl.BlockSpec((D, tn), lambda b, i, j: (0, j)),
        ],
        out_specs=pl.BlockSpec((1, tq, tn), lambda b, i, j: (b, i, j)),
        scratch_shapes=[pltpu.VMEM((tq, D), jnp.bfloat16)],
        compiler_params=_cparams(("parallel", "parallel", "arbitrary")),
    )(x, g2, b2, w)


# ----------------------------------------------------------------------------
# Attention (all heads per (batch, q-tile); q/k/v read from stacked slabs)
# ----------------------------------------------------------------------------
def _attn_kernel(q_ref, k_ref, v_ref, o_ref, *, heads, d_head, scale):
    # q_ref: (1,1,tq,D) block; k_ref/v_ref: (1,1,M,D) blocks; o_ref: (1,tq,D).
    q = q_ref[0, 0]
    k = k_ref[0, 0]
    v = v_ref[0, 0]
    # Fold the softmax scale into q (tq*D muls instead of tq*M on sim).
    qs = (q.astype(jnp.float32) * scale).astype(jnp.bfloat16)
    for h in range(heads):  # static unroll; each head stored immediately
        s0 = h * d_head
        qh = qs[:, s0:s0 + d_head]
        kh = k[:, s0:s0 + d_head]
        vh = v[:, s0:s0 + d_head]
        sim = jax.lax.dot_general(qh, kh, (((1,), (1,)), ((), ())),
                                  preferred_element_type=jnp.float32)
        sim = sim - jnp.max(sim, axis=-1, keepdims=True)
        p = jnp.exp(sim)
        p = p * pl.reciprocal(jnp.sum(p, axis=-1, keepdims=True), approx=True)
        oh = jnp.dot(p.astype(vh.dtype), vh, preferred_element_type=jnp.float32)
        o_ref[0, :, s0:s0 + d_head] = oh.astype(o_ref.dtype)
    # TODO(synk): flash-style K/V tiling (online softmax) for long contexts.


def pallas_attention(q_arr, k_arr, v_arr, q_idx, k_idx, v_idx,
                     heads, d_head, scale, out_dtype=jnp.bfloat16):
    """q_arr: [Sq,B,N,D]; k_arr/v_arr: [Sk,B,M,D]; slab indices select q/k/v
    column blocks via the BlockSpec index maps (no XLA slicing)."""
    _, B, N, D = q_arr.shape
    M = k_arr.shape[2]
    cfg = _hw_config()
    tq = _pick_tile(N, cfg["tm"], (16, 8))
    grid = (B, N // tq)
    return pl.pallas_call(
        functools.partial(_attn_kernel, heads=heads, d_head=d_head, scale=scale),
        out_shape=jax.ShapeDtypeStruct((B, N, D), out_dtype),
        grid=grid,
        in_specs=[
            pl.BlockSpec((1, 1, tq, D), lambda b, i: (q_idx, b, i, 0)),
            pl.BlockSpec((1, 1, M, D), lambda b, i: (k_idx, b, 0, 0)),
            pl.BlockSpec((1, 1, M, D), lambda b, i: (v_idx, b, 0, 0)),
        ],
        out_specs=pl.BlockSpec((1, tq, D), lambda b, i: (b, i, 0)),
        compiler_params=_cparams(("parallel", "arbitrary")),
    )(q_arr, k_arr, v_arr)


# ----------------------------------------------------------------------------
# Model glue (plain JAX: tiny tensors, reshapes, parameter bookkeeping)
# ----------------------------------------------------------------------------
def positional_embedding(t, num_channels, max_positions=10000):
    half = num_channels // 2
    freqs = jnp.arange(half, dtype=jnp.float32) / float(half)  # endpoint=False
    freqs = (1.0 / max_positions) ** freqs
    x = t[:, None] * freqs[None, :]  # torch.ger
    return jnp.concatenate([jnp.cos(x), jnp.sin(x)], axis=1)  # [B, num_channels]


def _ada_scale_shift(t_emb, w, b, D):
    # AdaLayerNorm: emb = Linear(t_emb); scale, shift = chunk(emb, 2).
    # (NOTE: the reference defines SiLU but never applies it in forward.)
    emb = pallas_linear(t_emb, w, b, out_dtype=jnp.float32)  # [B, 2D], tiny
    return emb[:, None, :D], emb[:, None, D:]                # [B,1,D] each


def transformer_block(p, h, t_emb, cond_bf, heads, d_head, attn_scale):
    # ls*/drop_path* are Identity (init_values=0, drop_path=0)
    B, N, D = h.shape
    h2d = lambda a: a.reshape(B * N, D)

    # --- self-attention: AdaLN fused into the stacked QKV GEMM ---
    sc, sh = _ada_scale_shift(t_emb, p["norm1_w"], p["norm1_b"], D)
    qkv = pallas_adaln_stacked_mm(h, sc, sh, p["attn1"]["w_qkv"])   # [3,B,N,D]
    a1 = pallas_attention(qkv, qkv, qkv, 0, 1, 2, heads, d_head, attn_scale)
    h = pallas_linear(h2d(a1), p["attn1"]["wo"], p["attn1"]["bo"],
                      residual=h2d(h), out_dtype=jnp.bfloat16).reshape(B, N, D)

    # --- cross-attention ---
    sc, sh = _ada_scale_shift(t_emb, p["norm2_w"], p["norm2_b"], D)
    q2 = pallas_adaln_stacked_mm(h, sc, sh, p["attn2"]["wq"])       # [1,B,N,D]
    kv = pallas_stacked_mm(cond_bf, p["attn2"]["w_kv"])             # [2,B,M,D]
    a2 = pallas_attention(q2, kv, kv, 0, 0, 1, heads, d_head, attn_scale)
    h = pallas_linear(h2d(a2), p["attn2"]["wo"], p["attn2"]["bo"],
                      residual=h2d(h), out_dtype=jnp.bfloat16).reshape(B, N, D)

    # --- feed-forward: AdaLN + FF1 + GEGLU fused, residual fused into FF2 ---
    sc, sh = _ada_scale_shift(t_emb, p["norm3_w"], p["norm3_b"], D)
    g = pallas_adaln_ff1_geglu(h, sc, sh, p["ff"]["w1a"], p["ff"]["w1g"],
                               p["ff"]["b1a"], p["ff"]["b1g"])      # [B,N,inner]
    inner = g.shape[-1]
    h = pallas_linear(g.reshape(B * N, inner), p["ff"]["w2"], p["ff"]["b2"],
                      residual=h2d(h), out_dtype=jnp.bfloat16).reshape(B, N, D)
    return h


def latent_array_transformer_forward(params, x, t, cond, *, n_heads, d_head,
                                     t_channels):
    assert x.ndim == 3 and t.ndim == 1 and cond.ndim == 3
    B, N, Cin = x.shape
    D = n_heads * d_head
    attn_scale = float(d_head) ** -0.5

    # t -> sinusoidal embedding -> two SiLU-MLP layers (t_emb is [B, D]; the
    # torch [B,1,D] singleton token axis is folded out).
    pe = positional_embedding(t, t_channels)
    te = pallas_linear(pe, params["map_layer0_w"], params["map_layer0_b"],
                       act="silu", out_dtype=jnp.float32)
    te = pallas_linear(te, params["map_layer1_w"], params["map_layer1_b"],
                       act="silu", out_dtype=jnp.float32)

    # proj_in (bias=False) -> bf16 residual stream
    h = pallas_linear(x.reshape(B * N, Cin), params["proj_in_w"],
                      out_dtype=jnp.bfloat16).reshape(B, N, D)

    # One-time bf16 cast of the context, reused by every block's KV GEMM.
    cond_bf = cond.astype(jnp.bfloat16)

    # TODO(synk): training-time cond_dropout / DropPath branches are eval no-ops and omitted.
    for blk in params["blocks"]:
        h = transformer_block(blk, h, te, cond_bf, n_heads, d_head, attn_scale)

    # Final LayerNorm fused into proj_out (bias=False, zero-initialized).
    out = pallas_ln_mm(h, params["norm_w"], params["norm_b"],
                       params["proj_out_w"], out_dtype=jnp.float32)
    return out


# ----------------------------------------------------------------------------
# Deterministic synthetic parameter init (shapes follow the torch __init__;
# matmul weights stored [in, out] (or stacked [S, in, out]) and pre-cast to
# bf16 once).
# ----------------------------------------------------------------------------
def init_params(key, in_channels, t_channels, n_heads, d_head, depth,
                context_dim, out_channels=None):
    D = n_heads * d_head
    inner_ff = 4 * D
    keys = iter(jax.random.split(key, 64 + depth * 64))

    def w(*shape, s=0.02):
        return (jax.random.normal(next(keys), shape, jnp.float32) * s
                ).astype(jnp.bfloat16)

    def b(d, s=0.02):
        return jax.random.normal(next(keys), (d,), jnp.float32) * s

    params = {
        "proj_in_w": w(in_channels, D),
        "map_layer0_w": w(t_channels, D), "map_layer0_b": b(D),
        "map_layer1_w": w(D, D), "map_layer1_b": b(D),
        "norm_w": jnp.ones((D,), jnp.float32),
        "norm_b": jnp.zeros((D,), jnp.float32),
        # zero_module(proj_out)
        "proj_out_w": jnp.zeros(
            (D, out_channels if out_channels is not None else in_channels),
            jnp.bfloat16),
        "blocks": [],
    }
    for _ in range(depth):
        blk = {
            "norm1_w": w(D, 2 * D), "norm1_b": b(2 * D),
            "attn1": {"w_qkv": w(3, D, D), "wo": w(D, D), "bo": b(D)},
            "norm2_w": w(D, 2 * D), "norm2_b": b(2 * D),
            "attn2": {"wq": w(1, D, D), "w_kv": w(2, context_dim, D),
                      "wo": w(D, D), "bo": b(D)},
            "norm3_w": w(D, 2 * D), "norm3_b": b(2 * D),
            "ff": {"w1a": w(D, inner_ff), "w1g": w(D, inner_ff),
                   "b1a": b(inner_ff), "b1g": b(inner_ff),
                   "w2": w(inner_ff, D), "b2": b(D)},
        }
        params["blocks"].append(blk)
    return params


if __name__ == "__main__":
    # Small shapes consistent with the module's forward contract.
    B, N, in_channels = 2, 8, 4
    t_channels = 8
    n_heads, d_head = 2, 16          # inner_dim = 32
    context_dim, M_ctx = 16, 6
    depth = 2

    key = jax.random.PRNGKey(0)
    kp, kx, kt, kc = jax.random.split(key, 4)

    params = init_params(kp, in_channels, t_channels, n_heads, d_head, depth,
                         context_dim)

    x = jax.random.normal(kx, (B, N, in_channels), jnp.float32)
    t = jax.random.uniform(kt, (B,), jnp.float32) * 10.0
    cond = jax.random.normal(kc, (B, M_ctx, context_dim), jnp.float32)

    fwd = jax.jit(functools.partial(latent_array_transformer_forward,
                                    n_heads=n_heads, d_head=d_head,
                                    t_channels=t_channels))
    out = fwd(params, x, t, cond)
    out = jax.block_until_ready(out)

    assert out.shape == (B, N, in_channels), out.shape
    assert bool(jnp.all(jnp.isfinite(out)))
    print("KERNEL_OK")
</pallas_src>

<mosaic_0001>
module attributes {stable_mosaic.version = 11 : i64} {
  func.func @_mm_kernel(%arg0: i32, %arg1: i32, %arg2: i32, %arg3: memref<2x8xf32, #tpu.memory_space<vmem>>, %arg4: memref<8x32xbf16, #tpu.memory_space<vmem>>, %arg5: memref<1x32xf32, #tpu.memory_space<vmem>>, %arg6: memref<2x32xf32, #tpu.memory_space<vmem>>, %arg7: memref<2x32xf32, #tpu.memory_space<vmem>>) attributes {dimension_semantics = [#tpu.dimension_semantics<parallel>, #tpu.dimension_semantics<parallel>, #tpu.dimension_semantics<arbitrary>], iteration_bounds = array<i64: 1, 1, 1>, scalar_prefetch = 0 : i64, scratch_operands = 1 : i64, tpu.core_type = #tpu.core_type<tc>, window_params = [{transform_indices = @transform_0, window_bounds = array<i64: 2, 8>}, {transform_indices = @transform_1, window_bounds = array<i64: 8, 32>}, {transform_indices = @transform_2, window_bounds = array<i64: 1, 32>}, {transform_indices = @transform_3, window_bounds = array<i64: 2, 32>}]} {
    %c0_i32 = arith.constant 0 : i32
    %0 = arith.cmpi eq, %arg2, %c0_i32 : i32
    %1 = arith.extui %0 : i1 to i32
    %c0_i32_0 = arith.constant 0 : i32
    %2 = arith.cmpi ne, %1, %c0_i32_0 : i32
    scf.if %2 {
      %cst_10 = arith.constant 0.000000e+00 : f32
      %13 = vector.broadcast %cst_10 : f32 to vector<2x32xf32>
      %c0_11 = arith.constant 0 : index
      %c0_12 = arith.constant 0 : index
      %14 = vector.load %arg7[%c0_11, %c0_12] : memref<2x32xf32, #tpu.memory_space<vmem>>, vector<2x32xf32>
      tpu.vector_store %arg7[%c0_11, %c0_12], %13 {strides = array<i32>} : memref<2x32xf32, #tpu.memory_space<vmem>>, vector<2x32xf32>,
    } else {
    }
    %c0 = arith.constant 0 : index
    %c0_1 = arith.constant 0 : index
    %3 = vector.load %arg7[%c0, %c0_1] : memref<2x32xf32, #tpu.memory_space<vmem>>, vector<2x32xf32>
    %c0_2 = arith.constant 0 : index
    %c0_3 = arith.constant 0 : index
    %4 = vector.load %arg3[%c0_2, %c0_3] : memref<2x8xf32, #tpu.memory_space<vmem>>, vector<2x8xf32>
    %5 = arith.truncf %4 : vector<2x8xf32> to vector<2x8xbf16>
    %c0_4 = arith.constant 0 : index
    %c0_5 = arith.constant 0 : index
    %6 = vector.load %arg4[%c0_4, %c0_5] : memref<8x32xbf16, #tpu.memory_space<vmem>>, vector<8x32xbf16>
    %cst = arith.constant dense<0.000000e+00> : vector<2x32xf32>
    %7 = tpu.matmul %5, %6, %cst {dimension_numbers = #tpu.dot_dimension_numbers<[1], [0], [0], [1], [0, 0, 1, 1], [], []>} : vector<2x8xbf16>, vector<8x32xbf16>, vector<2x32xf32> -> vector<2x32xf32>
    %8 = arith.addf %3, %7 : vector<2x32xf32>
    %c0_6 = arith.constant 0 : index
    %c0_7 = arith.constant 0 : index
    %9 = vector.load %arg7[%c0_6, %c0_7] : memref<2x32xf32, #tpu.memory_space<vmem>>, vector<2x32xf32>
    tpu.vector_store %arg7[%c0_6, %c0_7], %8 {strides = array<i32>} : memref<2x32xf32, #tpu.memory_space<vmem>>, vector<2x32xf32>,
    %c0_i32_8 = arith.constant 0 : i32
    %10 = arith.cmpi eq, %arg2, %c0_i32_8 : i32
    %11 = arith.extui %10 : i1 to i32
    %c0_i32_9 = arith.constant 0 : i32
    %12 = arith.cmpi ne, %11, %c0_i32_9 : i32
    scf.if %12 {
      %c0_10 = arith.constant 0 : index
      %c0_11 = arith.constant 0 : index
      %13 = vector.load %arg7[%c0_10, %c0_11] : memref<2x32xf32, #tpu.memory_space<vmem>>, vector<2x32xf32>
      %c0_12 = arith.constant 0 : index
      %c0_13 = arith.constant 0 : index
      %14 = vector.load %arg5[%c0_12, %c0_13] : memref<1x32xf32, #tpu.memory_space<vmem>>, vector<1x32xf32>
      %15 = vector.broadcast %14 : vector<1x32xf32> to vector<2x32xf32>
      %16 = arith.addf %13, %15 : vector<2x32xf32>
      %cst_14 = arith.constant 0.000000e+00 : f32
      %17 = vector.broadcast %cst_14 : f32 to vector<2x32xf32>
      %18 = arith.subf %17, %16 : vector<2x32xf32>
      %19 = math.exp %18 : vector<2x32xf32>
      %cst_15 = arith.constant 1.000000e+00 : f32
      %20 = vector.broadcast %cst_15 : f32 to vector<2x32xf32>
      %21 = arith.addf %20, %19 : vector<2x32xf32>
      %22 = tpu.reciprocal %21 {approx = true} : vector<2x32xf32> -> vector<2x32xf32>
      %23 = arith.mulf %16, %22 : vector<2x32xf32>
      %c0_16 = arith.constant 0 : index
      %c0_17 = arith.constant 0 : index
      %24 = vector.load %arg6[%c0_16, %c0_17] : memref<2x32xf32, #tpu.memory_space<vmem>>, vector<2x32xf32>
      tpu.vector_store %arg6[%c0_16, %c0_17], %23 {strides = array<i32>} : memref<2x32xf32, #tpu.memory_space<vmem>>, vector<2x32xf32>,
    } else {
    }
    return
  }
  func.func @transform_0(%arg0: i32, %arg1: i32, %arg2: i32) -> (i32, i32) {
    %c0_i32 = arith.constant 0 : i32
    return %arg0, %arg2 : i32, i32
  }
  func.func @transform_1(%arg0: i32, %arg1: i32, %arg2: i32) -> (i32, i32) {
    %c0_i32 = arith.constant 0 : i32
    return %arg2, %arg1 : i32, i32
  }
  func.func @transform_2(%arg0: i32, %arg1: i32, %arg2: i32) -> (i32, i32) {
    %c0_i32 = arith.constant 0 : i32
    %c0_i32_0 = arith.constant 0 : i32
    return %c0_i32, %arg1 : i32, i32
  }
  func.func @transform_3(%arg0: i32, %arg1: i32, %arg2: i32) -> (i32, i32) {
    %c0_i32 = arith.constant 0 : i32
    return %arg0, %arg1 : i32, i32
  }
}

module attributes {stable_mosaic.version = 11 : i64} {
  func.func @_mm_kernel(%arg0: i32, %arg1: i32, %arg2: i32, %arg3: memref<2x32xf32, #tpu.memory_space<vmem>>, %arg4: memref<32x32xbf16, #tpu.memory_space<vmem>>, %arg5: memref<1x32xf32, #tpu.memory_space<vmem>>, %arg6: memref<2x32xf32, #tpu.memory_space<vmem>>, %arg7: memref<2x32xf32, #tpu.memory_space<vmem>>) attributes {dimension_semantics = [#tpu.dimension_semantics<parallel>, #tpu.dimension_semantics<parallel>, #tpu.dimension_semantics<arbitrary>], iteration_bounds = array<i64: 1, 1, 1>, scalar_prefetch = 0 : i64, scratch_operands = 1 : i64, tpu.core_type = #tpu.core_type<tc>, window_params = [{transform_indices = @transform_0, window_bounds = array<i64: 2, 32>}, {transform_indices = @transform_1, window_bounds = array<i64: 32, 32>}, {transform_indices = @transform_2, window_bounds = array<i64: 1, 32>}, {transform_indices = @transform_3, window_bounds = array<i64: 2, 32>}]} {
    %c0_i32 = arith.constant 0 : i32
    %0 = arith.cmpi eq, %arg2, %c0_i32 : i32
    %1 = arith.extui %0 : i1 to i32
    %c0_i32_0 = arith.constant 0 : i32
    %2 = arith.cmpi ne, %1, %c0_i32_0 : i32
    scf.if %2 {
      %cst_10 = arith.constant 0.000000e+00 : f32
      %13 = vector.broadcast %cst_10 : f32 to vector<2x32xf32>
      %c0_11 = arith.constant 0 : index
      %c0_12 = arith.constant 0 : index
      %14 = vector.load %arg7[%c0_11, %c0_12] : memref<2x32xf32, #tpu.memory_space<vmem>>, vector<2x32xf32>
      tpu.vector_store %arg7[%c0_11, %c0_12], %13 {strides = array<i32>} : memref<2x32xf32, #tpu.memory_space<vmem>>, vector<2x32xf32>,
    } else {
    }
    %c0 = arith.constant 0 : index
    %c0_1 = arith.constant 0 : index
    %3 = vector.load %arg7[%c0, %c0_1] : memref<2x32xf32, #tpu.memory_space<vmem>>, vector<2x32xf32>
    %c0_2 = arith.constant 0 : index
    %c0_3 = arith.constant 0 : index
    %4 = vector.load %arg3[%c0_2, %c0_3] : memref<2x32xf32, #tpu.memory_space<vmem>>, vector<2x32xf32>
    %5 = arith.truncf %4 : vector<2x32xf32> to vector<2x32xbf16>
    %c0_4 = arith.constant 0 : index
    %c0_5 = arith.constant 0 : index
    %6 = vector.load %arg4[%c0_4, %c0_5] : memref<32x32xbf16, #tpu.memory_space<vmem>>, vector<32x32xbf16>
    %cst = arith.constant dense<0.000000e+00> : vector<2x32xf32>
    %7 = tpu.matmul %5, %6, %cst {dimension_numbers = #tpu.dot_dimension_numbers<[1], [0], [0], [1], [0, 0, 1, 1], [], []>} : vector<2x32xbf16>, vector<32x32xbf16>, vector<2x32xf32> -> vector<2x32xf32>
    %8 = arith.addf %3, %7 : vector<2x32xf32>
    %c0_6 = arith.constant 0 : index
    %c0_7 = arith.constant 0 : index
    %9 = vector.load %arg7[%c0_6, %c0_7] : memref<2x32xf32, #tpu.memory_space<vmem>>, vector<2x32xf32>
    tpu.vector_store %arg7[%c0_6, %c0_7], %8 {strides = array<i32>} : memref<2x32xf32, #tpu.memory_space<vmem>>, vector<2x32xf32>,
    %c0_i32_8 = arith.constant 0 : i32
    %10 = arith.cmpi eq, %arg2, %c0_i32_8 : i32
    %11 = arith.extui %10 : i1 to i32
    %c0_i32_9 = arith.constant 0 : i32
    %12 = arith.cmpi ne, %11, %c0_i32_9 : i32
    scf.if %12 {
      %c0_10 = arith.constant 0 : index
      %c0_11 = arith.constant 0 : index
      %13 = vector.load %arg7[%c0_10, %c0_11] : memref<2x32xf32, #tpu.memory_space<vmem>>, vector<2x32xf32>
      %c0_12 = arith.constant 0 : index
      %c0_13 = arith.constant 0 : index
      %14 = vector.load %arg5[%c0_12, %c0_13] : memref<1x32xf32, #tpu.memory_space<vmem>>, vector<1x32xf32>
      %15 = vector.broadcast %14 : vector<1x32xf32> to vector<2x32xf32>
      %16 = arith.addf %13, %15 : vector<2x32xf32>
      %cst_14 = arith.constant 0.000000e+00 : f32
      %17 = vector.broadcast %cst_14 : f32 to vector<2x32xf32>
      %18 = arith.subf %17, %16 : vector<2x32xf32>
      %19 = math.exp %18 : vector<2x32xf32>
      %cst_15 = arith.constant 1.000000e+00 : f32
      %20 = vector.broadcast %cst_15 : f32 to vector<2x32xf32>
      %21 = arith.addf %20, %19 : vector<2x32xf32>
      %22 = tpu.reciprocal %21 {approx = true} : vector<2x32xf32> -> vector<2x32xf32>
      %23 = arith.mulf %16, %22 : vector<2x32xf32>
      %c0_16 = arith.constant 0 : index
      %c0_17 = arith.constant 0 : index
      %24 = vector.load %arg6[%c0_16, %c0_17] : memref<2x32xf32, #tpu.memory_space<vmem>>, vector<2x32xf32>
      tpu.vector_store %arg6[%c0_16, %c0_17], %23 {strides = array<i32>} : memref<2x32xf32, #tpu.memory_space<vmem>>, vector<2x32xf32>,
    } else {
    }
    return
  }
  func.func @transform_0(%arg0: i32, %arg1: i32, %arg2: i32) -> (i32, i32) {
    %c0_i32 = arith.constant 0 : i32
    return %arg0, %arg2 : i32, i32
  }
  func.func @transform_1(%arg0: i32, %arg1: i32, %arg2: i32) -> (i32, i32) {
    %c0_i32 = arith.constant 0 : i32
    return %arg2, %arg1 : i32, i32
  }
  func.func @transform_2(%arg0: i32, %arg1: i32, %arg2: i32) -> (i32, i32) {
    %c0_i32 = arith.constant 0 : i32
    %c0_i32_0 = arith.constant 0 : i32
    return %c0_i32, %arg1 : i32, i32
  }
  func.func @transform_3(%arg0: i32, %arg1: i32, %arg2: i32) -> (i32, i32) {
    %c0_i32 = arith.constant 0 : i32
    return %arg0, %arg1 : i32, i32
  }
}

module attributes {stable_mosaic.version = 11 : i64} {
  func.func @_mm_kernel(%arg0: i32, %arg1: i32, %arg2: i32, %arg3: memref<2x32xf32, #tpu.memory_space<vmem>>, %arg4: memref<32x64xbf16, #tpu.memory_space<vmem>>, %arg5: memref<1x64xf32, #tpu.memory_space<vmem>>, %arg6: memref<2x64xf32, #tpu.memory_space<vmem>>, %arg7: memref<2x64xf32, #tpu.memory_space<vmem>>) attributes {dimension_semantics = [#tpu.dimension_semantics<parallel>, #tpu.dimension_semantics<parallel>, #tpu.dimension_semantics<arbitrary>], iteration_bounds = array<i64: 1, 1, 1>, scalar_prefetch = 0 : i64, scratch_operands = 1 : i64, tpu.core_type = #tpu.core_type<tc>, window_params = [{transform_indices = @transform_0, window_bounds = array<i64: 2, 32>}, {transform_indices = @transform_1, window_bounds = array<i64: 32, 64>}, {transform_indices = @transform_2, window_bounds = array<i64: 1, 64>}, {transform_indices = @transform_3, window_bounds = array<i64: 2, 64>}]} {
    %c0_i32 = arith.constant 0 : i32
    %0 = arith.cmpi eq, %arg2, %c0_i32 : i32
    %1 = arith.extui %0 : i1 to i32
    %c0_i32_0 = arith.constant 0 : i32
    %2 = arith.cmpi ne, %1, %c0_i32_0 : i32
    scf.if %2 {
      %cst_10 = arith.constant 0.000000e+00 : f32
      %13 = vector.broadcast %cst_10 : f32 to vector<2x64xf32>
      %c0_11 = arith.constant 0 : index
      %c0_12 = arith.constant 0 : index
      %14 = vector.load %arg7[%c0_11, %c0_12] : memref<2x64xf32, #tpu.memory_space<vmem>>, vector<2x64xf32>
      tpu.vector_store %arg7[%c0_11, %c0_12], %13 {strides = array<i32>} : memref<2x64xf32, #tpu.memory_space<vmem>>, vector<2x64xf32>,
    } else {
    }
    %c0 = arith.constant 0 : index
    %c0_1 = arith.constant 0 : index
    %3 = vector.load %arg7[%c0, %c0_1] : memref<2x64xf32, #tpu.memory_space<vmem>>, vector<2x64xf32>
    %c0_2 = arith.constant 0 : index
    %c0_3 = arith.constant 0 : index
    %4 = vector.load %arg3[%c0_2, %c0_3] : memref<2x32xf32, #tpu.memory_space<vmem>>, vector<2x32xf32>
    %5 = arith.truncf %4 : vector<2x32xf32> to vector<2x32xbf16>
    %c0_4 = arith.constant 0 : index
    %c0_5 = arith.constant 0 : index
    %6 = vector.load %arg4[%c0_4, %c0_5] : memref<32x64xbf16, #tpu.memory_space<vmem>>, vector<32x64xbf16>
    %cst = arith.constant dense<0.000000e+00> : vector<2x64xf32>
    %7 = tpu.matmul %5, %6, %cst {dimension_numbers = #tpu.dot_dimension_numbers<[1], [0], [0], [1], [0, 0, 1, 1], [], []>} : vector<2x32xbf16>, vector<32x64xbf16>, vector<2x64xf32> -> vector<2x64xf32>
    %8 = arith.addf %3, %7 : vector<2x64xf32>
    %c0_6 = arith.constant 0 : index
    %c0_7 = arith.constant 0 : index
    %9 = vector.load %arg7[%c0_6, %c0_7] : memref<2x64xf32, #tpu.memory_space<vmem>>, vector<2x64xf32>
    tpu.vector_store %arg7[%c0_6, %c0_7], %8 {strides = array<i32>} : memref<2x64xf32, #tpu.memory_space<vmem>>, vector<2x64xf32>,
    %c0_i32_8 = arith.constant 0 : i32
    %10 = arith.cmpi eq, %arg2, %c0_i32_8 : i32
    %11 = arith.extui %10 : i1 to i32
    %c0_i32_9 = arith.constant 0 : i32
    %12 = arith.cmpi ne, %11, %c0_i32_9 : i32
    scf.if %12 {
      %c0_10 = arith.constant 0 : index
      %c0_11 = arith.constant 0 : index
      %13 = vector.load %arg7[%c0_10, %c0_11] : memref<2x64xf32, #tpu.memory_space<vmem>>, vector<2x64xf32>
      %c0_12 = arith.constant 0 : index
      %c0_13 = arith.constant 0 : index
      %14 = vector.load %arg5[%c0_12, %c0_13] : memref<1x64xf32, #tpu.memory_space<vmem>>, vector<1x64xf32>
      %15 = vector.broadcast %14 : vector<1x64xf32> to vector<2x64xf32>
      %16 = arith.addf %13, %15 : vector<2x64xf32>
      %c0_14 = arith.constant 0 : index
      %c0_15 = arith.constant 0 : index
      %17 = vector.load %arg6[%c0_14, %c0_15] : memref<2x64xf32, #tpu.memory_space<vmem>>, vector<2x64xf32>
      tpu.vector_store %arg6[%c0_14, %c0_15], %16 {strides = array<i32>} : memref<2x64xf32, #tpu.memory_space<vmem>>, vector<2x64xf32>,
    } else {
    }
    return
  }
  func.func @transform_0(%arg0: i32, %arg1: i32, %arg2: i32) -> (i32, i32) {
    %c0_i32 = arith.constant 0 : i32
    return %arg0, %arg2 : i32, i32
  }
  func.func @transform_1(%arg0: i32, %arg1: i32, %arg2: i32) -> (i32, i32) {
    %c0_i32 = arith.constant 0 : i32
    return %arg2, %arg1 : i32, i32
  }
  func.func @transform_2(%arg0: i32, %arg1: i32, %arg2: i32) -> (i32, i32) {
    %c0_i32 = arith.constant 0 : i32
    %c0_i32_0 = arith.constant 0 : i32
    return %c0_i32, %arg1 : i32, i32
  }
  func.func @transform_3(%arg0: i32, %arg1: i32, %arg2: i32) -> (i32, i32) {
    %c0_i32 = arith.constant 0 : i32
    return %arg0, %arg1 : i32, i32
  }
}

module attributes {stable_mosaic.version = 11 : i64} {
  func.func @_mm_kernel(%arg0: i32, %arg1: i32, %arg2: i32, %arg3: memref<16x4xf32, #tpu.memory_space<vmem>>, %arg4: memref<4x32xbf16, #tpu.memory_space<vmem>>, %arg5: memref<16x32xbf16, #tpu.memory_space<vmem>>, %arg6: memref<16x32xf32, #tpu.memory_space<vmem>>) attributes {dimension_semantics = [#tpu.dimension_semantics<parallel>, #tpu.dimension_semantics<parallel>, #tpu.dimension_semantics<arbitrary>], iteration_bounds = array<i64: 1, 1, 1>, scalar_prefetch = 0 : i64, scratch_operands = 1 : i64, tpu.core_type = #tpu.core_type<tc>, window_params = [{transform_indices = @transform_0, window_bounds = array<i64: 16, 4>}, {transform_indices = @transform_1, window_bounds = array<i64: 4, 32>}, {transform_indices = @transform_2, window_bounds = array<i64: 16, 32>}]} {
    %c0_i32 = arith.constant 0 : i32
    %0 = arith.cmpi eq, %arg2, %c0_i32 : i32
    %1 = arith.extui %0 : i1 to i32
    %c0_i32_0 = arith.constant 0 : i32
    %2 = arith.cmpi ne, %1, %c0_i32_0 : i32
    scf.if %2 {
      %cst_10 = arith.constant 0.000000e+00 : f32
      %13 = vector.broadcast %cst_10 : f32 to vector<16x32xf32>
      %c0_11 = arith.constant 0 : index
      %c0_12 = arith.constant 0 : index
      %14 = vector.load %arg6[%c0_11, %c0_12] : memref<16x32xf32, #tpu.memory_space<vmem>>, vector<16x32xf32>
      tpu.vector_store %arg6[%c0_11, %c0_12], %13 {strides = array<i32>} : memref<16x32xf32, #tpu.memory_space<vmem>>, vector<16x32xf32>,
    } else {
    }
    %c0 = arith.constant 0 : index
    %c0_1 = arith.constant 0 : index
    %3 = vector.load %arg6[%c0, %c0_1] : memref<16x32xf32, #tpu.memory_space<vmem>>, vector<16x32xf32>
    %c0_2 = arith.constant 0 : index
    %c0_3 = arith.constant 0 : index
    %4 = vector.load %arg3[%c0_2, %c0_3] : memref<16x4xf32, #tpu.memory_space<vmem>>, vector<16x4xf32>
    %5 = arith.truncf %4 : vector<16x4xf32> to vector<16x4xbf16>
    %c0_4 = arith.constant 0 : index
    %c0_5 = arith.constant 0 : index
    %6 = vector.load %arg4[%c0_4, %c0_5] : memref<4x32xbf16, #tpu.memory_space<vmem>>, vector<4x32xbf16>
    %cst = arith.constant dense<0.000000e+00> : vector<16x32xf32>
    %7 = tpu.matmul %5, %6, %cst {dimension_numbers = #tpu.dot_dimension_numbers<[1], [0], [0], [1], [0, 0, 1, 1], [], []>} : vector<16x4xbf16>, vector<4x32xbf16>, vector<16x32xf32> -> vector<16x32xf32>
    %8 = arith.addf %3, %7 : vector<16x32xf32>
    %c0_6 = arith.constant 0 : index
    %c0_7 = arith.constant 0 : index
    %9 = vector.load %arg6[%c0_6, %c0_7] : memref<16x32xf32, #tpu.memory_space<vmem>>, vector<16x32xf32>
    tpu.vector_store %arg6[%c0_6, %c0_7], %8 {strides = array<i32>} : memref<16x32xf32, #tpu.memory_space<vmem>>, vector<16x32xf32>,
    %c0_i32_8 = arith.constant 0 : i32
    %10 = arith.cmpi eq, %arg2, %c0_i32_8 : i32
    %11 = arith.extui %10 : i1 to i32
    %c0_i32_9 = arith.constant 0 : i32
    %12 = arith.cmpi ne, %11, %c0_i32_9 : i32
    scf.if %12 {
      %c0_10 = arith.constant 0 : index
      %c0_11 = arith.constant 0 : index
      %13 = vector.load %arg6[%c0_10, %c0_11] : memref<16x32xf32, #tpu.memory_space<vmem>>, vector<16x32xf32>
      %14 = arith.truncf %13 : vector<16x32xf32> to vector<16x32xbf16>
      %c0_12 = arith.constant 0 : index
      %c0_13 = arith.constant 0 : index
      %15 = vector.load %arg5[%c0_12, %c0_13] : memref<16x32xbf16, #tpu.memory_space<vmem>>, vector<16x32xbf16>
      tpu.vector_store %arg5[%c0_12, %c0_13], %14 {strides = array<i32>} : memref<16x32xbf16, #tpu.memory_space<vmem>>, vector<16x32xbf16>,
    } else {
    }
    return
  }
  func.func @transform_0(%arg0: i32, %arg1: i32, %arg2: i32) -> (i32, i32) {
    %c0_i32 = arith.constant 0 : i32
    return %arg0, %arg2 : i32, i32
  }
  func.func @transform_1(%arg0: i32, %arg1: i32, %arg2: i32) -> (i32, i32) {
    %c0_i32 = arith.constant 0 : i32
    return %arg2, %arg1 : i32, i32
  }
  func.func @transform_2(%arg0: i32, %arg1: i32, %arg2: i32) -> (i32, i32) {
    %c0_i32 = arith.constant 0 : i32
    return %arg0, %arg1 : i32, i32
  }
}

module attributes {stable_mosaic.version = 11 : i64} {
  func.func @_adaln_stacked_mm_kernel(%arg0: i32, %arg1: i32, %arg2: i32, %arg3: i32, %arg4: memref<1x8x32xbf16, #tpu.memory_space<vmem>>, %arg5: memref<1x1x32xf32, #tpu.memory_space<vmem>>, %arg6: memref<1x1x32xf32, #tpu.memory_space<vmem>>, %arg7: memref<1x32x32xbf16, #tpu.memory_space<vmem>>, %arg8: memref<1x1x8x32xbf16, #tpu.memory_space<vmem>>, %arg9: memref<8x32xbf16, #tpu.memory_space<vmem>>) attributes {dimension_semantics = [#tpu.dimension_semantics<parallel>, #tpu.dimension_semantics<parallel>, #tpu.dimension_semantics<arbitrary>, #tpu.dimension_semantics<arbitrary>], iteration_bounds = array<i64: 2, 1, 3, 1>, scalar_prefetch = 0 : i64, scratch_operands = 1 : i64, tpu.core_type = #tpu.core_type<tc>, window_params = [{transform_indices = @transform_0, window_bounds = array<i64: 1, 8, 32>}, {transform_indices = @transform_1, window_bounds = array<i64: 1, 1, 32>}, {transform_indices = @transform_2, window_bounds = array<i64: 1, 1, 32>}, {transform_indices = @transform_3, window_bounds = array<i64: 1, 32, 32>}, {transform_indices = @transform_4, window_bounds = array<i64: 1, 1, 8, 32>}]} {
    %c0_i32 = arith.constant 0 : i32
    %0 = arith.cmpi eq, %arg2, %c0_i32 : i32
    %c0_i32_0 = arith.constant 0 : i32
    %1 = arith.cmpi eq, %arg3, %c0_i32_0 : i32
    %2 = arith.andi %0, %1 : i1
    %3 = arith.extui %2 : i1 to i32
    %c0_i32_1 = arith.constant 0 : i32
    %4 = arith.cmpi ne, %3, %c0_i32_1 : i32
    scf.if %4 {
      %c0_10 = arith.constant 0 : index
      %c0_11 = arith.constant 0 : index
      %c0_12 = arith.constant 0 : index
      %13 = vector.load %arg4[%c0_10, %c0_11, %c0_12] : memref<1x8x32xbf16, #tpu.memory_space<vmem>>, vector<1x8x32xbf16>
      %14 = vector.shape_cast %13 : vector<1x8x32xbf16> to vector<8x32xbf16>
      %15 = arith.extf %14 : vector<8x32xbf16> to vector<8x32xf32>
      %cst_13 = arith.constant dense<0.000000e+00> : vector<8xf32>
      %16 = vector.multi_reduction <add>, %15, %cst_13 [1] : vector<8x32xf32> to vector<8xf32>
      %17 = vector.shape_cast %16 : vector<8xf32> to vector<8x1xf32>
      %cst_14 = arith.constant 3.200000e+01 : f32
      %18 = vector.broadcast %cst_14 : f32 to vector<8x1xf32>
      %19 = arith.divf %17, %18 : vector<8x1xf32>
      %20 = vector.broadcast %19 : vector<8x1xf32> to vector<8x32xf32>
      %21 = arith.subf %15, %20 : vector<8x32xf32>
      %22 = arith.mulf %21, %21 : vector<8x32xf32>
      %cst_15 = arith.constant dense<0.000000e+00> : vector<8xf32>
      %23 = vector.multi_reduction <add>, %22, %cst_15 [1] : vector<8x32xf32> to vector<8xf32>
      %24 = vector.shape_cast %23 : vector<8xf32> to vector<8x1xf32>
      %cst_16 = arith.constant 3.200000e+01 : f32
      %25 = vector.broadcast %cst_16 : f32 to vector<8x1xf32>
      %26 = arith.divf %24, %25 : vector<8x1xf32>
      %27 = vector.broadcast %19 : vector<8x1xf32> to vector<8x32xf32>
      %28 = arith.subf %15, %27 : vector<8x32xf32>
      %cst_17 = arith.constant 9.99999974E-6 : f32
      %29 = vector.broadcast %cst_17 : f32 to vector<8x1xf32>
      %30 = arith.addf %26, %29 : vector<8x1xf32>
      %31 = math.rsqrt %30 : vector<8x1xf32>
      %32 = vector.broadcast %31 : vector<8x1xf32> to vector<8x32xf32>
      %33 = arith.mulf %28, %32 : vector<8x32xf32>
      %c0_18 = arith.constant 0 : index
      %c0_19 = arith.constant 0 : index
      %c0_20 = arith.constant 0 : index
      %34 = vector.load %arg5[%c0_18, %c0_19, %c0_20] : memref<1x1x32xf32, #tpu.memory_space<vmem>>, vector<1x1x32xf32>
      %35 = vector.shape_cast %34 : vector<1x1x32xf32> to vector<1x32xf32>
      %cst_21 = arith.constant 1.000000e+00 : f32
      %36 = vector.broadcast %cst_21 : f32 to vector<1x32xf32>
      %37 = arith.addf %36, %35 : vector<1x32xf32>
      %38 = vector.broadcast %37 : vector<1x32xf32> to vector<8x32xf32>
      %39 = arith.mulf %33, %38 : vector<8x32xf32>
      %c0_22 = arith.constant 0 : index
      %c0_23 = arith.constant 0 : index
      %c0_24 = arith.constant 0 : index
      %40 = vector.load %arg6[%c0_22, %c0_23, %c0_24] : memref<1x1x32xf32, #tpu.memory_space<vmem>>, vector<1x1x32xf32>
      %41 = vector.shape_cast %40 : vector<1x1x32xf32> to vector<1x32xf32>
      %42 = vector.broadcast %41 : vector<1x32xf32> to vector<8x32xf32>
      %43 = arith.addf %39, %42 : vector<8x32xf32>
      %44 = arith.truncf %43 : vector<8x32xf32> to vector<8x32xbf16>
      %c0_25 = arith.constant 0 : index
      %c0_26 = arith.constant 0 : index
      %45 = vector.load %arg9[%c0_25, %c0_26] : memref<8x32xbf16, #tpu.memory_space<vmem>>, vector<8x32xbf16>
      tpu.vector_store %arg9[%c0_25, %c0_26], %44 {strides = array<i32>} : memref<8x32xbf16, #tpu.memory_space<vmem>>, vector<8x32xbf16>,
    } else {
    }
    %c0 = arith.constant 0 : index
    %c0_2 = arith.constant 0 : index
    %5 = vector.load %arg9[%c0, %c0_2] : memref<8x32xbf16, #tpu.memory_space<vmem>>, vector<8x32xbf16>
    %c0_3 = arith.constant 0 : index
    %c0_4 = arith.constant 0 : index
    %c0_5 = arith.constant 0 : index
    %6 = vector.load %arg7[%c0_3, %c0_4, %c0_5] : memref<1x32x32xbf16, #tpu.memory_space<vmem>>, vector<1x32x32xbf16>
    %7 = vector.shape_cast %6 : vector<1x32x32xbf16> to vector<32x32xbf16>
    %cst = arith.constant dense<0.000000e+00> : vector<8x32xf32>
    %8 = tpu.matmul %5, %7, %cst {dimension_numbers = #tpu.dot_dimension_numbers<[1], [0], [0], [1], [0, 0, 1, 1], [], []>} : vector<8x32xbf16>, vector<32x32xbf16>, vector<8x32xf32> -> vector<8x32xf32>
    %9 = arith.truncf %8 : vector<8x32xf32> to vector<8x32xbf16>
    %c0_6 = arith.constant 0 : index
    %c0_7 = arith.constant 0 : index
    %c0_8 = arith.constant 0 : index
    %c0_9 = arith.constant 0 : index
    %10 = vector.load %arg8[%c0_6, %c0_7, %c0_8, %c0_9] : memref<1x1x8x32xbf16, #tpu.memory_space<vmem>>, vector<1x1x8x32xbf16>
    %11 = vector.shape_cast %10 : vector<1x1x8x32xbf16> to vector<8x32xbf16>
    %12 = vector.shape_cast %9 : vector<8x32xbf16> to vector<1x1x8x32xbf16>
    tpu.vector_store %arg8[%c0_6, %c0_7, %c0_8, %c0_9], %12 {strides = array<i32>} : memref<1x1x8x32xbf16, #tpu.memory_space<vmem>>, vector<1x1x8x32xbf16>,
    return
  }
  func.func @transform_0(%arg0: i32, %arg1: i32, %arg2: i32, %arg3: i32) -> (i32, i32, i32) {
    %c0_i32 = arith.constant 0 : i32
    %c0_i32_0 = arith.constant 0 : i32
    return %arg0, %arg1, %c0_i32 : i32, i32, i32
  }
  func.func @transform_1(%arg0: i32, %arg1: i32, %arg2: i32, %arg3: i32) -> (i32, i32, i32) {
    %c0_i32 = arith.constant 0 : i32
    %c0_i32_0 = arith.constant 0 : i32
    %c0_i32_1 = arith.constant 0 : i32
    return %arg0, %c0_i32, %c0_i32_0 : i32, i32, i32
  }
  func.func @transform_2(%arg0: i32, %arg1: i32, %arg2: i32, %arg3: i32) -> (i32, i32, i32) {
    %c0_i32 = arith.constant 0 : i32
    %c0_i32_0 = arith.constant 0 : i32
    %c0_i32_1 = arith.constant 0 : i32
    return %arg0, %c0_i32, %c0_i32_0 : i32, i32, i32
  }
  func.func @transform_3(%arg0: i32, %arg1: i32, %arg2: i32, %arg3: i32) -> (i32, i32, i32) {
    %c0_i32 = arith.constant 0 : i32
    %c0_i32_0 = arith.constant 0 : i32
    return %arg2, %c0_i32, %arg3 : i32, i32, i32
  }
  func.func @transform_4(%arg0: i32, %arg1: i32, %arg2: i32, %arg3: i32) -> (i32, i32, i32, i32) {
    %c0_i32 = arith.constant 0 : i32
    return %arg2, %arg0, %arg1, %arg3 : i32, i32, i32, i32
  }
}

module attributes {stable_mosaic.version = 11 : i64} {
  func.func @_attn_kernel(%arg0: i32, %arg1: i32, %arg2: memref<1x1x8x32xbf16, #tpu.memory_space<vmem>>, %arg3: memref<1x1x8x32xbf16, #tpu.memory_space<vmem>>, %arg4: memref<1x1x8x32xbf16, #tpu.memory_space<vmem>>, %arg5: memref<1x8x32xbf16, #tpu.memory_space<vmem>>) attributes {dimension_semantics = [#tpu.dimension_semantics<parallel>, #tpu.dimension_semantics<arbitrary>], iteration_bounds = array<i64: 2, 1>, scalar_prefetch = 0 : i64, scratch_operands = 0 : i64, tpu.core_type = #tpu.core_type<tc>, window_params = [{transform_indices = @transform_0, window_bounds = array<i64: 1, 1, 8, 32>}, {transform_indices = @transform_1, window_bounds = array<i64: 1, 1, 8, 32>}, {transform_indices = @transform_2, window_bounds = array<i64: 1, 1, 8, 32>}, {transform_indices = @transform_3, window_bounds = array<i64: 1, 8, 32>}]} {
    %c0 = arith.constant 0 : index
    %c0_0 = arith.constant 0 : index
    %c0_1 = arith.constant 0 : index
    %c0_2 = arith.constant 0 : index
    %0 = vector.load %arg2[%c0, %c0_0, %c0_1, %c0_2] : memref<1x1x8x32xbf16, #tpu.memory_space<vmem>>, vector<1x1x8x32xbf16>
    %1 = vector.shape_cast %0 : vector<1x1x8x32xbf16> to vector<8x32xbf16>
    %c0_3 = arith.constant 0 : index
    %c0_4 = arith.constant 0 : index
    %c0_5 = arith.constant 0 : index
    %c0_6 = arith.constant 0 : index
    %2 = vector.load %arg3[%c0_3, %c0_4, %c0_5, %c0_6] : memref<1x1x8x32xbf16, #tpu.memory_space<vmem>>, vector<1x1x8x32xbf16>
    %3 = vector.shape_cast %2 : vector<1x1x8x32xbf16> to vector<8x32xbf16>
    %c0_7 = arith.constant 0 : index
    %c0_8 = arith.constant 0 : index
    %c0_9 = arith.constant 0 : index
    %c0_10 = arith.constant 0 : index
    %4 = vector.load %arg4[%c0_7, %c0_8, %c0_9, %c0_10] : memref<1x1x8x32xbf16, #tpu.memory_space<vmem>>, vector<1x1x8x32xbf16>
    %5 = vector.shape_cast %4 : vector<1x1x8x32xbf16> to vector<8x32xbf16>
    %6 = arith.extf %1 : vector<8x32xbf16> to vector<8x32xf32>
    %cst = arith.constant 2.500000e-01 : f32
    %7 = vector.broadcast %cst : f32 to vector<8x32xf32>
    %8 = arith.mulf %6, %7 : vector<8x32xf32>
    %9 = arith.truncf %8 : vector<8x32xf32> to vector<8x32xbf16>
    %10 = vector.extract_strided_slice %9 {offsets = [0, 0], sizes = [8, 16], strides = [1, 1]} : vector<8x32xbf16> to vector<8x16xbf16>
    %11 = vector.extract_strided_slice %3 {offsets = [0, 0], sizes = [8, 16], strides = [1, 1]} : vector<8x32xbf16> to vector<8x16xbf16>
    %12 = vector.extract_strided_slice %5 {offsets = [0, 0], sizes = [8, 16], strides = [1, 1]} : vector<8x32xbf16> to vector<8x16xbf16>
    %cst_11 = arith.constant dense<0.000000e+00> : vector<8x8xf32>
    %13 = tpu.matmul %10, %11, %cst_11 {dimension_numbers = #tpu.dot_dimension_numbers<[1], [1], [0], [0], [0, 0, 1, 0], [], []>} : vector<8x16xbf16>, vector<8x16xbf16>, vector<8x8xf32> -> vector<8x8xf32>
    %cst_12 = arith.constant dense<0xFF800000> : vector<8xf32>
    %14 = vector.multi_reduction <maximumf>, %13, %cst_12 [1] : vector<8x8xf32> to vector<8xf32>
    %15 = vector.shape_cast %14 : vector<8xf32> to vector<8x1xf32>
    %16 = vector.broadcast %15 : vector<8x1xf32> to vector<8x8xf32>
    %17 = arith.subf %13, %16 : vector<8x8xf32>
    %18 = math.exp %17 : vector<8x8xf32>
    %cst_13 = arith.constant dense<0.000000e+00> : vector<8xf32>
    %19 = vector.multi_reduction <add>, %18, %cst_13 [1] : vector<8x8xf32> to vector<8xf32>
    %20 = vector.shape_cast %19 : vector<8xf32> to vector<8x1xf32>
    %21 = tpu.reciprocal %20 {approx = true} : vector<8x1xf32> -> vector<8x1xf32>
    %22 = vector.broadcast %21 : vector<8x1xf32> to vector<8x8xf32>
    %23 = arith.mulf %18, %22 : vector<8x8xf32>
    %24 = arith.truncf %23 : vector<8x8xf32> to vector<8x8xbf16>
    %cst_14 = arith.constant dense<0.000000e+00> : vector<8x16xf32>
    %25 = tpu.matmul %24, %12, %cst_14 {dimension_numbers = #tpu.dot_dimension_numbers<[1], [0], [0], [1], [0, 0, 1, 1], [], []>} : vector<8x8xbf16>, vector<8x16xbf16>, vector<8x16xf32> -> vector<8x16xf32>
    %26 = arith.truncf %25 : vector<8x16xf32> to vector<8x16xbf16>
    %c0_15 = arith.constant 0 : index
    %c0_16 = arith.constant 0 : index
    %c0_17 = arith.constant 0 : index
    %27 = vector.load %arg5[%c0_15, %c0_16, %c0_17] : memref<1x8x32xbf16, #tpu.memory_space<vmem>>, vector<1x8x16xbf16>
    %28 = vector.shape_cast %27 : vector<1x8x16xbf16> to vector<8x16xbf16>
    %29 = vector.shape_cast %26 : vector<8x16xbf16> to vector<1x8x16xbf16>
    tpu.vector_store %arg5[%c0_15, %c0_16, %c0_17], %29 {strides = array<i32>} : memref<1x8x32xbf16, #tpu.memory_space<vmem>>, vector<1x8x16xbf16>,
    %30 = vector.extract_strided_slice %9 {offsets = [0, 16], sizes = [8, 16], strides = [1, 1]} : vector<8x32xbf16> to vector<8x16xbf16>
    %31 = vector.extract_strided_slice %3 {offsets = [0, 16], sizes = [8, 16], strides = [1, 1]} : vector<8x32xbf16> to vector<8x16xbf16>
    %32 = vector.extract_strided_slice %5 {offsets = [0, 16], sizes = [8, 16], strides = [1, 1]} : vector<8x32xbf16> to vector<8x16xbf16>
    %cst_18 = arith.constant dense<0.000000e+00> : vector<8x8xf32>
    %33 = tpu.matmul %30, %31, %cst_18 {dimension_numbers = #tpu.dot_dimension_numbers<[1], [1], [0], [0], [0, 0, 1, 0], [], []>} : vector<8x16xbf16>, vector<8x16xbf16>, vector<8x8xf32> -> vector<8x8xf32>
    %cst_19 = arith.constant dense<0xFF800000> : vector<8xf32>
    %34 = vector.multi_reduction <maximumf>, %33, %cst_19 [1] : vector<8x8xf32> to vector<8xf32>
    %35 = vector.shape_cast %34 : vector<8xf32> to vector<8x1xf32>
    %36 = vector.broadcast %35 : vector<8x1xf32> to vector<8x8xf32>
    %37 = arith.subf %33, %36 : vector<8x8xf32>
    %38 = math.exp %37 : vector<8x8xf32>
    %cst_20 = arith.constant dense<0.000000e+00> : vector<8xf32>
    %39 = vector.multi_reduction <add>, %38, %cst_20 [1] : vector<8x8xf32> to vector<8xf32>
    %40 = vector.shape_cast %39 : vector<8xf32> to vector<8x1xf32>
    %41 = tpu.reciprocal %40 {approx = true} : vector<8x1xf32> -> vector<8x1xf32>
    %42 = vector.broadcast %41 : vector<8x1xf32> to vector<8x8xf32>
    %43 = arith.mulf %38, %42 : vector<8x8xf32>
    %44 = arith.truncf %43 : vector<8x8xf32> to vector<8x8xbf16>
    %cst_21 = arith.constant dense<0.000000e+00> : vector<8x16xf32>
    %45 = tpu.matmul %44, %32, %cst_21 {dimension_numbers = #tpu.dot_dimension_numbers<[1], [0], [0], [1], [0, 0, 1, 1], [], []>} : vector<8x8xbf16>, vector<8x16xbf16>, vector<8x16xf32> -> vector<8x16xf32>
    %46 = arith.truncf %45 : vector<8x16xf32> to vector<8x16xbf16>
    %c0_22 = arith.constant 0 : index
    %c0_23 = arith.constant 0 : index
    %c16 = arith.constant 16 : index
    %47 = vector.load %arg5[%c0_22, %c0_23, %c16] : memref<1x8x32xbf16, #tpu.memory_space<vmem>>, vector<1x8x16xbf16>
    %48 = vector.shape_cast %47 : vector<1x8x16xbf16> to vector<8x16xbf16>
    %49 = vector.shape_cast %46 : vector<8x16xbf16> to vector<1x8x16xbf16>
    tpu.vector_store %arg5[%c0_22, %c0_23, %c16], %49 {strides = array<i32>} : memref<1x8x32xbf16, #tpu.memory_space<vmem>>, vector<1x8x16xbf16>,
    return
  }
  func.func @transform_0(%arg0: i32, %arg1: i32) -> (i32, i32, i32, i32) {
    %c0_i32 = arith.constant 0 : i32
    %c0_i32_0 = arith.constant 0 : i32
    %c0_i32_1 = arith.constant 0 : i32
    return %c0_i32, %arg0, %arg1, %c0_i32_0 : i32, i32, i32, i32
  }
  func.func @transform_1(%arg0: i32, %arg1: i32) -> (i32, i32, i32, i32) {
    %c1_i32 = arith.constant 1 : i32
    %c0_i32 = arith.constant 0 : i32
    %c0_i32_0 = arith.constant 0 : i32
    %c0_i32_1 = arith.constant 0 : i32
    return %c1_i32, %arg0, %c0_i32, %c0_i32_0 : i32, i32, i32, i32
  }
  func.func @transform_2(%arg0: i32, %arg1: i32) -> (i32, i32, i32, i32) {
    %c2_i32 = arith.constant 2 : i32
    %c0_i32 = arith.constant 0 : i32
    %c0_i32_0 = arith.constant 0 : i32
    %c0_i32_1 = arith.constant 0 : i32
    return %c2_i32, %arg0, %c0_i32, %c0_i32_0 : i32, i32, i32, i32
  }
  func.func @transform_3(%arg0: i32, %arg1: i32) -> (i32, i32, i32) {
    %c0_i32 = arith.constant 0 : i32
    %c0_i32_0 = arith.constant 0 : i32
    return %arg0, %arg1, %c0_i32 : i32, i32, i32
  }
}

module attributes {stable_mosaic.version = 11 : i64} {
  func.func @_mm_kernel(%arg0: i32, %arg1: i32, %arg2: i32, %arg3: memref<16x32xbf16, #tpu.memory_space<vmem>>, %arg4: memref<32x32xbf16, #tpu.memory_space<vmem>>, %arg5: memref<1x32xf32, #tpu.memory_space<vmem>>, %arg6: memref<16x32xbf16, #tpu.memory_space<vmem>>, %arg7: memref<16x32xbf16, #tpu.memory_space<vmem>>, %arg8: memref<16x32xf32, #tpu.memory_space<vmem>>) attributes {dimension_semantics = [#tpu.dimension_semantics<parallel>, #tpu.dimension_semantics<parallel>, #tpu.dimension_semantics<arbitrary>], iteration_bounds = array<i64: 1, 1, 1>, scalar_prefetch = 0 : i64, scratch_operands = 1 : i64, tpu.core_type = #tpu.core_type<tc>, window_params = [{transform_indices = @transform_0, window_bounds = array<i64: 16, 32>}, {transform_indices = @transform_1, window_bounds = array<i64: 32, 32>}, {transform_indices = @transform_2, window_bounds = array<i64: 1, 32>}, {transform_indices = @transform_3, window_bounds = array<i64: 16, 32>}, {transform_indices = @transform_4, window_bounds = array<i64: 16, 32>}]} {
    %c0_i32 = arith.constant 0 : i32
    %0 = arith.cmpi eq, %arg2, %c0_i32 : i32
    %1 = arith.extui %0 : i1 to i32
    %c0_i32_0 = arith.constant 0 : i32
    %2 = arith.cmpi ne, %1, %c0_i32_0 : i32
    scf.if %2 {
      %cst_10 = arith.constant 0.000000e+00 : f32
      %12 = vector.broadcast %cst_10 : f32 to vector<16x32xf32>
      %c0_11 = arith.constant 0 : index
      %c0_12 = arith.constant 0 : index
      %13 = vector.load %arg8[%c0_11, %c0_12] : memref<16x32xf32, #tpu.memory_space<vmem>>, vector<16x32xf32>
      tpu.vector_store %arg8[%c0_11, %c0_12], %12 {strides = array<i32>} : memref<16x32xf32, #tpu.memory_space<vmem>>, vector<16x32xf32>,
    } else {
    }
    %c0 = arith.constant 0 : index
    %c0_1 = arith.constant 0 : index
    %3 = vector.load %arg8[%c0, %c0_1] : memref<16x32xf32, #tpu.memory_space<vmem>>, vector<16x32xf32>
    %c0_2 = arith.constant 0 : index
    %c0_3 = arith.constant 0 : index
    %4 = vector.load %arg3[%c0_2, %c0_3] : memref<16x32xbf16, #tpu.memory_space<vmem>>, vector<16x32xbf16>
    %c0_4 = arith.constant 0 : index
    %c0_5 = arith.constant 0 : index
    %5 = vector.load %arg4[%c0_4, %c0_5] : memref<32x32xbf16, #tpu.memory_space<vmem>>, vector<32x32xbf16>
    %cst = arith.constant dense<0.000000e+00> : vector<16x32xf32>
    %6 = tpu.matmul %4, %5, %cst {dimension_numbers = #tpu.dot_dimension_numbers<[1], [0], [0], [1], [0, 0, 1, 1], [], []>} : vector<16x32xbf16>, vector<32x32xbf16>, vector<16x32xf32> -> vector<16x32xf32>
    %7 = arith.addf %3, %6 : vector<16x32xf32>
    %c0_6 = arith.constant 0 : index
    %c0_7 = arith.constant 0 : index
    %8 = vector.load %arg8[%c0_6, %c0_7] : memref<16x32xf32, #tpu.memory_space<vmem>>, vector<16x32xf32>
    tpu.vector_store %arg8[%c0_6, %c0_7], %7 {strides = array<i32>} : memref<16x32xf32, #tpu.memory_space<vmem>>, vector<16x32xf32>,
    %c0_i32_8 = arith.constant 0 : i32
    %9 = arith.cmpi eq, %arg2, %c0_i32_8 : i32
    %10 = arith.extui %9 : i1 to i32
    %c0_i32_9 = arith.constant 0 : i32
    %11 = arith.cmpi ne, %10, %c0_i32_9 : i32
    scf.if %11 {
      %c0_10 = arith.constant 0 : index
      %c0_11 = arith.constant 0 : index
      %12 = vector.load %arg8[%c0_10, %c0_11] : memref<16x32xf32, #tpu.memory_space<vmem>>, vector<16x32xf32>
      %c0_12 = arith.constant 0 : index
      %c0_13 = arith.constant 0 : index
      %13 = vector.load %arg5[%c0_12, %c0_13] : memref<1x32xf32, #tpu.memory_space<vmem>>, vector<1x32xf32>
      %14 = vector.broadcast %13 : vector<1x32xf32> to vector<16x32xf32>
      %15 = arith.addf %12, %14 : vector<16x32xf32>
      %c0_14 = arith.constant 0 : index
      %c0_15 = arith.constant 0 : index
      %16 = vector.load %arg6[%c0_14, %c0_15] : memref<16x32xbf16, #tpu.memory_space<vmem>>, vector<16x32xbf16>
      %17 = arith.extf %16 : vector<16x32xbf16> to vector<16x32xf32>
      %18 = arith.addf %15, %17 : vector<16x32xf32>
      %19 = arith.truncf %18 : vector<16x32xf32> to vector<16x32xbf16>
      %c0_16 = arith.constant 0 : index
      %c0_17 = arith.constant 0 : index
      %20 = vector.load %arg7[%c0_16, %c0_17] : memref<16x32xbf16, #tpu.memory_space<vmem>>, vector<16x32xbf16>
      tpu.vector_store %arg7[%c0_16, %c0_17], %19 {strides = array<i32>} : memref<16x32xbf16, #tpu.memory_space<vmem>>, vector<16x32xbf16>,
    } else {
    }
    return
  }
  func.func @transform_0(%arg0: i32, %arg1: i32, %arg2: i32) -> (i32, i32) {
    %c0_i32 = arith.constant 0 : i32
    return %arg0, %arg2 : i32, i32
  }
  func.func @transform_1(%arg0: i32, %arg1: i32, %arg2: i32) -> (i32, i32) {
    %c0_i32 = arith.constant 0 : i32
    return %arg2, %arg1 : i32, i32
  }
  func.func @transform_2(%arg0: i32, %arg1: i32, %arg2: i32) -> (i32, i32) {
    %c0_i32 = arith.constant 0 : i32
    %c0_i32_0 = arith.constant 0 : i32
    return %c0_i32, %arg1 : i32, i32
  }
  func.func @transform_3(%arg0: i32, %arg1: i32, %arg2: i32) -> (i32, i32) {
    %c0_i32 = arith.constant 0 : i32
    return %arg0, %arg1 : i32, i32
  }
  func.func @transform_4(%arg0: i32, %arg1: i32, %arg2: i32) -> (i32, i32) {
    %c0_i32 = arith.constant 0 : i32
    return %arg0, %arg1 : i32, i32
  }
}

module attributes {stable_mosaic.version = 11 : i64} {
  func.func @_adaln_stacked_mm_kernel(%arg0: i32, %arg1: i32, %arg2: i32, %arg3: i32, %arg4: memref<1x8x32xbf16, #tpu.memory_space<vmem>>, %arg5: memref<1x1x32xf32, #tpu.memory_space<vmem>>, %arg6: memref<1x1x32xf32, #tpu.memory_space<vmem>>, %arg7: memref<1x32x32xbf16, #tpu.memory_space<vmem>>, %arg8: memref<1x1x8x32xbf16, #tpu.memory_space<vmem>>, %arg9: memref<8x32xbf16, #tpu.memory_space<vmem>>) attributes {dimension_semantics = [#tpu.dimension_semantics<parallel>, #tpu.dimension_semantics<parallel>, #tpu.dimension_semantics<arbitrary>, #tpu.dimension_semantics<arbitrary>], iteration_bounds = array<i64: 2, 1, 1, 1>, scalar_prefetch = 0 : i64, scratch_operands = 1 : i64, tpu.core_type = #tpu.core_type<tc>, window_params = [{transform_indices = @transform_0, window_bounds = array<i64: 1, 8, 32>}, {transform_indices = @transform_1, window_bounds = array<i64: 1, 1, 32>}, {transform_indices = @transform_2, window_bounds = array<i64: 1, 1, 32>}, {transform_indices = @transform_3, window_bounds = array<i64: 1, 32, 32>}, {transform_indices = @transform_4, window_bounds = array<i64: 1, 1, 8, 32>}]} {
    %c0_i32 = arith.constant 0 : i32
    %0 = arith.cmpi eq, %arg2, %c0_i32 : i32
    %c0_i32_0 = arith.constant 0 : i32
    %1 = arith.cmpi eq, %arg3, %c0_i32_0 : i32
    %2 = arith.andi %0, %1 : i1
    %3 = arith.extui %2 : i1 to i32
    %c0_i32_1 = arith.constant 0 : i32
    %4 = arith.cmpi ne, %3, %c0_i32_1 : i32
    scf.if %4 {
      %c0_10 = arith.constant 0 : index
      %c0_11 = arith.constant 0 : index
      %c0_12 = arith.constant 0 : index
      %13 = vector.load %arg4[%c0_10, %c0_11, %c0_12] : memref<1x8x32xbf16, #tpu.memory_space<vmem>>, vector<1x8x32xbf16>
      %14 = vector.shape_cast %13 : vector<1x8x32xbf16> to vector<8x32xbf16>
      %15 = arith.extf %14 : vector<8x32xbf16> to vector<8x32xf32>
      %cst_13 = arith.constant dense<0.000000e+00> : vector<8xf32>
      %16 = vector.multi_reduction <add>, %15, %cst_13 [1] : vector<8x32xf32> to vector<8xf32>
      %17 = vector.shape_cast %16 : vector<8xf32> to vector<8x1xf32>
      %cst_14 = arith.constant 3.200000e+01 : f32
      %18 = vector.broadcast %cst_14 : f32 to vector<8x1xf32>
      %19 = arith.divf %17, %18 : vector<8x1xf32>
      %20 = vector.broadcast %19 : vector<8x1xf32> to vector<8x32xf32>
      %21 = arith.subf %15, %20 : vector<8x32xf32>
      %22 = arith.mulf %21, %21 : vector<8x32xf32>
      %cst_15 = arith.constant dense<0.000000e+00> : vector<8xf32>
      %23 = vector.multi_reduction <add>, %22, %cst_15 [1] : vector<8x32xf32> to vector<8xf32>
      %24 = vector.shape_cast %23 : vector<8xf32> to vector<8x1xf32>
      %cst_16 = arith.constant 3.200000e+01 : f32
      %25 = vector.broadcast %cst_16 : f32 to vector<8x1xf32>
      %26 = arith.divf %24, %25 : vector<8x1xf32>
      %27 = vector.broadcast %19 : vector<8x1xf32> to vector<8x32xf32>
      %28 = arith.subf %15, %27 : vector<8x32xf32>
      %cst_17 = arith.constant 9.99999974E-6 : f32
      %29 = vector.broadcast %cst_17 : f32 to vector<8x1xf32>
      %30 = arith.addf %26, %29 : vector<8x1xf32>
      %31 = math.rsqrt %30 : vector<8x1xf32>
      %32 = vector.broadcast %31 : vector<8x1xf32> to vector<8x32xf32>
      %33 = arith.mulf %28, %32 : vector<8x32xf32>
      %c0_18 = arith.constant 0 : index
      %c0_19 = arith.constant 0 : index
      %c0_20 = arith.constant 0 : index
      %34 = vector.load %arg5[%c0_18, %c0_19, %c0_20] : memref<1x1x32xf32, #tpu.memory_space<vmem>>, vector<1x1x32xf32>
      %35 = vector.shape_cast %34 : vector<1x1x32xf32> to vector<1x32xf32>
      %cst_21 = arith.constant 1.000000e+00 : f32
      %36 = vector.broadcast %cst_21 : f32 to vector<1x32xf32>
      %37 = arith.addf %36, %35 : vector<1x32xf32>
      %38 = vector.broadcast %37 : vector<1x32xf32> to vector<8x32xf32>
      %39 = arith.mulf %33, %38 : vector<8x32xf32>
      %c0_22 = arith.constant 0 : index
      %c0_23 = arith.constant 0 : index
      %c0_24 = arith.constant 0 : index
      %40 = vector.load %arg6[%c0_22, %c0_23, %c0_24] : memref<1x1x32xf32, #tpu.memory_space<vmem>>, vector<1x1x32xf32>
      %41 = vector.shape_cast %40 : vector<1x1x32xf32> to vector<1x32xf32>
      %42 = vector.broadcast %41 : vector<1x32xf32> to vector<8x32xf32>
      %43 = arith.addf %39, %42 : vector<8x32xf32>
      %44 = arith.truncf %43 : vector<8x32xf32> to vector<8x32xbf16>
      %c0_25 = arith.constant 0 : index
      %c0_26 = arith.constant 0 : index
      %45 = vector.load %arg9[%c0_25, %c0_26] : memref<8x32xbf16, #tpu.memory_space<vmem>>, vector<8x32xbf16>
      tpu.vector_store %arg9[%c0_25, %c0_26], %44 {strides = array<i32>} : memref<8x32xbf16, #tpu.memory_space<vmem>>, vector<8x32xbf16>,
    } else {
    }
    %c0 = arith.constant 0 : index
    %c0_2 = arith.constant 0 : index
    %5 = vector.load %arg9[%c0, %c0_2] : memref<8x32xbf16, #tpu.memory_space<vmem>>, vector<8x32xbf16>
    %c0_3 = arith.constant 0 : index
    %c0_4 = arith.constant 0 : index
    %c0_5 = arith.constant 0 : index
    %6 = vector.load %arg7[%c0_3, %c0_4, %c0_5] : memref<1x32x32xbf16, #tpu.memory_space<vmem>>, vector<1x32x32xbf16>
    %7 = vector.shape_cast %6 : vector<1x32x32xbf16> to vector<32x32xbf16>
    %cst = arith.constant dense<0.000000e+00> : vector<8x32xf32>
    %8 = tpu.matmul %5, %7, %cst {dimension_numbers = #tpu.dot_dimension_numbers<[1], [0], [0], [1], [0, 0, 1, 1], [], []>} : vector<8x32xbf16>, vector<32x32xbf16>, vector<8x32xf32> -> vector<8x32xf32>
    %9 = arith.truncf %8 : vector<8x32xf32> to vector<8x32xbf16>
    %c0_6 = arith.constant 0 : index
    %c0_7 = arith.constant 0 : index
    %c0_8 = arith.constant 0 : index
    %c0_9 = arith.constant 0 : index
    %10 = vector.load %arg8[%c0_6, %c0_7, %c0_8, %c0_9] : memref<1x1x8x32xbf16, #tpu.memory_space<vmem>>, vector<1x1x8x32xbf16>
    %11 = vector.shape_cast %10 : vector<1x1x8x32xbf16> to vector<8x32xbf16>
    %12 = vector.shape_cast %9 : vector<8x32xbf16> to vector<1x1x8x32xbf16>
    tpu.vector_store %arg8[%c0_6, %c0_7, %c0_8, %c0_9], %12 {strides = array<i32>} : memref<1x1x8x32xbf16, #tpu.memory_space<vmem>>, vector<1x1x8x32xbf16>,
    return
  }
  func.func @transform_0(%arg0: i32, %arg1: i32, %arg2: i32, %arg3: i32) -> (i32, i32, i32) {
    %c0_i32 = arith.constant 0 : i32
    %c0_i32_0 = arith.constant 0 : i32
    return %arg0, %arg1, %c0_i32 : i32, i32, i32
  }
  func.func @transform_1(%arg0: i32, %arg1: i32, %arg2: i32, %arg3: i32) -> (i32, i32, i32) {
    %c0_i32 = arith.constant 0 : i32
    %c0_i32_0 = arith.constant 0 : i32
    %c0_i32_1 = arith.constant 0 : i32
    return %arg0, %c0_i32, %c0_i32_0 : i32, i32, i32
  }
  func.func @transform_2(%arg0: i32, %arg1: i32, %arg2: i32, %arg3: i32) -> (i32, i32, i32) {
    %c0_i32 = arith.constant 0 : i32
    %c0_i32_0 = arith.constant 0 : i32
    %c0_i32_1 = arith.constant 0 : i32
    return %arg0, %c0_i32, %c0_i32_0 : i32, i32, i32
  }
  func.func @transform_3(%arg0: i32, %arg1: i32, %arg2: i32, %arg3: i32) -> (i32, i32, i32) {
    %c0_i32 = arith.constant 0 : i32
    %c0_i32_0 = arith.constant 0 : i32
    return %arg2, %c0_i32, %arg3 : i32, i32, i32
  }
  func.func @transform_4(%arg0: i32, %arg1: i32, %arg2: i32, %arg3: i32) -> (i32, i32, i32, i32) {
    %c0_i32 = arith.constant 0 : i32
    return %arg2, %arg0, %arg1, %arg3 : i32, i32, i32, i32
  }
}

module attributes {stable_mosaic.version = 11 : i64} {
  func.func @_stacked_mm_kernel(%arg0: i32, %arg1: i32, %arg2: i32, %arg3: i32, %arg4: memref<1x6x16xbf16, #tpu.memory_space<vmem>>, %arg5: memref<1x16x32xbf16, #tpu.memory_space<vmem>>, %arg6: memref<1x1x6x32xbf16, #tpu.memory_space<vmem>>) attributes {dimension_semantics = [#tpu.dimension_semantics<parallel>, #tpu.dimension_semantics<parallel>, #tpu.dimension_semantics<arbitrary>, #tpu.dimension_semantics<arbitrary>], iteration_bounds = array<i64: 2, 1, 2, 1>, scalar_prefetch = 0 : i64, scratch_operands = 0 : i64, tpu.core_type = #tpu.core_type<tc>, window_params = [{transform_indices = @transform_0, window_bounds = array<i64: 1, 6, 16>}, {transform_indices = @transform_1, window_bounds = array<i64: 1, 16, 32>}, {transform_indices = @transform_2, window_bounds = array<i64: 1, 1, 6, 32>}]} {
    %c0 = arith.constant 0 : index
    %c0_0 = arith.constant 0 : index
    %c0_1 = arith.constant 0 : index
    %0 = vector.load %arg4[%c0, %c0_0, %c0_1] : memref<1x6x16xbf16, #tpu.memory_space<vmem>>, vector<1x6x16xbf16>
    %1 = vector.shape_cast %0 : vector<1x6x16xbf16> to vector<6x16xbf16>
    %c0_2 = arith.constant 0 : index
    %c0_3 = arith.constant 0 : index
    %c0_4 = arith.constant 0 : index
    %2 = vector.load %arg5[%c0_2, %c0_3, %c0_4] : memref<1x16x32xbf16, #tpu.memory_space<vmem>>, vector<1x16x32xbf16>
    %3 = vector.shape_cast %2 : vector<1x16x32xbf16> to vector<16x32xbf16>
    %cst = arith.constant dense<0.000000e+00> : vector<6x32xf32>
    %4 = tpu.matmul %1, %3, %cst {dimension_numbers = #tpu.dot_dimension_numbers<[1], [0], [0], [1], [0, 0, 1, 1], [], []>} : vector<6x16xbf16>, vector<16x32xbf16>, vector<6x32xf32> -> vector<6x32xf32>
    %5 = arith.truncf %4 : vector<6x32xf32> to vector<6x32xbf16>
    %c0_5 = arith.constant 0 : index
    %c0_6 = arith.constant 0 : index
    %c0_7 = arith.constant 0 : index
    %c0_8 = arith.constant 0 : index
    %6 = vector.load %arg6[%c0_5, %c0_6, %c0_7, %c0_8] : memref<1x1x6x32xbf16, #tpu.memory_space<vmem>>, vector<1x1x6x32xbf16>
    %7 = vector.shape_cast %6 : vector<1x1x6x32xbf16> to vector<6x32xbf16>
    %8 = vector.shape_cast %5 : vector<6x32xbf16> to vector<1x1x6x32xbf16>
    tpu.vector_store %arg6[%c0_5, %c0_6, %c0_7, %c0_8], %8 {strides = array<i32>} : memref<1x1x6x32xbf16, #tpu.memory_space<vmem>>, vector<1x1x6x32xbf16>,
    return
  }
  func.func @transform_0(%arg0: i32, %arg1: i32, %arg2: i32, %arg3: i32) -> (i32, i32, i32) {
    %c0_i32 = arith.constant 0 : i32
    %c0_i32_0 = arith.constant 0 : i32
    return %arg0, %arg1, %c0_i32 : i32, i32, i32
  }
  func.func @transform_1(%arg0: i32, %arg1: i32, %arg2: i32, %arg3: i32) -> (i32, i32, i32) {
    %c0_i32 = arith.constant 0 : i32
    %c0_i32_0 = arith.constant 0 : i32
    return %arg2, %c0_i32, %arg3 : i32, i32, i32
  }
  func.func @transform_2(%arg0: i32, %arg1: i32, %arg2: i32, %arg3: i32) -> (i32, i32, i32, i32) {
    %c0_i32 = arith.constant 0 : i32
    return %arg2, %arg0, %arg1, %arg3 : i32, i32, i32, i32
  }
}

module attributes {stable_mosaic.version = 11 : i64} {
  func.func @_attn_kernel(%arg0: i32, %arg1: i32, %arg2: memref<1x1x8x32xbf16, #tpu.memory_space<vmem>>, %arg3: memref<1x1x6x32xbf16, #tpu.memory_space<vmem>>, %arg4: memref<1x1x6x32xbf16, #tpu.memory_space<vmem>>, %arg5: memref<1x8x32xbf16, #tpu.memory_space<vmem>>) attributes {dimension_semantics = [#tpu.dimension_semantics<parallel>, #tpu.dimension_semantics<arbitrary>], iteration_bounds = array<i64: 2, 1>, scalar_prefetch = 0 : i64, scratch_operands = 0 : i64, tpu.core_type = #tpu.core_type<tc>, window_params = [{transform_indices = @transform_0, window_bounds = array<i64: 1, 1, 8, 32>}, {transform_indices = @transform_1, window_bounds = array<i64: 1, 1, 6, 32>}, {transform_indices = @transform_2, window_bounds = array<i64: 1, 1, 6, 32>}, {transform_indices = @transform_3, window_bounds = array<i64: 1, 8, 32>}]} {
    %c0 = arith.constant 0 : index
    %c0_0 = arith.constant 0 : index
    %c0_1 = arith.constant 0 : index
    %c0_2 = arith.constant 0 : index
    %0 = vector.load %arg2[%c0, %c0_0, %c0_1, %c0_2] : memref<1x1x8x32xbf16, #tpu.memory_space<vmem>>, vector<1x1x8x32xbf16>
    %1 = vector.shape_cast %0 : vector<1x1x8x32xbf16> to vector<8x32xbf16>
    %c0_3 = arith.constant 0 : index
    %c0_4 = arith.constant 0 : index
    %c0_5 = arith.constant 0 : index
    %c0_6 = arith.constant 0 : index
    %2 = vector.load %arg3[%c0_3, %c0_4, %c0_5, %c0_6] : memref<1x1x6x32xbf16, #tpu.memory_space<vmem>>, vector<1x1x6x32xbf16>
    %3 = vector.shape_cast %2 : vector<1x1x6x32xbf16> to vector<6x32xbf16>
    %c0_7 = arith.constant 0 : index
    %c0_8 = arith.constant 0 : index
    %c0_9 = arith.constant 0 : index
    %c0_10 = arith.constant 0 : index
    %4 = vector.load %arg4[%c0_7, %c0_8, %c0_9, %c0_10] : memref<1x1x6x32xbf16, #tpu.memory_space<vmem>>, vector<1x1x6x32xbf16>
    %5 = vector.shape_cast %4 : vector<1x1x6x32xbf16> to vector<6x32xbf16>
    %6 = arith.extf %1 : vector<8x32xbf16> to vector<8x32xf32>
    %cst = arith.constant 2.500000e-01 : f32
    %7 = vector.broadcast %cst : f32 to vector<8x32xf32>
    %8 = arith.mulf %6, %7 : vector<8x32xf32>
    %9 = arith.truncf %8 : vector<8x32xf32> to vector<8x32xbf16>
    %10 = vector.extract_strided_slice %9 {offsets = [0, 0], sizes = [8, 16], strides = [1, 1]} : vector<8x32xbf16> to vector<8x16xbf16>
    %11 = vector.extract_strided_slice %3 {offsets = [0, 0], sizes = [6, 16], strides = [1, 1]} : vector<6x32xbf16> to vector<6x16xbf16>
    %12 = vector.extract_strided_slice %5 {offsets = [0, 0], sizes = [6, 16], strides = [1, 1]} : vector<6x32xbf16> to vector<6x16xbf16>
    %cst_11 = arith.constant dense<0.000000e+00> : vector<8x6xf32>
    %13 = tpu.matmul %10, %11, %cst_11 {dimension_numbers = #tpu.dot_dimension_numbers<[1], [1], [0], [0], [0, 0, 1, 0], [], []>} : vector<8x16xbf16>, vector<6x16xbf16>, vector<8x6xf32> -> vector<8x6xf32>
    %cst_12 = arith.constant dense<0xFF800000> : vector<8xf32>
    %14 = vector.multi_reduction <maximumf>, %13, %cst_12 [1] : vector<8x6xf32> to vector<8xf32>
    %15 = vector.shape_cast %14 : vector<8xf32> to vector<8x1xf32>
    %16 = vector.broadcast %15 : vector<8x1xf32> to vector<8x6xf32>
    %17 = arith.subf %13, %16 : vector<8x6xf32>
    %18 = math.exp %17 : vector<8x6xf32>
    %cst_13 = arith.constant dense<0.000000e+00> : vector<8xf32>
    %19 = vector.multi_reduction <add>, %18, %cst_13 [1] : vector<8x6xf32> to vector<8xf32>
    %20 = vector.shape_cast %19 : vector<8xf32> to vector<8x1xf32>
    %21 = tpu.reciprocal %20 {approx = true} : vector<8x1xf32> -> vector<8x1xf32>
    %22 = vector.broadcast %21 : vector<8x1xf32> to vector<8x6xf32>
    %23 = arith.mulf %18, %22 : vector<8x6xf32>
    %24 = arith.truncf %23 : vector<8x6xf32> to vector<8x6xbf16>
    %cst_14 = arith.constant dense<0.000000e+00> : vector<8x16xf32>
    %25 = tpu.matmul %24, %12, %cst_14 {dimension_numbers = #tpu.dot_dimension_numbers<[1], [0], [0], [1], [0, 0, 1, 1], [], []>} : vector<8x6xbf16>, vector<6x16xbf16>, vector<8x16xf32> -> vector<8x16xf32>
    %26 = arith.truncf %25 : vector<8x16xf32> to vector<8x16xbf16>
    %c0_15 = arith.constant 0 : index
    %c0_16 = arith.constant 0 : index
    %c0_17 = arith.constant 0 : index
    %27 = vector.load %arg5[%c0_15, %c0_16, %c0_17] : memref<1x8x32xbf16, #tpu.memory_space<vmem>>, vector<1x8x16xbf16>
    %28 = vector.shape_cast %27 : vector<1x8x16xbf16> to vector<8x16xbf16>
    %29 = vector.shape_cast %26 : vector<8x16xbf16> to vector<1x8x16xbf16>
    tpu.vector_store %arg5[%c0_15, %c0_16, %c0_17], %29 {strides = array<i32>} : memref<1x8x32xbf16, #tpu.memory_space<vmem>>, vector<1x8x16xbf16>,
    %30 = vector.extract_strided_slice %9 {offsets = [0, 16], sizes = [8, 16], strides = [1, 1]} : vector<8x32xbf16> to vector<8x16xbf16>
    %31 = vector.extract_strided_slice %3 {offsets = [0, 16], sizes = [6, 16], strides = [1, 1]} : vector<6x32xbf16> to vector<6x16xbf16>
    %32 = vector.extract_strided_slice %5 {offsets = [0, 16], sizes = [6, 16], strides = [1, 1]} : vector<6x32xbf16> to vector<6x16xbf16>
    %cst_18 = arith.constant dense<0.000000e+00> : vector<8x6xf32>
    %33 = tpu.matmul %30, %31, %cst_18 {dimension_numbers = #tpu.dot_dimension_numbers<[1], [1], [0], [0], [0, 0, 1, 0], [], []>} : vector<8x16xbf16>, vector<6x16xbf16>, vector<8x6xf32> -> vector<8x6xf32>
    %cst_19 = arith.constant dense<0xFF800000> : vector<8xf32>
    %34 = vector.multi_reduction <maximumf>, %33, %cst_19 [1] : vector<8x6xf32> to vector<8xf32>
    %35 = vector.shape_cast %34 : vector<8xf32> to vector<8x1xf32>
    %36 = vector.broadcast %35 : vector<8x1xf32> to vector<8x6xf32>
    %37 = arith.subf %33, %36 : vector<8x6xf32>
    %38 = math.exp %37 : vector<8x6xf32>
    %cst_20 = arith.constant dense<0.000000e+00> : vector<8xf32>
    %39 = vector.multi_reduction <add>, %38, %cst_20 [1] : vector<8x6xf32> to vector<8xf32>
    %40 = vector.shape_cast %39 : vector<8xf32> to vector<8x1xf32>
    %41 = tpu.reciprocal %40 {approx = true} : vector<8x1xf32> -> vector<8x1xf32>
    %42 = vector.broadcast %41 : vector<8x1xf32> to vector<8x6xf32>
    %43 = arith.mulf %38, %42 : vector<8x6xf32>
    %44 = arith.truncf %43 : vector<8x6xf32> to vector<8x6xbf16>
    %cst_21 = arith.constant dense<0.000000e+00> : vector<8x16xf32>
    %45 = tpu.matmul %44, %32, %cst_21 {dimension_numbers = #tpu.dot_dimension_numbers<[1], [0], [0], [1], [0, 0, 1, 1], [], []>} : vector<8x6xbf16>, vector<6x16xbf16>, vector<8x16xf32> -> vector<8x16xf32>
    %46 = arith.truncf %45 : vector<8x16xf32> to vector<8x16xbf16>
    %c0_22 = arith.constant 0 : index
    %c0_23 = arith.constant 0 : index
    %c16 = arith.constant 16 : index
    %47 = vector.load %arg5[%c0_22, %c0_23, %c16] : memref<1x8x32xbf16, #tpu.memory_space<vmem>>, vector<1x8x16xbf16>
    %48 = vector.shape_cast %47 : vector<1x8x16xbf16> to vector<8x16xbf16>
    %49 = vector.shape_cast %46 : vector<8x16xbf16> to vector<1x8x16xbf16>
    tpu.vector_store %arg5[%c0_22, %c0_23, %c16], %49 {strides = array<i32>} : memref<1x8x32xbf16, #tpu.memory_space<vmem>>, vector<1x8x16xbf16>,
    return
  }
  func.func @transform_0(%arg0: i32, %arg1: i32) -> (i32, i32, i32, i32) {
    %c0_i32 = arith.constant 0 : i32
    %c0_i32_0 = arith.constant 0 : i32
    %c0_i32_1 = arith.constant 0 : i32
    return %c0_i32, %arg0, %arg1, %c0_i32_0 : i32, i32, i32, i32
  }
  func.func @transform_1(%arg0: i32, %arg1: i32) -> (i32, i32, i32, i32) {
    %c0_i32 = arith.constant 0 : i32
    %c0_i32_0 = arith.constant 0 : i32
    %c0_i32_1 = arith.constant 0 : i32
    %c0_i32_2 = arith.constant 0 : i32
    return %c0_i32, %arg0, %c0_i32_0, %c0_i32_1 : i32, i32, i32, i32
  }
  func.func @transform_2(%arg0: i32, %arg1: i32) -> (i32, i32, i32, i32) {
    %c1_i32 = arith.constant 1 : i32
    %c0_i32 = arith.constant 0 : i32
    %c0_i32_0 = arith.constant 0 : i32
    %c0_i32_1 = arith.constant 0 : i32
    return %c1_i32, %arg0, %c0_i32, %c0_i32_0 : i32, i32, i32, i32
  }
  func.func @transform_3(%arg0: i32, %arg1: i32) -> (i32, i32, i32) {
    %c0_i32 = arith.constant 0 : i32
    %c0_i32_0 = arith.constant 0 : i32
    return %arg0, %arg1, %c0_i32 : i32, i32, i32
  }
}

module attributes {stable_mosaic.version = 11 : i64} {
  func.func @_adaln_geglu_kernel(%arg0: i32, %arg1: i32, %arg2: i32, %arg3: memref<1x8x32xbf16, #tpu.memory_space<vmem>>, %arg4: memref<1x1x32xf32, #tpu.memory_space<vmem>>, %arg5: memref<1x1x32xf32, #tpu.memory_space<vmem>>, %arg6: memref<32x128xbf16, #tpu.memory_space<vmem>>, %arg7: memref<32x128xbf16, #tpu.memory_space<vmem>>, %arg8: memref<1x128xf32, #tpu.memory_space<vmem>>, %arg9: memref<1x128xf32, #tpu.memory_space<vmem>>, %arg10: memref<1x8x128xbf16, #tpu.memory_space<vmem>>, %arg11: memref<8x32xbf16, #tpu.memory_space<vmem>>) attributes {dimension_semantics = [#tpu.dimension_semantics<parallel>, #tpu.dimension_semantics<parallel>, #tpu.dimension_semantics<arbitrary>], iteration_bounds = array<i64: 2, 1, 1>, scalar_prefetch = 0 : i64, scratch_operands = 1 : i64, tpu.core_type = #tpu.core_type<tc>, window_params = [{transform_indices = @transform_0, window_bounds = array<i64: 1, 8, 32>}, {transform_indices = @transform_1, window_bounds = array<i64: 1, 1, 32>}, {transform_indices = @transform_2, window_bounds = array<i64: 1, 1, 32>}, {transform_indices = @transform_3, window_bounds = array<i64: 32, 128>}, {transform_indices = @transform_4, window_bounds = array<i64: 32, 128>}, {transform_indices = @transform_5, window_bounds = array<i64: 1, 128>}, {transform_indices = @transform_6, window_bounds = array<i64: 1, 128>}, {transform_indices = @transform_7, window_bounds = array<i64: 1, 8, 128>}]} {
    %c0_i32 = arith.constant 0 : i32
    %0 = arith.cmpi eq, %arg2, %c0_i32 : i32
    %1 = arith.extui %0 : i1 to i32
    %c0_i32_0 = arith.constant 0 : i32
    %2 = arith.cmpi ne, %1, %c0_i32_0 : i32
    scf.if %2 {
      %c0_17 = arith.constant 0 : index
      %c0_18 = arith.constant 0 : index
      %c0_19 = arith.constant 0 : index
      %27 = vector.load %arg3[%c0_17, %c0_18, %c0_19] : memref<1x8x32xbf16, #tpu.memory_space<vmem>>, vector<1x8x32xbf16>
      %28 = vector.shape_cast %27 : vector<1x8x32xbf16> to vector<8x32xbf16>
      %29 = arith.extf %28 : vector<8x32xbf16> to vector<8x32xf32>
      %cst_20 = arith.constant dense<0.000000e+00> : vector<8xf32>
      %30 = vector.multi_reduction <add>, %29, %cst_20 [1] : vector<8x32xf32> to vector<8xf32>
      %31 = vector.shape_cast %30 : vector<8xf32> to vector<8x1xf32>
      %cst_21 = arith.constant 3.200000e+01 : f32
      %32 = vector.broadcast %cst_21 : f32 to vector<8x1xf32>
      %33 = arith.divf %31, %32 : vector<8x1xf32>
      %34 = vector.broadcast %33 : vector<8x1xf32> to vector<8x32xf32>
      %35 = arith.subf %29, %34 : vector<8x32xf32>
      %36 = arith.mulf %35, %35 : vector<8x32xf32>
      %cst_22 = arith.constant dense<0.000000e+00> : vector<8xf32>
      %37 = vector.multi_reduction <add>, %36, %cst_22 [1] : vector<8x32xf32> to vector<8xf32>
      %38 = vector.shape_cast %37 : vector<8xf32> to vector<8x1xf32>
      %cst_23 = arith.constant 3.200000e+01 : f32
      %39 = vector.broadcast %cst_23 : f32 to vector<8x1xf32>
      %40 = arith.divf %38, %39 : vector<8x1xf32>
      %41 = vector.broadcast %33 : vector<8x1xf32> to vector<8x32xf32>
      %42 = arith.subf %29, %41 : vector<8x32xf32>
      %cst_24 = arith.constant 9.99999974E-6 : f32
      %43 = vector.broadcast %cst_24 : f32 to vector<8x1xf32>
      %44 = arith.addf %40, %43 : vector<8x1xf32>
      %45 = math.rsqrt %44 : vector<8x1xf32>
      %46 = vector.broadcast %45 : vector<8x1xf32> to vector<8x32xf32>
      %47 = arith.mulf %42, %46 : vector<8x32xf32>
      %c0_25 = arith.constant 0 : index
      %c0_26 = arith.constant 0 : index
      %c0_27 = arith.constant 0 : index
      %48 = vector.load %arg4[%c0_25, %c0_26, %c0_27] : memref<1x1x32xf32, #tpu.memory_space<vmem>>, vector<1x1x32xf32>
      %49 = vector.shape_cast %48 : vector<1x1x32xf32> to vector<1x32xf32>
      %cst_28 = arith.constant 1.000000e+00 : f32
      %50 = vector.broadcast %cst_28 : f32 to vector<1x32xf32>
      %51 = arith.addf %50, %49 : vector<1x32xf32>
      %52 = vector.broadcast %51 : vector<1x32xf32> to vector<8x32xf32>
      %53 = arith.mulf %47, %52 : vector<8x32xf32>
      %c0_29 = arith.constant 0 : index
      %c0_30 = arith.constant 0 : index
      %c0_31 = arith.constant 0 : index
      %54 = vector.load %arg5[%c0_29, %c0_30, %c0_31] : memref<1x1x32xf32, #tpu.memory_space<vmem>>, vector<1x1x32xf32>
      %55 = vector.shape_cast %54 : vector<1x1x32xf32> to vector<1x32xf32>
      %56 = vector.broadcast %55 : vector<1x32xf32> to vector<8x32xf32>
      %57 = arith.addf %53, %56 : vector<8x32xf32>
      %58 = arith.truncf %57 : vector<8x32xf32> to vector<8x32xbf16>
      %c0_32 = arith.constant 0 : index
      %c0_33 = arith.constant 0 : index
      %59 = vector.load %arg11[%c0_32, %c0_33] : memref<8x32xbf16, #tpu.memory_space<vmem>>, vector<8x32xbf16>
      tpu.vector_store %arg11[%c0_32, %c0_33], %58 {strides = array<i32>} : memref<8x32xbf16, #tpu.memory_space<vmem>>, vector<8x32xbf16>,
    } else {
    }
    %c0 = arith.constant 0 : index
    %c0_1 = arith.constant 0 : index
    %3 = vector.load %arg11[%c0, %c0_1] : memref<8x32xbf16, #tpu.memory_space<vmem>>, vector<8x32xbf16>
    %c0_2 = arith.constant 0 : index
    %c0_3 = arith.constant 0 : index
    %4 = vector.load %arg6[%c0_2, %c0_3] : memref<32x128xbf16, #tpu.memory_space<vmem>>, vector<32x128xbf16>
    %cst = arith.constant dense<0.000000e+00> : vector<8x128xf32>
    %5 = tpu.matmul %3, %4, %cst {dimension_numbers = #tpu.dot_dimension_numbers<[1], [0], [0], [1], [0, 0, 1, 1], [], []>} : vector<8x32xbf16>, vector<32x128xbf16>, vector<8x128xf32> -> vector<8x128xf32>
    %c0_4 = arith.constant 0 : index
    %c0_5 = arith.constant 0 : index
    %6 = vector.load %arg8[%c0_4, %c0_5] : memref<1x128xf32, #tpu.memory_space<vmem>>, vector<1x128xf32>
    %7 = vector.broadcast %6 : vector<1x128xf32> to vector<8x128xf32>
    %8 = arith.addf %5, %7 : vector<8x128xf32>
    %c0_6 = arith.constant 0 : index
    %c0_7 = arith.constant 0 : index
    %9 = vector.load %arg7[%c0_6, %c0_7] : memref<32x128xbf16, #tpu.memory_space<vmem>>, vector<32x128xbf16>
    %cst_8 = arith.constant dense<0.000000e+00> : vector<8x128xf32>
    %10 = tpu.matmul %3, %9, %cst_8 {dimension_numbers = #tpu.dot_dimension_numbers<[1], [0], [0], [1], [0, 0, 1, 1], [], []>} : vector<8x32xbf16>, vector<32x128xbf16>, vector<8x128xf32> -> vector<8x128xf32>
    %c0_9 = arith.constant 0 : index
    %c0_10 = arith.constant 0 : index
    %11 = vector.load %arg9[%c0_9, %c0_10] : memref<1x128xf32, #tpu.memory_space<vmem>>, vector<1x128xf32>
    %12 = vector.broadcast %11 : vector<1x128xf32> to vector<8x128xf32>
    %13 = arith.addf %10, %12 : vector<8x128xf32>
    %cst_11 = arith.constant 5.000000e-01 : f32
    %14 = vector.broadcast %cst_11 : f32 to vector<8x128xf32>
    %15 = arith.mulf %14, %13 : vector<8x128xf32>
    %cst_12 = arith.constant 0.707106769 : f32
    %16 = vector.broadcast %cst_12 : f32 to vector<8x128xf32>
    %17 = arith.mulf %13, %16 : vector<8x128xf32>
    %18 = math.erf %17 : vector<8x128xf32>
    %cst_13 = arith.constant 1.000000e+00 : f32
    %19 = vector.broadcast %cst_13 : f32 to vector<8x128xf32>
    %20 = arith.addf %19, %18 : vector<8x128xf32>
    %21 = arith.mulf %15, %20 : vector<8x128xf32>
    %22 = arith.mulf %8, %21 : vector<8x128xf32>
    %23 = arith.truncf %22 : vector<8x128xf32> to vector<8x128xbf16>
    %c0_14 = arith.constant 0 : index
    %c0_15 = arith.constant 0 : index
    %c0_16 = arith.constant 0 : index
    %24 = vector.load %arg10[%c0_14, %c0_15, %c0_16] : memref<1x8x128xbf16, #tpu.memory_space<vmem>>, vector<1x8x128xbf16>
    %25 = vector.shape_cast %24 : vector<1x8x128xbf16> to vector<8x128xbf16>
    %26 = vector.shape_cast %23 : vector<8x128xbf16> to vector<1x8x128xbf16>
    tpu.vector_store %arg10[%c0_14, %c0_15, %c0_16], %26 {strides = array<i32>} : memref<1x8x128xbf16, #tpu.memory_space<vmem>>, vector<1x8x128xbf16>,
    return
  }
  func.func @transform_0(%arg0: i32, %arg1: i32, %arg2: i32) -> (i32, i32, i32) {
    %c0_i32 = arith.constant 0 : i32
    %c0_i32_0 = arith.constant 0 : i32
    return %arg0, %arg1, %c0_i32 : i32, i32, i32
  }
  func.func @transform_1(%arg0: i32, %arg1: i32, %arg2: i32) -> (i32, i32, i32) {
    %c0_i32 = arith.constant 0 : i32
    %c0_i32_0 = arith.constant 0 : i32
    %c0_i32_1 = arith.constant 0 : i32
    return %arg0, %c0_i32, %c0_i32_0 : i32, i32, i32
  }
  func.func @transform_2(%arg0: i32, %arg1: i32, %arg2: i32) -> (i32, i32, i32) {
    %c0_i32 = arith.constant 0 : i32
    %c0_i32_0 = arith.constant 0 : i32
    %c0_i32_1 = arith.constant 0 : i32
    return %arg0, %c0_i32, %c0_i32_0 : i32, i32, i32
  }
  func.func @transform_3(%arg0: i32, %arg1: i32, %arg2: i32) -> (i32, i32) {
    %c0_i32 = arith.constant 0 : i32
    %c0_i32_0 = arith.constant 0 : i32
    return %c0_i32, %arg2 : i32, i32
  }
  func.func @transform_4(%arg0: i32, %arg1: i32, %arg2: i32) -> (i32, i32) {
    %c0_i32 = arith.constant 0 : i32
    %c0_i32_0 = arith.constant 0 : i32
    return %c0_i32, %arg2 : i32, i32
  }
  func.func @transform_5(%arg0: i32, %arg1: i32, %arg2: i32) -> (i32, i32) {
    %c0_i32 = arith.constant 0 : i32
    %c0_i32_0 = arith.constant 0 : i32
    return %c0_i32, %arg2 : i32, i32
  }
  func.func @transform_6(%arg0: i32, %arg1: i32, %arg2: i32) -> (i32, i32) {
    %c0_i32 = arith.constant 0 : i32
    %c0_i32_0 = arith.constant 0 : i32
    return %c0_i32, %arg2 : i32, i32
  }
  func.func @transform_7(%arg0: i32, %arg1: i32, %arg2: i32) -> (i32, i32, i32) {
    %c0_i32 = arith.constant 0 : i32
    return %arg0, %arg1, %arg2 : i32, i32, i32
  }
}

module attributes {stable_mosaic.version = 11 : i64} {
  func.func @_mm_kernel(%arg0: i32, %arg1: i32, %arg2: i32, %arg3: memref<16x128xbf16, #tpu.memory_space<vmem>>, %arg4: memref<128x32xbf16, #tpu.memory_space<vmem>>, %arg5: memref<1x32xf32, #tpu.memory_space<vmem>>, %arg6: memref<16x32xbf16, #tpu.memory_space<vmem>>, %arg7: memref<16x32xbf16, #tpu.memory_space<vmem>>, %arg8: memref<16x32xf32, #tpu.memory_space<vmem>>) attributes {dimension_semantics = [#tpu.dimension_semantics<parallel>, #tpu.dimension_semantics<parallel>, #tpu.dimension_semantics<arbitrary>], iteration_bounds = array<i64: 1, 1, 1>, scalar_prefetch = 0 : i64, scratch_operands = 1 : i64, tpu.core_type = #tpu.core_type<tc>, window_params = [{transform_indices = @transform_0, window_bounds = array<i64: 16, 128>}, {transform_indices = @transform_1, window_bounds = array<i64: 128, 32>}, {transform_indices = @transform_2, window_bounds = array<i64: 1, 32>}, {transform_indices = @transform_3, window_bounds = array<i64: 16, 32>}, {transform_indices = @transform_4, window_bounds = array<i64: 16, 32>}]} {
    %c0_i32 = arith.constant 0 : i32
    %0 = arith.cmpi eq, %arg2, %c0_i32 : i32
    %1 = arith.extui %0 : i1 to i32
    %c0_i32_0 = arith.constant 0 : i32
    %2 = arith.cmpi ne, %1, %c0_i32_0 : i32
    scf.if %2 {
      %cst_10 = arith.constant 0.000000e+00 : f32
      %12 = vector.broadcast %cst_10 : f32 to vector<16x32xf32>
      %c0_11 = arith.constant 0 : index
      %c0_12 = arith.constant 0 : index
      %13 = vector.load %arg8[%c0_11, %c0_12] : memref<16x32xf32, #tpu.memory_space<vmem>>, vector<16x32xf32>
      tpu.vector_store %arg8[%c0_11, %c0_12], %12 {strides = array<i32>} : memref<16x32xf32, #tpu.memory_space<vmem>>, vector<16x32xf32>,
    } else {
    }
    %c0 = arith.constant 0 : index
    %c0_1 = arith.constant 0 : index
    %3 = vector.load %arg8[%c0, %c0_1] : memref<16x32xf32, #tpu.memory_space<vmem>>, vector<16x32xf32>
    %c0_2 = arith.constant 0 : index
    %c0_3 = arith.constant 0 : index
    %4 = vector.load %arg3[%c0_2, %c0_3] : memref<16x128xbf16, #tpu.memory_space<vmem>>, vector<16x128xbf16>
    %c0_4 = arith.constant 0 : index
    %c0_5 = arith.constant 0 : index
    %5 = vector.load %arg4[%c0_4, %c0_5] : memref<128x32xbf16, #tpu.memory_space<vmem>>, vector<128x32xbf16>
    %cst = arith.constant dense<0.000000e+00> : vector<16x32xf32>
    %6 = tpu.matmul %4, %5, %cst {dimension_numbers = #tpu.dot_dimension_numbers<[1], [0], [0], [1], [0, 0, 1, 1], [], []>} : vector<16x128xbf16>, vector<128x32xbf16>, vector<16x32xf32> -> vector<16x32xf32>
    %7 = arith.addf %3, %6 : vector<16x32xf32>
    %c0_6 = arith.constant 0 : index
    %c0_7 = arith.constant 0 : index
    %8 = vector.load %arg8[%c0_6, %c0_7] : memref<16x32xf32, #tpu.memory_space<vmem>>, vector<16x32xf32>
    tpu.vector_store %arg8[%c0_6, %c0_7], %7 {strides = array<i32>} : memref<16x32xf32, #tpu.memory_space<vmem>>, vector<16x32xf32>,
    %c0_i32_8 = arith.constant 0 : i32
    %9 = arith.cmpi eq, %arg2, %c0_i32_8 : i32
    %10 = arith.extui %9 : i1 to i32
    %c0_i32_9 = arith.constant 0 : i32
    %11 = arith.cmpi ne, %10, %c0_i32_9 : i32
    scf.if %11 {
      %c0_10 = arith.constant 0 : index
      %c0_11 = arith.constant 0 : index
      %12 = vector.load %arg8[%c0_10, %c0_11] : memref<16x32xf32, #tpu.memory_space<vmem>>, vector<16x32xf32>
      %c0_12 = arith.constant 0 : index
      %c0_13 = arith.constant 0 : index
      %13 = vector.load %arg5[%c0_12, %c0_13] : memref<1x32xf32, #tpu.memory_space<vmem>>, vector<1x32xf32>
      %14 = vector.broadcast %13 : vector<1x32xf32> to vector<16x32xf32>
      %15 = arith.addf %12, %14 : vector<16x32xf32>
      %c0_14 = arith.constant 0 : index
      %c0_15 = arith.constant 0 : index
      %16 = vector.load %arg6[%c0_14, %c0_15] : memref<16x32xbf16, #tpu.memory_space<vmem>>, vector<16x32xbf16>
      %17 = arith.extf %16 : vector<16x32xbf16> to vector<16x32xf32>
      %18 = arith.addf %15, %17 : vector<16x32xf32>
      %19 = arith.truncf %18 : vector<16x32xf32> to vector<16x32xbf16>
      %c0_16 = arith.constant 0 : index
      %c0_17 = arith.constant 0 : index
      %20 = vector.load %arg7[%c0_16, %c0_17] : memref<16x32xbf16, #tpu.memory_space<vmem>>, vector<16x32xbf16>
      tpu.vector_store %arg7[%c0_16, %c0_17], %19 {strides = array<i32>} : memref<16x32xbf16, #tpu.memory_space<vmem>>, vector<16x32xbf16>,
    } else {
    }
    return
  }
  func.func @transform_0(%arg0: i32, %arg1: i32, %arg2: i32) -> (i32, i32) {
    %c0_i32 = arith.constant 0 : i32
    return %arg0, %arg2 : i32, i32
  }
  func.func @transform_1(%arg0: i32, %arg1: i32, %arg2: i32) -> (i32, i32) {
    %c0_i32 = arith.constant 0 : i32
    return %arg2, %arg1 : i32, i32
  }
  func.func @transform_2(%arg0: i32, %arg1: i32, %arg2: i32) -> (i32, i32) {
    %c0_i32 = arith.constant 0 : i32
    %c0_i32_0 = arith.constant 0 : i32
    return %c0_i32, %arg1 : i32, i32
  }
  func.func @transform_3(%arg0: i32, %arg1: i32, %arg2: i32) -> (i32, i32) {
    %c0_i32 = arith.constant 0 : i32
    return %arg0, %arg1 : i32, i32
  }
  func.func @transform_4(%arg0: i32, %arg1: i32, %arg2: i32) -> (i32, i32) {
    %c0_i32 = arith.constant 0 : i32
    return %arg0, %arg1 : i32, i32
  }
}

module attributes {stable_mosaic.version = 11 : i64} {
  func.func @_ln_mm_kernel(%arg0: i32, %arg1: i32, %arg2: i32, %arg3: memref<1x8x32xbf16, #tpu.memory_space<vmem>>, %arg4: memref<1x32xf32, #tpu.memory_space<vmem>>, %arg5: memref<1x32xf32, #tpu.memory_space<vmem>>, %arg6: memref<32x4xbf16, #tpu.memory_space<vmem>>, %arg7: memref<1x8x4xf32, #tpu.memory_space<vmem>>, %arg8: memref<8x32xbf16, #tpu.memory_space<vmem>>) attributes {dimension_semantics = [#tpu.dimension_semantics<parallel>, #tpu.dimension_semantics<parallel>, #tpu.dimension_semantics<arbitrary>], iteration_bounds = array<i64: 2, 1, 1>, scalar_prefetch = 0 : i64, scratch_operands = 1 : i64, tpu.core_type = #tpu.core_type<tc>, window_params = [{transform_indices = @transform_0, window_bounds = array<i64: 1, 8, 32>}, {pipeline_mode = #tpu.pipeline_mode<synchronous>, transform_indices = @transform_1, window_bounds = array<i64: 1, 32>}, {pipeline_mode = #tpu.pipeline_mode<synchronous>, transform_indices = @transform_2, window_bounds = array<i64: 1, 32>}, {transform_indices = @transform_3, window_bounds = array<i64: 32, 4>}, {transform_indices = @transform_4, window_bounds = array<i64: 1, 8, 4>}]} {
    %c0_i32 = arith.constant 0 : i32
    %0 = arith.cmpi eq, %arg2, %c0_i32 : i32
    %1 = arith.extui %0 : i1 to i32
    %c0_i32_0 = arith.constant 0 : i32
    %2 = arith.cmpi ne, %1, %c0_i32_0 : i32
    scf.if %2 {
      %c0_7 = arith.constant 0 : index
      %c0_8 = arith.constant 0 : index
      %c0_9 = arith.constant 0 : index
      %9 = vector.load %arg3[%c0_7, %c0_8, %c0_9] : memref<1x8x32xbf16, #tpu.memory_space<vmem>>, vector<1x8x32xbf16>
      %10 = vector.shape_cast %9 : vector<1x8x32xbf16> to vector<8x32xbf16>
      %11 = arith.extf %10 : vector<8x32xbf16> to vector<8x32xf32>
      %cst_10 = arith.constant dense<0.000000e+00> : vector<8xf32>
      %12 = vector.multi_reduction <add>, %11, %cst_10 [1] : vector<8x32xf32> to vector<8xf32>
      %13 = vector.shape_cast %12 : vector<8xf32> to vector<8x1xf32>
      %cst_11 = arith.constant 3.200000e+01 : f32
      %14 = vector.broadcast %cst_11 : f32 to vector<8x1xf32>
      %15 = arith.divf %13, %14 : vector<8x1xf32>
      %16 = vector.broadcast %15 : vector<8x1xf32> to vector<8x32xf32>
      %17 = arith.subf %11, %16 : vector<8x32xf32>
      %18 = arith.mulf %17, %17 : vector<8x32xf32>
      %cst_12 = arith.constant dense<0.000000e+00> : vector<8xf32>
      %19 = vector.multi_reduction <add>, %18, %cst_12 [1] : vector<8x32xf32> to vector<8xf32>
      %20 = vector.shape_cast %19 : vector<8xf32> to vector<8x1xf32>
      %cst_13 = arith.constant 3.200000e+01 : f32
      %21 = vector.broadcast %cst_13 : f32 to vector<8x1xf32>
      %22 = arith.divf %20, %21 : vector<8x1xf32>
      %23 = vector.broadcast %15 : vector<8x1xf32> to vector<8x32xf32>
      %24 = arith.subf %11, %23 : vector<8x32xf32>
      %cst_14 = arith.constant 9.99999974E-6 : f32
      %25 = vector.broadcast %cst_14 : f32 to vector<8x1xf32>
      %26 = arith.addf %22, %25 : vector<8x1xf32>
      %27 = math.rsqrt %26 : vector<8x1xf32>
      %28 = vector.broadcast %27 : vector<8x1xf32> to vector<8x32xf32>
      %29 = arith.mulf %24, %28 : vector<8x32xf32>
      %c0_15 = arith.constant 0 : index
      %c0_16 = arith.constant 0 : index
      %30 = vector.load %arg4[%c0_15, %c0_16] : memref<1x32xf32, #tpu.memory_space<vmem>>, vector<1x32xf32>
      %31 = vector.broadcast %30 : vector<1x32xf32> to vector<8x32xf32>
      %32 = arith.mulf %29, %31 : vector<8x32xf32>
      %c0_17 = arith.constant 0 : index
      %c0_18 = arith.constant 0 : index
      %33 = vector.load %arg5[%c0_17, %c0_18] : memref<1x32xf32, #tpu.memory_space<vmem>>, vector<1x32xf32>
      %34 = vector.broadcast %33 : vector<1x32xf32> to vector<8x32xf32>
      %35 = arith.addf %32, %34 : vector<8x32xf32>
      %36 = arith.truncf %35 : vector<8x32xf32> to vector<8x32xbf16>
      %c0_19 = arith.constant 0 : index
      %c0_20 = arith.constant 0 : index
      %37 = vector.load %arg8[%c0_19, %c0_20] : memref<8x32xbf16, #tpu.memory_space<vmem>>, vector<8x32xbf16>
      tpu.vector_store %arg8[%c0_19, %c0_20], %36 {strides = array<i32>} : memref<8x32xbf16, #tpu.memory_space<vmem>>, vector<8x32xbf16>,
    } else {
    }
    %c0 = arith.constant 0 : index
    %c0_1 = arith.constant 0 : index
    %3 = vector.load %arg8[%c0, %c0_1] : memref<8x32xbf16, #tpu.memory_space<vmem>>, vector<8x32xbf16>
    %c0_2 = arith.constant 0 : index
    %c0_3 = arith.constant 0 : index
    %4 = vector.load %arg6[%c0_2, %c0_3] : memref<32x4xbf16, #tpu.memory_space<vmem>>, vector<32x4xbf16>
    %cst = arith.constant dense<0.000000e+00> : vector<8x4xf32>
    %5 = tpu.matmul %3, %4, %cst {dimension_numbers = #tpu.dot_dimension_numbers<[1], [0], [0], [1], [0, 0, 1, 1], [], []>} : vector<8x32xbf16>, vector<32x4xbf16>, vector<8x4xf32> -> vector<8x4xf32>
    %c0_4 = arith.constant 0 : index
    %c0_5 = arith.constant 0 : index
    %c0_6 = arith.constant 0 : index
    %6 = vector.load %arg7[%c0_4, %c0_5, %c0_6] : memref<1x8x4xf32, #tpu.memory_space<vmem>>, vector<1x8x4xf32>
    %7 = vector.shape_cast %6 : vector<1x8x4xf32> to vector<8x4xf32>
    %8 = vector.shape_cast %5 : vector<8x4xf32> to vector<1x8x4xf32>
    tpu.vector_store %arg7[%c0_4, %c0_5, %c0_6], %8 {strides = array<i32>} : memref<1x8x4xf32, #tpu.memory_space<vmem>>, vector<1x8x4xf32>,
    return
  }
  func.func @transform_0(%arg0: i32, %arg1: i32, %arg2: i32) -> (i32, i32, i32) {
    %c0_i32 = arith.constant 0 : i32
    %c0_i32_0 = arith.constant 0 : i32
    return %arg0, %arg1, %c0_i32 : i32, i32, i32
  }
  func.func @transform_1(%arg0: i32, %arg1: i32, %arg2: i32) -> (i32, i32) {
    %c0_i32 = arith.constant 0 : i32
    %c0_i32_0 = arith.constant 0 : i32
    %c0_i32_1 = arith.constant 0 : i32
    return %c0_i32, %c0_i32_0 : i32, i32
  }
  func.func @transform_2(%arg0: i32, %arg1: i32, %arg2: i32) -> (i32, i32) {
    %c0_i32 = arith.constant 0 : i32
    %c0_i32_0 = arith.constant 0 : i32
    %c0_i32_1 = arith.constant 0 : i32
    return %c0_i32, %c0_i32_0 : i32, i32
  }
  func.func @transform_3(%arg0: i32, %arg1: i32, %arg2: i32) -> (i32, i32) {
    %c0_i32 = arith.constant 0 : i32
    %c0_i32_0 = arith.constant 0 : i32
    return %c0_i32, %arg2 : i32, i32
  }
  func.func @transform_4(%arg0: i32, %arg1: i32, %arg2: i32) -> (i32, i32, i32) {
    %c0_i32 = arith.constant 0 : i32
    return %arg0, %arg1, %arg2 : i32, i32, i32
  }
}

</mosaic_0001>

<llo_original>
// kernel: latent_array_transformer_forward.28
$region0: #{latent_array_transformer_forward.28}
  #allocation0 [shape = 'u32[]', space=smem, size = 0x4, offset = 0x4, fixed_abs, tag = 'smem constant byte address 0x4 - core index']
  #allocation1 [shape = 'u32[144,128]{1,0:T(1,128)}', space=vmem, size = 0x12000, scoped, tag = 'internal scratch']
  #allocation2 [shape = 'f32[2,32]{1,0:T(2,128)}', space=vmem, size = 0x400, scoped, tag = 'scratch operand']
  %s0 = inlined_call_operand.vmem [shape: f32[2,8], index: 0, kind: input, shape index: {}]
  %s1 = inlined_call_operand.vmem [shape: bf16[8,32], index: 1, kind: input, shape index: {}]
  %s2 = inlined_call_operand.vmem [shape: f32[1,32], index: 2, kind: input, shape index: {}]
  %s3 = inlined_call_operand.vmem [shape: f32[2,32], index: 3, kind: output, shape index: {}]
  %s4 = sld [smem:[#allocation0]]
  $region30: #{latent_array_transformer_forward.28} parent=0
    _
  %s6 = ssub.s32 1, %s4
  %s7 = scalar_select 0, %s6, %s4
  // Predicated region
  $region2: #{latent_array_transformer_forward.28} parent=0 // pred_check
    _
  $region3: #{latent_array_transformer_forward.28} parent=0 // pred_check_branch
    %9 = sbr.rel (0) target = $region5
  $region4: #{latent_array_transformer_forward.28} parent=0 // pred_region
    _
  $region5: #{latent_array_transformer_forward.28} parent=0 // pred_fallthru
    _
  // Predicated region
  $region6: #{latent_array_transformer_forward.28} parent=0 // pred_check
    _
  $region7: #{latent_array_transformer_forward.28} parent=0 // pred_check_branch
    %11 = sbr.rel (0) target = $region9
  $region8: #{latent_array_transformer_forward.28} parent=0 // pred_region
    _
  $region9: #{latent_array_transformer_forward.28} parent=0 // pred_fallthru
    _
  // Predicated region
  $region10: #{latent_array_transformer_forward.28} parent=0 // pred_check
    _
  $region11: #{latent_array_transformer_forward.28} parent=0 // pred_check_branch
    %13 = sbr.rel (0) target = $region13
  $region12: #{latent_array_transformer_forward.28} parent=0 // pred_region
    _
  $region13: #{latent_array_transformer_forward.28} parent=0 // pred_fallthru
    _
  %p15 = scmp.eq.s32.totalorder 0, 0
  // Predicated region
  $region14: #{latent_array_transformer_forward.28} parent=0 // pred_check
    %p16 = pneg %p15
  $region15: #{latent_array_transformer_forward.28} parent=0 // pred_check_branch
    %18 = sbr.rel (%p16) target = $region17
  $region16: #{latent_array_transformer_forward.28} parent=0 // pred_region
    %vm19 = vcmask 254976
    %20 = vst.msk [vmem:[#allocation2] sm:$0x3] %vm19, 0.0
  $region17: #{latent_array_transformer_forward.28} parent=0 // pred_fallthru
    _
  %v21 = vld [vmem:[#allocation2] sm:$0x3]
  %v22 = vld [vmem:[%s0] sm:$0x3]
  %v23 = vpack.c.bf16 %v22, %v22
  %v24 = vld [vmem:[%s1] sm:$0xf]
  %vm25 = vcmask 64512
  %v27 = vsel %vm25, %v23, 0
  %vm29 = vcmask 1043456
  %v31 = vsel %vm29, %v24, 0
  %33 = vmatprep.subr.bf16.mxu0 0
  %34 = vmatpush1.bf16.msra.mxu0 %v31
  %35 = vmatprep.subr.bf16.mxu0 0
  %36 = vmatpush1.bf16.msra.mxu0 0
  %37 = vmatprep.subr.bf16.mxu0 0
  %38 = vmatpush1.bf16.msra.mxu0 0
  %39 = vmatprep.subr.bf16.mxu0 0
  %40 = vmatpush1.bf16.msra.mxu0 0
  %41 = vmatprep.subr.bf16.mxu0 0
  %42 = vmatpush1.bf16.msra.mxu0 0
  %43 = vmatprep.subr.bf16.mxu0 0
  %44 = vmatpush1.bf16.msra.mxu0 0
  %45 = vmatprep.subr.bf16.mxu0 0
  %46 = vmatpush1.bf16.msra.mxu0 0
  %47 = vmatprep.subr.bf16.mxu0 0
  %48 = vmatpush1.bf16.msra.mxu0 0
  %49 = vmatprep.subr.bf16.mxu0 0
  %50 = vmatpush1.bf16.msra.mxu0 0
  %51 = vmatprep.subr.bf16.mxu0 0
  %52 = vmatpush1.bf16.msra.mxu0 0
  %53 = vmatprep.subr.bf16.mxu0 0
  %54 = vmatpush1.bf16.msra.mxu0 0
  %55 = vmatprep.subr.bf16.mxu0 0
  %56 = vmatpush1.bf16.msra.mxu0 0
  %57 = vmatprep.subr.bf16.mxu0 0
  %58 = vmatpush1.bf16.msra.mxu0 0
  %59 = vmatprep.subr.bf16.mxu0 0
  %60 = vmatpush1.bf16.msra.mxu0 0
  %61 = vmatprep.subr.bf16.mxu0 0
  %62 = vmatpush1.bf16.msra.mxu0 0
  %63 = vmatprep.subr.bf16.mxu0 0
  %64 = vmatpush1.bf16.msra.mxu0 0
  %65 = vmatprep.mubr.bf16.mxu0 0
  %66 = vmatmul.mubr.bf16.gmra.mrb[0].mxu0 %v27
  %v67 = vpop.f32.mrb[0].mxu0
  %v68 = vadd.f32 0.0, %v67
  %v69 = vpop.f32.mrb[0].mxu0
  %v70 = vpop.f32.mrb[0].mxu0
  %v71 = vpop.f32.mrb[0].mxu0
  %72 = vdwg.mxu0
  %v73 = vadd.f32 %v21, %v68
  %vm74 = vcmask 254976
  %75 = vst.msk [vmem:[#allocation2] sm:$0x3] %vm74, %v73
  // Predicated region
  $region18: #{latent_array_transformer_forward.28} parent=0 // pred_check
    %p76 = pneg %p15
  $region19: #{latent_array_transformer_forward.28} parent=0 // pred_check_branch
    %78 = sbr.rel (%p76) target = $region21
  $region20: #{latent_array_transformer_forward.28} parent=0 // pred_region
    %v79 = vld [vmem:[#allocation2] sm:$0x3]
    %v80 = vld [vmem:[%s2] sm:$0x1]
    %v82 = vlaneseq
    %v83 = vshrl.u32 %v82, 7
    %v84 = vsub.s32 0, %v83
    %v85 = vrot.slane %v80, %v84
    %v87 = vadd.f32 %v79, %v85
    %v88 = vsub.f32 0.0, %v87
    %v89 = vmul.f32 %v88, 1.442695
    %v90 = vpow.pop %v89
    %v91 = vadd.f32 %v90, 1.0
    %v92 = vrcp.pop %v91
    %v93 = vmul.f32 %v87, %v92
    %94 = vst.msk [vmem:[%s3] sm:$0x3] %vm74, %v93
  $region21: #{latent_array_transformer_forward.28} parent=0 // pred_fallthru
    _
  // Predicated region
  $region22: #{latent_array_transformer_forward.28} parent=0 // pred_check
    _
  $region23: #{latent_array_transformer_forward.28} parent=0 // pred_check_branch
    %96 = sbr.rel (0) target = $region25
  $region24: #{latent_array_transformer_forward.28} parent=0 // pred_region
    _
  $region25: #{latent_array_transformer_forward.28} parent=0 // pred_fallthru
    _
  // Predicated region
  $region26: #{latent_array_transformer_forward.28} parent=0 // pred_check
    _
  $region27: #{latent_array_transformer_forward.28} parent=0 // pred_check_branch
    %98 = sbr.rel (0) target = $region29
  $region28: #{latent_array_transformer_forward.28} parent=0 // pred_region
    _
  $region29: #{latent_array_transformer_forward.28} parent=0 // pred_fallthru
    _

// kernel: latent_array_transformer_forward.29
$region0: #{latent_array_transformer_forward.29}
  #allocation0 [shape = 'u32[]', space=smem, size = 0x4, offset = 0x4, fixed_abs, tag = 'smem constant byte address 0x4 - core index']
  #allocation1 [shape = 'u32[144,128]{1,0:T(1,128)}', space=vmem, size = 0x12000, scoped, tag = 'internal scratch']
  #allocation2 [shape = 'f32[2,32]{1,0:T(2,128)}', space=vmem, size = 0x400, scoped, tag = 'scratch operand']
  %s0 = inlined_call_operand.vmem [shape: f32[2,32], index: 0, kind: input, shape index: {}]
  %s1 = inlined_call_operand.vmem [shape: bf16[32,32], index: 1, kind: input, shape index: {}]
  %s2 = inlined_call_operand.vmem [shape: f32[1,32], index: 2, kind: input, shape index: {}]
  %s3 = inlined_call_operand.vmem [shape: f32[2,32], index: 3, kind: output, shape index: {}]
  %s4 = sld [smem:[#allocation0]]
  $region30: #{latent_array_transformer_forward.29} parent=0
    _
  %s6 = ssub.s32 1, %s4
  %s7 = scalar_select 0, %s6, %s4
  // Predicated region
  $region2: #{latent_array_transformer_forward.29} parent=0 // pred_check
    _
  $region3: #{latent_array_transformer_forward.29} parent=0 // pred_check_branch
    %9 = sbr.rel (0) target = $region5
  $region4: #{latent_array_transformer_forward.29} parent=0 // pred_region
    _
  $region5: #{latent_array_transformer_forward.29} parent=0 // pred_fallthru
    _
  // Predicated region
  $region6: #{latent_array_transformer_forward.29} parent=0 // pred_check
    _
  $region7: #{latent_array_transformer_forward.29} parent=0 // pred_check_branch
    %11 = sbr.rel (0) target = $region9
  $region8: #{latent_array_transformer_forward.29} parent=0 // pred_region
    _
  $region9: #{latent_array_transformer_forward.29} parent=0 // pred_fallthru
    _
  // Predicated region
  $region10: #{latent_array_transformer_forward.29} parent=0 // pred_check
    _
  $region11: #{latent_array_transformer_forward.29} parent=0 // pred_check_branch
    %13 = sbr.rel (0) target = $region13
  $region12: #{latent_array_transformer_forward.29} parent=0 // pred_region
    _
  $region13: #{latent_array_transformer_forward.29} parent=0 // pred_fallthru
    _
  %p15 = scmp.eq.s32.totalorder 0, 0
  // Predicated region
  $region14: #{latent_array_transformer_forward.29} parent=0 // pred_check
    %p16 = pneg %p15
  $region15: #{latent_array_transformer_forward.29} parent=0 // pred_check_branch
    %18 = sbr.rel (%p16) target = $region17
  $region16: #{latent_array_transformer_forward.29} parent=0 // pred_region
    %vm19 = vcmask 254976
    %20 = vst.msk [vmem:[#allocation2] sm:$0x3] %vm19, 0.0
  $region17: #{latent_array_transformer_forward.29} parent=0 // pred_fallthru
    _
  %v21 = vld [vmem:[#allocation2] sm:$0x3]
  %v22 = vld [vmem:[%s0] sm:$0x3]
  %v23 = vpack.c.bf16 %v22, %v22
  %v24 = vld [vmem:[%s1] sm:$0xf]
  %v25 = vld [vmem:[%s1 + $0x4] sm:$0xf]
  %v26 = vld [vmem:[%s1 + $0x8] sm:$0xf]
  %v27 = vld [vmem:[%s1 + $0xc] sm:$0xf]
  %v32 = vunpack.c.l.b16 %v24
  %v33 = vunpack.c.l.b16 %v25
  %v34 = vunpack.c.l.b16 %v26
  %v35 = vunpack.c.l.b16 %v27
  %v36 = vpack.c.b16 %v33, %v32
  %v37 = vpack.c.b16 %v35, %v34
  %vm40 = vcmask 261120
  %v42 = vsel %vm40, %v23, 0
  %44 = vmatprep.subr.bf16.mxu0 0
  %45 = vmatpush1.bf16.msra.mxu0 %v36
  %46 = vmatprep.subr.bf16.mxu0 0
  %47 = vmatpush1.bf16.msra.mxu0 %v37
  %48 = vmatprep.subr.bf16.mxu0 0
  %49 = vmatpush1.bf16.msra.mxu0 0
  %50 = vmatprep.subr.bf16.mxu0 0
  %51 = vmatpush1.bf16.msra.mxu0 0
  %52 = vmatprep.subr.bf16.mxu0 0
  %53 = vmatpush1.bf16.msra.mxu0 0
  %54 = vmatprep.subr.bf16.mxu0 0
  %55 = vmatpush1.bf16.msra.mxu0 0
  %56 = vmatprep.subr.bf16.mxu0 0
  %57 = vmatpush1.bf16.msra.mxu0 0
  %58 = vmatprep.subr.bf16.mxu0 0
  %59 = vmatpush1.bf16.msra.mxu0 0
  %60 = vmatprep.subr.bf16.mxu0 0
  %61 = vmatpush1.bf16.msra.mxu0 0
  %62 = vmatprep.subr.bf16.mxu0 0
  %63 = vmatpush1.bf16.msra.mxu0 0
  %64 = vmatprep.subr.bf16.mxu0 0
  %65 = vmatpush1.bf16.msra.mxu0 0
  %66 = vmatprep.subr.bf16.mxu0 0
  %67 = vmatpush1.bf16.msra.mxu0 0
  %68 = vmatprep.subr.bf16.mxu0 0
  %69 = vmatpush1.bf16.msra.mxu0 0
  %70 = vmatprep.subr.bf16.mxu0 0
  %71 = vmatpush1.bf16.msra.mxu0 0
  %72 = vmatprep.subr.bf16.mxu0 0
  %73 = vmatpush1.bf16.msra.mxu0 0
  %74 = vmatprep.subr.bf16.mxu0 0
  %75 = vmatpush1.bf16.msra.mxu0 0
  %76 = vmatprep.mubr.bf16.mxu0 0
  %77 = vmatmul.mubr.bf16.gmra.mrb[0].mxu0 %v42
  %v78 = vpop.f32.mrb[0].mxu0
  %v79 = vadd.f32 0.0, %v78
  %v80 = vpop.f32.mrb[0].mxu0
  %v81 = vpop.f32.mrb[0].mxu0
  %v82 = vpop.f32.mrb[0].mxu0
  %83 = vdwg.mxu0
  %v84 = vadd.f32 %v21, %v79
  %vm85 = vcmask 254976
  %86 = vst.msk [vmem:[#allocation2] sm:$0x3] %vm85, %v84
  // Predicated region
  $region18: #{latent_array_transformer_forward.29} parent=0 // pred_check
    %p87 = pneg %p15
  $region19: #{latent_array_transformer_forward.29} parent=0 // pred_check_branch
    %89 = sbr.rel (%p87) target = $region21
  $region20: #{latent_array_transformer_forward.29} parent=0 // pred_region
    %v90 = vld [vmem:[#allocation2] sm:$0x3]
    %v91 = vld [vmem:[%s2] sm:$0x1]
    %v93 = vlaneseq
    %v94 = vshrl.u32 %v93, 7
    %v95 = vsub.s32 0, %v94
    %v96 = vrot.slane %v91, %v95
    %v98 = vadd.f32 %v90, %v96
    %v99 = vsub.f32 0.0, %v98
    %v100 = vmul.f32 %v99, 1.442695
    %v101 = vpow.pop %v100
    %v102 = vadd.f32 %v101, 1.0
    %v103 = vrcp.pop %v102
    %v104 = vmul.f32 %v98, %v103
    %105 = vst.msk [vmem:[%s3] sm:$0x3] %vm85, %v104
  $region21: #{latent_array_transformer_forward.29} parent=0 // pred_fallthru
    _
  // Predicated region
  $region22: #{latent_array_transformer_forward.29} parent=0 // pred_check
    _
  $region23: #{latent_array_transformer_forward.29} parent=0 // pred_check_branch
    %107 = sbr.rel (0) target = $region25
  $region24: #{latent_array_transformer_forward.29} parent=0 // pred_region
    _
  $region25: #{latent_array_transformer_forward.29} parent=0 // pred_fallthru
    _
  // Predicated region
  $region26: #{latent_array_transformer_forward.29} parent=0 // pred_check
    _
  $region27: #{latent_array_transformer_forward.29} parent=0 // pred_check_branch
    %109 = sbr.rel (0) target = $region29
  $region28: #{latent_array_transformer_forward.29} parent=0 // pred_region
    _
  $region29: #{latent_array_transformer_forward.29} parent=0 // pred_fallthru
    _

// kernel: latent_array_transformer_forward.31
$region0: #{latent_array_transformer_forward.31}
  #allocation0 [shape = 'u32[]', space=smem, size = 0x4, offset = 0x4, fixed_abs, tag = 'smem constant byte address 0x4 - core index']
  #allocation1 [shape = 'u32[144,128]{1,0:T(1,128)}', space=vmem, size = 0x12000, scoped, tag = 'internal scratch']
  #allocation2 [shape = 'f32[2,64]{1,0:T(2,128)}', space=vmem, size = 0x400, scoped, tag = 'scratch operand']
  %s0 = inlined_call_operand.vmem [shape: f32[2,32], index: 0, kind: input, shape index: {}]
  %s1 = inlined_call_operand.vmem [shape: bf16[32,64], index: 1, kind: input, shape index: {}]
  %s2 = inlined_call_operand.vmem [shape: f32[1,64], index: 2, kind: input, shape index: {}]
  %s3 = inlined_call_operand.vmem [shape: f32[2,64], index: 3, kind: output, shape index: {}]
  %s4 = sld [smem:[#allocation0]]
  $region30: #{latent_array_transformer_forward.31} parent=0
    _
  %s6 = ssub.s32 1, %s4
  %s7 = scalar_select 0, %s6, %s4
  // Predicated region
  $region2: #{latent_array_transformer_forward.31} parent=0 // pred_check
    _
  $region3: #{latent_array_transformer_forward.31} parent=0 // pred_check_branch
    %9 = sbr.rel (0) target = $region5
  $region4: #{latent_array_transformer_forward.31} parent=0 // pred_region
    _
  $region5: #{latent_array_transformer_forward.31} parent=0 // pred_fallthru
    _
  // Predicated region
  $region6: #{latent_array_transformer_forward.31} parent=0 // pred_check
    _
  $region7: #{latent_array_transformer_forward.31} parent=0 // pred_check_branch
    %11 = sbr.rel (0) target = $region9
  $region8: #{latent_array_transformer_forward.31} parent=0 // pred_region
    _
  $region9: #{latent_array_transformer_forward.31} parent=0 // pred_fallthru
    _
  // Predicated region
  $region10: #{latent_array_transformer_forward.31} parent=0 // pred_check
    _
  $region11: #{latent_array_transformer_forward.31} parent=0 // pred_check_branch
    %13 = sbr.rel (0) target = $region13
  $region12: #{latent_array_transformer_forward.31} parent=0 // pred_region
    _
  $region13: #{latent_array_transformer_forward.31} parent=0 // pred_fallthru
    _
  %p15 = scmp.eq.s32.totalorder 0, 0
  // Predicated region
  $region14: #{latent_array_transformer_forward.31} parent=0 // pred_check
    %p16 = pneg %p15
  $region15: #{latent_array_transformer_forward.31} parent=0 // pred_check_branch
    %18 = sbr.rel (%p16) target = $region17
  $region16: #{latent_array_transformer_forward.31} parent=0 // pred_region
    %vm19 = vcmask 517120
    %20 = vst.msk [vmem:[#allocation2] sm:$0x3] %vm19, 0.0
  $region17: #{latent_array_transformer_forward.31} parent=0 // pred_fallthru
    _
  %v21 = vld [vmem:[#allocation2] sm:$0x3]
  %v22 = vld [vmem:[%s0] sm:$0x3]
  %v23 = vpack.c.bf16 %v22, %v22
  %v24 = vld [vmem:[%s1] sm:$0xf]
  %v25 = vld [vmem:[%s1 + $0x4] sm:$0xf]
  %v26 = vld [vmem:[%s1 + $0x8] sm:$0xf]
  %v27 = vld [vmem:[%s1 + $0xc] sm:$0xf]
  %v32 = vunpack.c.l.b16 %v24
  %v33 = vunpack.c.l.b16 %v25
  %v34 = vunpack.c.l.b16 %v26
  %v35 = vunpack.c.l.b16 %v27
  %v36 = vpack.c.b16 %v33, %v32
  %v37 = vpack.c.b16 %v35, %v34
  %vm40 = vcmask 261120
  %v42 = vsel %vm40, %v23, 0
  %44 = vmatprep.subr.bf16.mxu0 0
  %45 = vmatpush1.bf16.msra.mxu0 %v36
  %46 = vmatprep.subr.bf16.mxu0 0
  %47 = vmatpush1.bf16.msra.mxu0 %v37
  %48 = vmatprep.subr.bf16.mxu0 0
  %49 = vmatpush1.bf16.msra.mxu0 0
  %50 = vmatprep.subr.bf16.mxu0 0
  %51 = vmatpush1.bf16.msra.mxu0 0
  %52 = vmatprep.subr.bf16.mxu0 0
  %53 = vmatpush1.bf16.msra.mxu0 0
  %54 = vmatprep.subr.bf16.mxu0 0
  %55 = vmatpush1.bf16.msra.mxu0 0
  %56 = vmatprep.subr.bf16.mxu0 0
  %57 = vmatpush1.bf16.msra.mxu0 0
  %58 = vmatprep.subr.bf16.mxu0 0
  %59 = vmatpush1.bf16.msra.mxu0 0
  %60 = vmatprep.subr.bf16.mxu0 0
  %61 = vmatpush1.bf16.msra.mxu0 0
  %62 = vmatprep.subr.bf16.mxu0 0
  %63 = vmatpush1.bf16.msra.mxu0 0
  %64 = vmatprep.subr.bf16.mxu0 0
  %65 = vmatpush1.bf16.msra.mxu0 0
  %66 = vmatprep.subr.bf16.mxu0 0
  %67 = vmatpush1.bf16.msra.mxu0 0
  %68 = vmatprep.subr.bf16.mxu0 0
  %69 = vmatpush1.bf16.msra.mxu0 0
  %70 = vmatprep.subr.bf16.mxu0 0
  %71 = vmatpush1.bf16.msra.mxu0 0
  %72 = vmatprep.subr.bf16.mxu0 0
  %73 = vmatpush1.bf16.msra.mxu0 0
  %74 = vmatprep.subr.bf16.mxu0 0
  %75 = vmatpush1.bf16.msra.mxu0 0
  %76 = vmatprep.mubr.bf16.mxu0 0
  %77 = vmatmul.mubr.bf16.gmra.mrb[0].mxu0 %v42
  %v78 = vpop.f32.mrb[0].mxu0
  %v79 = vadd.f32 0.0, %v78
  %v80 = vpop.f32.mrb[0].mxu0
  %v81 = vpop.f32.mrb[0].mxu0
  %v82 = vpop.f32.mrb[0].mxu0
  %83 = vdwg.mxu0
  %v84 = vadd.f32 %v21, %v79
  %vm85 = vcmask 517120
  %86 = vst.msk [vmem:[#allocation2] sm:$0x3] %vm85, %v84
  // Predicated region
  $region18: #{latent_array_transformer_forward.31} parent=0 // pred_check
    %p87 = pneg %p15
  $region19: #{latent_array_transformer_forward.31} parent=0 // pred_check_branch
    %89 = sbr.rel (%p87) target = $region21
  $region20: #{latent_array_transformer_forward.31} parent=0 // pred_region
    %v90 = vld [vmem:[#allocation2] sm:$0x3]
    %v91 = vld [vmem:[%s2] sm:$0x1]
    %v93 = vlaneseq
    %v94 = vshrl.u32 %v93, 7
    %v95 = vsub.s32 0, %v94
    %v96 = vrot.slane %v91, %v95
    %v98 = vadd.f32 %v90, %v96
    %99 = vst.msk [vmem:[%s3] sm:$0x3] %vm85, %v98
  $region21: #{latent_array_transformer_forward.31} parent=0 // pred_fallthru
    _
  // Predicated region
  $region22: #{latent_array_transformer_forward.31} parent=0 // pred_check
    _
  $region23: #{latent_array_transformer_forward.31} parent=0 // pred_check_branch
    %101 = sbr.rel (0) target = $region25
  $region24: #{latent_array_transformer_forward.31} parent=0 // pred_region
    _
  $region25: #{latent_array_transformer_forward.31} parent=0 // pred_fallthru
    _
  // Predicated region
  $region26: #{latent_array_transformer_forward.31} parent=0 // pred_check
    _
  $region27: #{latent_array_transformer_forward.31} parent=0 // pred_check_branch
    %103 = sbr.rel (0) target = $region29
  $region28: #{latent_array_transformer_forward.31} parent=0 // pred_region
    _
  $region29: #{latent_array_transformer_forward.31} parent=0 // pred_fallthru
    _

// kernel: latent_array_transformer_forward.30
$region0: #{latent_array_transformer_forward.30}
  #allocation0 [shape = 'u32[]', space=smem, size = 0x4, offset = 0x4, fixed_abs, tag = 'smem constant byte address 0x4 - core index']
  #allocation1 [shape = 'u32[144,128]{1,0:T(1,128)}', space=vmem, size = 0x12000, scoped, tag = 'internal scratch']
  #allocation2 [shape = 'f32[16,32]{1,0:T(8,128)}', space=vmem, size = 0x2000, scoped, tag = 'scratch operand']
  %s0 = inlined_call_operand.vmem [shape: f32[16,4], index: 0, kind: input, shape index: {}]
  %s1 = inlined_call_operand.vmem [shape: bf16[4,32], index: 1, kind: input, shape index: {}]
  %s2 = inlined_call_operand.vmem [shape: bf16[16,32], index: 2, kind: output, shape index: {}]
  %s3 = sld [smem:[#allocation0]]
  $region26: #{latent_array_transformer_forward.30} parent=0
    _
  %s5 = ssub.s32 1, %s3
  %s6 = scalar_select 0, %s5, %s3
  // Predicated region
  $region2: #{latent_array_transformer_forward.30} parent=0 // pred_check
    _
  $region3: #{latent_array_transformer_forward.30} parent=0 // pred_check_branch
    %8 = sbr.rel (0) target = $region5
  $region4: #{latent_array_transformer_forward.30} parent=0 // pred_region
    _
  $region5: #{latent_array_transformer_forward.30} parent=0 // pred_fallthru
    _
  // Predicated region
  $region6: #{latent_array_transformer_forward.30} parent=0 // pred_check
    _
  $region7: #{latent_array_transformer_forward.30} parent=0 // pred_check_branch
    %10 = sbr.rel (0) target = $region9
  $region8: #{latent_array_transformer_forward.30} parent=0 // pred_region
    _
  $region9: #{latent_array_transformer_forward.30} parent=0 // pred_fallthru
    _
  %p12 = scmp.eq.s32.totalorder 0, 0
  // Predicated region
  $region10: #{latent_array_transformer_forward.30} parent=0 // pred_check
    %p13 = pneg %p12
  $region11: #{latent_array_transformer_forward.30} parent=0 // pred_check_branch
    %15 = sbr.rel (%p13) target = $region13
  $region12: #{latent_array_transformer_forward.30} parent=0 // pred_region
    %vm16 = vcmask 261120
    %17 = vst.msk [vmem:[#allocation2] sm:$0xff] %vm16, 0.0
    %18 = vst.msk [vmem:[#allocation2 + $0x8] sm:$0xff] %vm16, 0.0
  $region13: #{latent_array_transformer_forward.30} parent=0 // pred_fallthru
    _
  %v19 = vld [vmem:[#allocation2] sm:$0xff]
  %v20 = vld [vmem:[#allocation2 + $0x8] sm:$0xff]
  %v21 = vld [vmem:[%s0] sm:$0xff]
  %v22 = vld [vmem:[%s0 + $0x8] sm:$0xff]
  %v23 = vpack.c.bf16 %v22, %v21
  %v24 = vld [vmem:[%s1] sm:$0x3]
  %vm25 = vcmask 31744
  %v27 = vsel %vm25, %v23, 0
  %vm29 = vcmask 1041408
  %v31 = vsel %vm29, %v24, 0
  %33 = vmatprep.subr.bf16.mxu0 0
  %34 = vmatpush1.bf16.msra.mxu0 %v31
  %35 = vmatprep.subr.bf16.mxu0 0
  %36 = vmatpush1.bf16.msra.mxu0 0
  %37 = vmatprep.subr.bf16.mxu0 0
  %38 = vmatpush1.bf16.msra.mxu0 0
  %39 = vmatprep.subr.bf16.mxu0 0
  %40 = vmatpush1.bf16.msra.mxu0 0
  %41 = vmatprep.subr.bf16.mxu0 0
  %42 = vmatpush1.bf16.msra.mxu0 0
  %43 = vmatprep.subr.bf16.mxu0 0
  %44 = vmatpush1.bf16.msra.mxu0 0
  %45 = vmatprep.subr.bf16.mxu0 0
  %46 = vmatpush1.bf16.msra.mxu0 0
  %47 = vmatprep.subr.bf16.mxu0 0
  %48 = vmatpush1.bf16.msra.mxu0 0
  %49 = vmatprep.subr.bf16.mxu0 0
  %50 = vmatpush1.bf16.msra.mxu0 0
  %51 = vmatprep.subr.bf16.mxu0 0
  %52 = vmatpush1.bf16.msra.mxu0 0
  %53 = vmatprep.subr.bf16.mxu0 0
  %54 = vmatpush1.bf16.msra.mxu0 0
  %55 = vmatprep.subr.bf16.mxu0 0
  %56 = vmatpush1.bf16.msra.mxu0 0
  %57 = vmatprep.subr.bf16.mxu0 0
  %58 = vmatpush1.bf16.msra.mxu0 0
  %59 = vmatprep.subr.bf16.mxu0 0
  %60 = vmatpush1.bf16.msra.mxu0 0
  %61 = vmatprep.subr.bf16.mxu0 0
  %62 = vmatpush1.bf16.msra.mxu0 0
  %63 = vmatprep.subr.bf16.mxu0 0
  %64 = vmatpush1.bf16.msra.mxu0 0
  %65 = vmatprep.mubr.bf16.mxu0 0
  %66 = vmatmul.mubr.bf16.gmra.mrb[0].mxu0 %v27
  %v67 = vpop.f32.mrb[0].mxu0
  %v68 = vadd.f32 0.0, %v67
  %v69 = vpop.f32.mrb[0].mxu0
  %v70 = vpop.f32.mrb[0].mxu0
  %v71 = vadd.f32 0.0, %v70
  %v72 = vpop.f32.mrb[0].mxu0
  %73 = vdwg.mxu0
  %v74 = vadd.f32 %v19, %v68
  %v75 = vadd.f32 %v20, %v71
  %vm76 = vcmask 261120
  %77 = vst.msk [vmem:[#allocation2] sm:$0xff] %vm76, %v74
  %78 = vst.msk [vmem:[#allocation2 + $0x8] sm:$0xff] %vm76, %v75
  // Predicated region
  $region14: #{latent_array_transformer_forward.30} parent=0 // pred_check
    %p79 = pneg %p12
  $region15: #{latent_array_transformer_forward.30} parent=0 // pred_check_branch
    %81 = sbr.rel (%p79) target = $region17
  $region16: #{latent_array_transformer_forward.30} parent=0 // pred_region
    %v82 = vld [vmem:[#allocation2] sm:$0xff]
    %v83 = vld [vmem:[#allocation2 + $0x8] sm:$0xff]
    %v84 = vpack.c.bf16 %v83, %v82
    %v86 = vunpack.c.l.b16 %v84
    %v87 = vunpack.c.h.b16 %v84
    %v88 = vpack.c.b16 %v86, %v86
    %v89 = vpack.c.b16 %v87, %v87
    %vm92 = vcmask 257024
    %93 = vst.msk [vmem:[%s2] sm:$0xf] %vm92, %v88
    %94 = vst.msk [vmem:[%s2 + $0x4] sm:$0xf] %vm92, %v89
  $region17: #{latent_array_transformer_forward.30} parent=0 // pred_fallthru
    _
  // Predicated region
  $region18: #{latent_array_transformer_forward.30} parent=0 // pred_check
    _
  $region19: #{latent_array_transformer_forward.30} parent=0 // pred_check_branch
    %96 = sbr.rel (0) target = $region21
  $region20: #{latent_array_transformer_forward.30} parent=0 // pred_region
    _
  $region21: #{latent_array_transformer_forward.30} parent=0 // pred_fallthru
    _
  // Predicated region
  $region22: #{latent_array_transformer_forward.30} parent=0 // pred_check
    _
  $region23: #{latent_array_transformer_forward.30} parent=0 // pred_check_branch
    %98 = sbr.rel (0) target = $region25
  $region24: #{latent_array_transformer_forward.30} parent=0 // pred_region
    _
  $region25: #{latent_array_transformer_forward.30} parent=0 // pred_fallthru
    _

// kernel: latent_array_transformer_forward.32
$region0: #{latent_array_transformer_forward.32}
  #allocation0 [shape = 'u32[]', space=smem, size = 0x4, offset = 0x4, fixed_abs, tag = 'smem constant byte address 0x4 - core index']
  #allocation1 [shape = 'u32[144,128]{1,0:T(1,128)}', space=vmem, size = 0x12000, scoped, tag = 'internal scratch']
  #allocation2 [shape = 'bf16[8,32]{1,0:T(8,128)(2,1)}', space=vmem, size = 0x800, scoped, tag = 'scratch operand']
  %s0 = inlined_call_operand.vmem [shape: bf16[2,8,32], index: 0, kind: input, shape index: {}]
  %s1 = inlined_call_operand.vmem [shape: f32[2,1,32], index: 1, kind: input, shape index: {}]
  %s2 = inlined_call_operand.vmem [shape: f32[2,1,32], index: 2, kind: input, shape index: {}]
  %s3 = inlined_call_operand.vmem [shape: bf16[3,32,32], index: 3, kind: input, shape index: {}]
  %s4 = inlined_call_operand.vmem [shape: bf16[3,2,8,32], index: 4, kind: output, shape index: {}]
  %s5 = sld [smem:[#allocation0]]
  $region53: #{latent_array_transformer_forward.32} parent=0
    _
  %s7 = ssub.s32 1, %s5
  %s8 = scalar_select 0, %s7, %s5
  loop: start=0, step=1, limit=8
  $region2: #{latent_array_transformer_forward.32} parent=0 // loop_pre_header
    _
  $region3: #{latent_array_transformer_forward.32} parent=0 // loop_header
    %s10 = sphi 0, %s14
    %p11 = scmp.ge.s32.totalorder %s10, 8
    %s17 = sphi 0, %s43
    %s18 = sphi 0, %s39
    %s19 = sphi 0, %s35
    %s20 = sphi 0, %s31
    %s21 = sphi 0, %s17
    %s22 = sphi 0, %s18
    %s23 = sphi 0, %s19
    %s24 = sphi 0, %s20
    %s25 = sphi 0, %s21
    %s26 = sphi 0, %s22
    %s27 = sphi 0, %s23
    %s28 = sphi 0, %s24
    %s48 = sphi 0, %s50
    %s51 = sphi 0, %s48
    %s52 = sphi 0, %s51
    %s68 = sphi 0, %s52
    %s74 = sphi 0, %s76
    %s77 = sphi 0, %s74
    %s78 = sphi 0, %s77
    %s94 = sphi 0, %s78
    %s100 = sphi 0, %s102
    %s103 = sphi 0, %s100
    %s104 = sphi 0, %s103
    %s120 = sphi 0, %s104
    %s128 = sphi 0, %s130
    %s131 = sphi 0, %s128
    %s132 = sphi 0, %s131
    %s148 = sphi 0, %s132
    %s160 = sphi 0, %s162
    %s163 = sphi 0, %s160
    %s164 = sphi 0, %s163
    %s180 = sphi 0, %s164
  $region4: #{latent_array_transformer_forward.32} parent=0 // loop_header_branch
    %13 = sbr.rel (%p11) target = $region8
  $region5: #{latent_array_transformer_forward.32} parent=0 // loop_body
    %s15 = ssub.s32 %s10, 1
    %s16 = ssub.s32 %s10, 2
    %s29 = sadd.s32 1, %s20
    %p30 = scmp.ge.s32.totalorder %s29, 1
    %s31 = scalar_select %p30, 0, %s29
    %s32 = sadd.s32 1, %s19
    %s33 = scalar_select %p30, %s32, %s19
    %p34 = scmp.ge.s32.totalorder %s33, 3
    %s35 = scalar_select %p34, 0, %s33
    %s36 = sadd.s32 1, %s18
    %s37 = scalar_select %p34, %s36, %s18
    %p38 = scmp.ge.s32.totalorder %s37, 1
    %s39 = scalar_select %p38, 0, %s37
    %s40 = sadd.s32 1, %s17
    %s41 = scalar_select %p38, %s40, %s17
    %p42 = scmp.ge.s32.totalorder %s41, 2
    %s43 = scalar_select %p42, 0, %s41
    %s44 = ssub.s32 %s17, %s43
    %s45 = ssub.s32 %s18, %s39
    %s46 = sor.u32 %s44, %s45
    %p47 = scmp.eq.s32.totalorder %s46, 0
    %s49 = sadd.s32 %s48, 1
    %s50 = scalar_select %p47, %s48, %s49
    %p53 = pneg %p47
    %p54 = scmp.eq.s32.totalorder %s10, 5
    %p55 = por %p53, %p54
    %p56 = scmp.ne.s32.totalorder %s48, %s51
    %p57 = scmp.eq.s32.totalorder %s10, 0
    %p58 = por %p56, %p57
    %p59 = scmp.ne.s32.totalorder %s48, %s51
    %p60 = scmp.eq.s32.totalorder %s15, 5
    %p61 = por %p59, %p60
    %p62 = scmp.ne.s32.totalorder %s51, %s52
    %p63 = scmp.eq.s32.totalorder %s15, 0
    %p64 = por %p62, %p63
    %p65 = scmp.ne.s32.totalorder %s51, %s52
    %p66 = scmp.eq.s32.totalorder %s16, 5
    %p67 = por %p65, %p66
    %p69 = scmp.ne.s32.totalorder %s52, %s68
    %p70 = scmp.eq.s32.totalorder %s16, 0
    %p71 = por %p69, %p70
    %s72 = ssub.s32 %s17, %s43
    %p73 = scmp.eq.s32.totalorder %s72, 0
    %s75 = sadd.s32 %s74, 1
    %s76 = scalar_select %p73, %s74, %s75
    %p79 = pneg %p73
    %p80 = scmp.eq.s32.totalorder %s10, 5
    %p81 = por %p79, %p80
    %p82 = scmp.ne.s32.totalorder %s74, %s77
    %p83 = scmp.eq.s32.totalorder %s10, 0
    %p84 = por %p82, %p83
    %p85 = scmp.ne.s32.totalorder %s74, %s77
    %p86 = scmp.eq.s32.totalorder %s15, 5
    %p87 = por %p85, %p86
    %p88 = scmp.ne.s32.totalorder %s77, %s78
    %p89 = scmp.eq.s32.totalorder %s15, 0
    %p90 = por %p88, %p89
    %p91 = scmp.ne.s32.totalorder %s77, %s78
    %p92 = scmp.eq.s32.totalorder %s16, 5
    %p93 = por %p91, %p92
    %p95 = scmp.ne.s32.totalorder %s78, %s94
    %p96 = scmp.eq.s32.totalorder %s16, 0
    %p97 = por %p95, %p96
    %s98 = ssub.s32 %s17, %s43
    %p99 = scmp.eq.s32.totalorder %s98, 0
    %s101 = sadd.s32 %s100, 1
    %s102 = scalar_select %p99, %s100, %s101
    %p105 = pneg %p99
    %p106 = scmp.eq.s32.totalorder %s10, 5
    %p107 = por %p105, %p106
    %p108 = scmp.ne.s32.totalorder %s100, %s103
    %p109 = scmp.eq.s32.totalorder %s10, 0
    %p110 = por %p108, %p109
    %p111 = scmp.ne.s32.totalorder %s100, %s103
    %p112 = scmp.eq.s32.totalorder %s15, 5
    %p113 = por %p111, %p112
    %p114 = scmp.ne.s32.totalorder %s103, %s104
    %p115 = scmp.eq.s32.totalorder %s15, 0
    %p116 = por %p114, %p115
    %p117 = scmp.ne.s32.totalorder %s103, %s104
    %p118 = scmp.eq.s32.totalorder %s16, 5
    %p119 = por %p117, %p118
    %p121 = scmp.ne.s32.totalorder %s104, %s120
    %p122 = scmp.eq.s32.totalorder %s16, 0
    %p123 = por %p121, %p122
    %s124 = ssub.s32 %s19, %s35
    %s125 = ssub.s32 %s20, %s31
    %s126 = sor.u32 %s124, %s125
    %p127 = scmp.eq.s32.totalorder %s126, 0
    %s129 = sadd.s32 %s128, 1
    %s130 = scalar_select %p127, %s128, %s129
    %p133 = pneg %p127
    %p134 = scmp.eq.s32.totalorder %s10, 5
    %p135 = por %p133, %p134
    %p136 = scmp.ne.s32.totalorder %s128, %s131
    %p137 = scmp.eq.s32.totalorder %s10, 0
    %p138 = por %p136, %p137
    %p139 = scmp.ne.s32.totalorder %s128, %s131
    %p140 = scmp.eq.s32.totalorder %s15, 5
    %p141 = por %p139, %p140
    %p142 = scmp.ne.s32.totalorder %s131, %s132
    %p143 = scmp.eq.s32.totalorder %s15, 0
    %p144 = por %p142, %p143
    %p145 = scmp.ne.s32.totalorder %s131, %s132
    %p146 = scmp.eq.s32.totalorder %s16, 5
    %p147 = por %p145, %p146
    %p149 = scmp.ne.s32.totalorder %s132, %s148
    %p150 = scmp.eq.s32.totalorder %s16, 0
    %p151 = por %p149, %p150
    %s152 = ssub.s32 %s19, %s35
    %s153 = ssub.s32 %s17, %s43
    %s154 = sor.u32 %s152, %s153
    %s155 = ssub.s32 %s18, %s39
    %s156 = sor.u32 %s154, %s155
    %s157 = ssub.s32 %s20, %s31
    %s158 = sor.u32 %s156, %s157
    %p159 = scmp.eq.s32.totalorder %s158, 0
    %s161 = sadd.s32 %s160, 1
    %s162 = scalar_select %p159, %s160, %s161
    %p165 = pneg %p159
    %p166 = scmp.eq.s32.totalorder %s10, 5
    %p167 = por %p165, %p166
    %p168 = scmp.ne.s32.totalorder %s160, %s163
    %p169 = scmp.eq.s32.totalorder %s10, 0
    %p170 = por %p168, %p169
    %p171 = scmp.ne.s32.totalorder %s160, %s163
    %p172 = scmp.eq.s32.totalorder %s15, 5
    %p173 = por %p171, %p172
    %p174 = scmp.ne.s32.totalorder %s163, %s164
    %p175 = scmp.eq.s32.totalorder %s15, 0
    %p176 = por %p174, %p175
    %p177 = scmp.ne.s32.totalorder %s163, %s164
    %p178 = scmp.eq.s32.totalorder %s16, 5
    %p179 = por %p177, %p178
    %p181 = scmp.ne.s32.totalorder %s164, %s180
    %p182 = scmp.eq.s32.totalorder %s16, 0
    %p183 = por %p181, %p182
    %p184 = scmp.le.s32.totalorder 1, %s10
    %p185 = scmp.lt.s32.totalorder %s10, 7
    %p186 = pnand %p184, %p185
    %p187 = pneg %p186
    // Predicated region
    $region9: #{latent_array_transformer_forward.32} parent=5 // pred_check
      _
    $region10: #{latent_array_transformer_forward.32} parent=5 // pred_check_branch
      %189 = sbr.rel (%p186) target = $region12
    $region11: #{latent_array_transformer_forward.32} parent=5 // pred_region
      %s190 = ssub.s32 %s10, 1
    $region12: #{latent_array_transformer_forward.32} parent=5 // pred_fallthru
      _
    %p191 = scmp.lt.s32.totalorder %s10, 6
    // Predicated region
    $region13: #{latent_array_transformer_forward.32} parent=5 // pred_check
      %p192 = pneg %p191
    $region14: #{latent_array_transformer_forward.32} parent=5 // pred_check_branch
      %194 = sbr.rel (%p192) target = $region16
    $region15: #{latent_array_transformer_forward.32} parent=5 // pred_region
      // Predicated region
      $region17: #{latent_array_transformer_forward.32} parent=15 // pred_check
        %p195 = pneg %p58
      $region18: #{latent_array_transformer_forward.32} parent=15 // pred_check_branch
        %197 = sbr.rel (%p195) target = $region20
      $region19: #{latent_array_transformer_forward.32} parent=15 // pred_region
        %p198 = scmp.lt.s32.totalorder %s17, 1
        %s199 = scalar_select %p198, %s17, 1
        %p200 = scmp.lt.s32.totalorder %s18, 0
        %s201 = scalar_select %p200, %s18, 0
        %s202 = sadd.s32 %s201, %s199
        %s203 = smul.addr %s202, 4
        %s204 = scalar_lea.vmem %s0, %s203
      $region20: #{latent_array_transformer_forward.32} parent=15 // pred_fallthru
        _
      // Predicated region
      $region21: #{latent_array_transformer_forward.32} parent=15 // pred_check
        %p205 = pneg %p84
      $region22: #{latent_array_transformer_forward.32} parent=15 // pred_check_branch
        %207 = sbr.rel (%p205) target = $region24
      $region23: #{latent_array_transformer_forward.32} parent=15 // pred_region
        %p208 = scmp.lt.s32.totalorder %s17, 1
        %s209 = scalar_select %p208, %s17, 1
        %s210 = scalar_lea.vmem %s1, %s209
      $region24: #{latent_array_transformer_forward.32} parent=15 // pred_fallthru
        _
      // Predicated region
      $region25: #{latent_array_transformer_forward.32} parent=15 // pred_check
        %p211 = pneg %p110
      $region26: #{latent_array_transformer_forward.32} parent=15 // pred_check_branch
        %213 = sbr.rel (%p211) target = $region28
      $region27: #{latent_array_transformer_forward.32} parent=15 // pred_region
        %p214 = scmp.lt.s32.totalorder %s17, 1
        %s215 = scalar_select %p214, %s17, 1
        %s216 = scalar_lea.vmem %s2, %s215
      $region28: #{latent_array_transformer_forward.32} parent=15 // pred_fallthru
        _
      // Predicated region
      $region29: #{latent_array_transformer_forward.32} parent=15 // pred_check
        %p217 = pneg %p138
      $region30: #{latent_array_transformer_forward.32} parent=15 // pred_check_branch
        %219 = sbr.rel (%p217) target = $region32
      $region31: #{latent_array_transformer_forward.32} parent=15 // pred_region
        %p220 = scmp.lt.s32.totalorder %s19, 2
        %s221 = scalar_select %p220, %s19, 2
        %p222 = scmp.lt.s32.totalorder %s20, 0
        %s223 = scalar_select %p222, %s20, 0
        %s224 = smul.addr %s221, 4
        %s225 = sadd.s32 %s223, %s224
        %s226 = smul.addr %s225, 4
        %s227 = scalar_lea.vmem %s3, %s226
      $region32: #{latent_array_transformer_forward.32} parent=15 // pred_fallthru
        _
    $region16: #{latent_array_transformer_forward.32} parent=5 // pred_fallthru
      _
    %p228 = scmp.le.s32.totalorder 1, %s10
    %p229 = scmp.lt.s32.totalorder %s10, 7
    %p230 = pnand %p228, %p229
    %p231 = pneg %p230
    // Predicated region
    $region33: #{latent_array_transformer_forward.32} parent=5 // pred_check
      _
    $region34: #{latent_array_transformer_forward.32} parent=5 // pred_check_branch
      %233 = sbr.rel (%p230) target = $region36
    $region35: #{latent_array_transformer_forward.32} parent=5 // pred_region
      %s234 = ssub.s32 %s10, 1
      %p235 = scmp.lt.s32.totalorder %s21, 1
      %s236 = scalar_select %p235, %s21, 1
      %p237 = scmp.lt.s32.totalorder %s22, 0
      %s238 = scalar_select %p237, %s22, 0
      %s239 = sadd.s32 %s238, %s236
      %s240 = smul.addr %s239, 4
      %s241 = scalar_lea.vmem %s0, %s240
      %p242 = pneg %p64
      %p243 = pneg %p61
      %p244 = scmp.lt.s32.totalorder %s21, 1
      %s245 = scalar_select %p244, %s21, 1
      %s246 = scalar_lea.vmem %s1, %s245
      %p247 = pneg %p90
      %p248 = pneg %p87
      %p249 = scmp.lt.s32.totalorder %s21, 1
      %s250 = scalar_select %p249, %s21, 1
      %s251 = scalar_lea.vmem %s2, %s250
      %p252 = pneg %p116
      %p253 = pneg %p113
      %p254 = scmp.lt.s32.totalorder %s23, 2
      %s255 = scalar_select %p254, %s23, 2
      %p256 = scmp.lt.s32.totalorder %s24, 0
      %s257 = scalar_select %p256, %s24, 0
      %s258 = smul.addr %s255, 4
      %s259 = sadd.s32 %s257, %s258
      %s260 = smul.addr %s259, 4
      %s261 = scalar_lea.vmem %s3, %s260
      %p262 = pneg %p144
      %p263 = pneg %p141
      %p264 = pneg %p176
      %p265 = pneg %p173
      %p266 = scmp.lt.s32.totalorder %s23, 2
      %s267 = scalar_select %p266, %s23, 2
      %p268 = scmp.lt.s32.totalorder %s21, 1
      %s269 = scalar_select %p268, %s21, 1
      %p270 = scmp.lt.s32.totalorder %s22, 0
      %s271 = scalar_select %p270, %s22, 0
      %p272 = scmp.lt.s32.totalorder %s24, 0
      %s273 = scalar_select %p272, %s24, 0
      %s274 = sadd.s32 %s273, %s271
      %s275 = sadd.s32 %s274, %s269
      %s276 = smul.addr %s267, 2
      %s277 = sadd.s32 %s275, %s276
      %s278 = smul.addr %s277, 4
      %s279 = scalar_lea.vmem %s4, %s278
      %p280 = scmp.lt.s32.totalorder %s21, 1
      %s281 = scalar_select %p280, %s21, 1
      %p282 = scmp.lt.s32.totalorder %s22, 0
      %s283 = scalar_select %p282, %s22, 0
      %s284 = sadd.s32 %s283, %s281
      %s285 = smul.addr %s284, 4
      %s286 = scalar_lea.vmem %s0, %s285
      %p287 = scmp.lt.s32.totalorder %s21, 1
      %s288 = scalar_select %p287, %s21, 1
      %s289 = scalar_lea.vmem %s1, %s288
      %p290 = scmp.lt.s32.totalorder %s21, 1
      %s291 = scalar_select %p290, %s21, 1
      %s292 = scalar_lea.vmem %s2, %s291
      %p293 = scmp.lt.s32.totalorder %s23, 2
      %s294 = scalar_select %p293, %s23, 2
      %p295 = scmp.lt.s32.totalorder %s24, 0
      %s296 = scalar_select %p295, %s24, 0
      %s297 = smul.addr %s294, 4
      %s298 = sadd.s32 %s296, %s297
      %s299 = smul.addr %s298, 4
      %s300 = scalar_lea.vmem %s3, %s299
      %p301 = scmp.lt.s32.totalorder %s23, 2
      %s302 = scalar_select %p301, %s23, 2
      %p303 = scmp.lt.s32.totalorder %s21, 1
      %s304 = scalar_select %p303, %s21, 1
      %p305 = scmp.lt.s32.totalorder %s22, 0
      %s306 = scalar_select %p305, %s22, 0
      %p307 = scmp.lt.s32.totalorder %s24, 0
      %s308 = scalar_select %p307, %s24, 0
      %s309 = sadd.s32 %s308, %s306
      %s310 = sadd.s32 %s309, %s304
      %s311 = smul.addr %s302, 2
      %s312 = sadd.s32 %s310, %s311
      %s313 = smul.addr %s312, 4
      %s314 = scalar_lea.vmem %s4, %s313
      %p316 = scmp.eq.s32.totalorder %s23, 0
      %p317 = scmp.eq.s32.totalorder %s24, 0
      %p318 = pnand %p316, %p317
      %p319 = pneg %p318
      // Predicated region
      $region37: #{latent_array_transformer_forward.32} parent=35 // pred_check
        _
      $region38: #{latent_array_transformer_forward.32} parent=35 // pred_check_branch
        %321 = sbr.rel (%p318) target = $region40
      $region39: #{latent_array_transformer_forward.32} parent=35 // pred_region
        %v322 = vld [vmem:[%s286] sm:$0xf]
        %v323 = vunpack.c.l.bf16 %v322
        %vm324 = vcmask 261120
        %v325 = vsel %vm324, %v323, 0.0
        %326 = vadd.xlane.f32.xlu0 %v325
        %v327 = vpop.xlane.xlu0 %326
        %v328 = vrcp.pop 32.0
        %v329 = vmul.f32 %v327, %v328
        %v330 = vsub.f32 %v323, %v329
        %v331 = vmul.f32 %v330, %v330
        %v332 = vsel %vm324, %v331, 0.0
        %333 = vadd.xlane.f32.xlu0 %v332
        %v334 = vpop.xlane.xlu0 %333
        %v335 = vmul.f32 %v334, %v328
        %v336 = vadd.f32 %v335, 1e-05
        %v337 = vrsqrt.pop %v336
        %v338 = vmul.f32 %v330, %v337
        %v339 = vld [vmem:[%s289] sm:$0x1]
        %v340 = vadd.f32 %v339, 1.0
        %v342 = vlaneseq
        %v343 = vshrl.u32 %v342, 7
        %v344 = vsub.s32 0, %v343
        %v345 = vrot.slane %v340, %v344
        %v347 = vmul.f32 %v338, %v345
        %v348 = vld [vmem:[%s292] sm:$0x1]
        %v350 = vlaneseq
        %v351 = vshrl.u32 %v350, 7
        %v352 = vsub.s32 0, %v351
        %v353 = vrot.slane %v348, %v352
        %v355 = vadd.f32 %v347, %v353
        %v356 = vpack.c.bf16 %v355, %v355
        %vm357 = vcmask 257024
        %358 = vst.msk [vmem:[#allocation2] sm:$0xf] %vm357, %v356
      $region40: #{latent_array_transformer_forward.32} parent=35 // pred_fallthru
        _
      %v359 = vld [vmem:[#allocation2] sm:$0xf]
      %v360 = vld [vmem:[%s300] sm:$0xf]
      %v361 = vld [vmem:[%s300 + $0x4] sm:$0xf]
      %v362 = vld [vmem:[%s300 + $0x8] sm:$0xf]
      %v363 = vld [vmem:[%s300 + $0xc] sm:$0xf]
      %v368 = vunpack.c.l.b16 %v360
      %v369 = vunpack.c.l.b16 %v361
      %v370 = vunpack.c.l.b16 %v362
      %v371 = vunpack.c.l.b16 %v363
      %v372 = vpack.c.b16 %v369, %v368
      %v373 = vpack.c.b16 %v371, %v370
      %vm376 = vcmask 261120
      %v378 = vsel %vm376, %v359, 0
      %380 = vmatprep.subr.bf16.mxu0 0
      %381 = vmatpush1.bf16.msra.mxu0 %v372
      %382 = vmatprep.subr.bf16.mxu0 0
      %383 = vmatpush1.bf16.msra.mxu0 %v373
      %384 = vmatprep.subr.bf16.mxu0 0
      %385 = vmatpush1.bf16.msra.mxu0 0
      %386 = vmatprep.subr.bf16.mxu0 0
      %387 = vmatpush1.bf16.msra.mxu0 0
      %388 = vmatprep.subr.bf16.mxu0 0
      %389 = vmatpush1.bf16.msra.mxu0 0
      %390 = vmatprep.subr.bf16.mxu0 0
      %391 = vmatpush1.bf16.msra.mxu0 0
      %392 = vmatprep.subr.bf16.mxu0 0
      %393 = vmatpush1.bf16.msra.mxu0 0
      %394 = vmatprep.subr.bf16.mxu0 0
      %395 = vmatpush1.bf16.msra.mxu0 0
      %396 = vmatprep.subr.bf16.mxu0 0
      %397 = vmatpush1.bf16.msra.mxu0 0
      %398 = vmatprep.subr.bf16.mxu0 0
      %399 = vmatpush1.bf16.msra.mxu0 0
      %400 = vmatprep.subr.bf16.mxu0 0
      %401 = vmatpush1.bf16.msra.mxu0 0
      %402 = vmatprep.subr.bf16.mxu0 0
      %403 = vmatpush1.bf16.msra.mxu0 0
      %404 = vmatprep.subr.bf16.mxu0 0
      %405 = vmatpush1.bf16.msra.mxu0 0
      %406 = vmatprep.subr.bf16.mxu0 0
      %407 = vmatpush1.bf16.msra.mxu0 0
      %408 = vmatprep.subr.bf16.mxu0 0
      %409 = vmatpush1.bf16.msra.mxu0 0
      %410 = vmatprep.subr.bf16.mxu0 0
      %411 = vmatpush1.bf16.msra.mxu0 0
      %412 = vmatprep.mubr.bf16.mxu0 0
      %413 = vmatmul.mubr.bf16.gmra.mrb[0].mxu0 %v378
      %v414 = vpop.f32.mrb[0].mxu0
      %v415 = vadd.f32 0.0, %v414
      %v416 = vpop.f32.mrb[0].mxu0
      %v417 = vpop.f32.mrb[0].mxu0
      %v418 = vpop.f32.mrb[0].mxu0
      %419 = vdwg.mxu0
      %v420 = vpack.c.bf16 %v415, %v415
      %vm421 = vcmask 257024
      %422 = vst.msk [vmem:[%s314] sm:$0xf] %vm421, %v420
      %p423 = scmp.lt.s32.totalorder %s23, 2
      %s424 = scalar_select %p423, %s23, 2
      %p425 = scmp.lt.s32.totalorder %s21, 1
      %s426 = scalar_select %p425, %s21, 1
      %p427 = scmp.lt.s32.totalorder %s22, 0
      %s428 = scalar_select %p427, %s22, 0
      %p429 = scmp.lt.s32.totalorder %s24, 0
      %s430 = scalar_select %p429, %s24, 0
      %s431 = sadd.s32 %s430, %s428
      %s432 = sadd.s32 %s431, %s426
      %s433 = smul.addr %s424, 2
      %s434 = sadd.s32 %s432, %s433
      %s435 = smul.addr %s434, 4
      %s436 = scalar_lea.vmem %s4, %s435
      // Predicated region
      $region41: #{latent_array_transformer_forward.32} parent=35 // pred_check
        %p437 = pneg %p173
      $region42: #{latent_array_transformer_forward.32} parent=35 // pred_check_branch
        %439 = sbr.rel (%p437) target = $region44
      $region43: #{latent_array_transformer_forward.32} parent=35 // pred_region
        _
      $region44: #{latent_array_transformer_forward.32} parent=35 // pred_fallthru
        _
    $region36: #{latent_array_transformer_forward.32} parent=5 // pred_fallthru
      _
    %p440 = scmp.le.s32.totalorder 2, %s10
    // Predicated region
    $region45: #{latent_array_transformer_forward.32} parent=5 // pred_check
      %p441 = pneg %p440
    $region46: #{latent_array_transformer_forward.32} parent=5 // pred_check_branch
      %443 = sbr.rel (%p441) target = $region48
    $region47: #{latent_array_transformer_forward.32} parent=5 // pred_region
      %s444 = ssub.s32 %s10, 2
      // Predicated region
      $region49: #{latent_array_transformer_forward.32} parent=47 // pred_check
        %p445 = pneg %p179
      $region50: #{latent_array_transformer_forward.32} parent=47 // pred_check_branch
        %447 = sbr.rel (%p445) target = $region52
      $region51: #{latent_array_transformer_forward.32} parent=47 // pred_region
        %p448 = scmp.lt.s32.totalorder %s27, 2
        %s449 = scalar_select %p448, %s27, 2
        %p450 = scmp.lt.s32.totalorder %s25, 1
        %s451 = scalar_select %p450, %s25, 1
        %p452 = scmp.lt.s32.totalorder %s26, 0
        %s453 = scalar_select %p452, %s26, 0
        %p454 = scmp.lt.s32.totalorder %s28, 0
        %s455 = scalar_select %p454, %s28, 0
        %s456 = sadd.s32 %s455, %s453
        %s457 = sadd.s32 %s456, %s451
        %s458 = smul.addr %s449, 2
        %s459 = sadd.s32 %s457, %s458
        %s460 = smul.addr %s459, 4
        %s461 = scalar_lea.vmem %s4, %s460
      $region52: #{latent_array_transformer_forward.32} parent=47 // pred_fallthru
        _
    $region48: #{latent_array_transformer_forward.32} parent=5 // pred_fallthru
      _
  $region6: #{latent_array_transformer_forward.32} parent=0 // loop_footer
    %s14 = sadd.s32 1, %s10
  $region7: #{latent_array_transformer_forward.32} parent=0 // loop_footer_branch
    %9 = sbr.rel target = $region3
  $region8: #{latent_array_transformer_forward.32} parent=0 // loop_exit
    _

// kernel: latent_array_transformer_forward.33
$region0: #{latent_array_transformer_forward.33}
  #allocation0 [shape = 'u32[]', space=smem, size = 0x4, offset = 0x4, fixed_abs, tag = 'smem constant byte address 0x4 - core index']
  #allocation1 [shape = 'u32[144,128]{1,0:T(1,128)}', space=vmem, size = 0x12000, scoped, tag = 'internal scratch']
  %s0 = inlined_call_operand.vmem [shape: bf16[3,2,8,32], index: 0, kind: input, shape index: {}, may-alias: {0,1,2}]
  %s1 = inlined_call_operand.vmem [shape: bf16[3,2,8,32], index: 1, kind: input, shape index: {}, may-alias: {0,1,2}]
  %s2 = inlined_call_operand.vmem [shape: bf16[3,2,8,32], index: 2, kind: input, shape index: {}, may-alias: {0,1,2}]
  %s3 = inlined_call_operand.vmem [shape: bf16[2,8,32], index: 3, kind: output, shape index: {}]
  %s4 = sld [smem:[#allocation0]]
  $region45: #{latent_array_transformer_forward.33} parent=0
    _
  %s6 = ssub.s32 1, %s4
  %s7 = scalar_select 0, %s6, %s4
  loop: start=0, step=1, limit=4
  $region2: #{latent_array_transformer_forward.33} parent=0 // loop_pre_header
    _
  $region3: #{latent_array_transformer_forward.33} parent=0 // loop_header
    %s9 = sphi 0, %s13
    %p10 = scmp.ge.s32.totalorder %s9, 4
    %s16 = sphi 0, %s28
    %s17 = sphi 0, %s24
    %s18 = sphi 0, %s16
    %s19 = sphi 0, %s17
    %s20 = sphi 0, %s18
    %s21 = sphi 0, %s19
    %s33 = sphi 0, %s35
    %s36 = sphi 0, %s33
    %s37 = sphi 0, %s36
    %s53 = sphi 0, %s37
    %s59 = sphi 0, %s61
    %s62 = sphi 0, %s59
    %s63 = sphi 0, %s62
    %s79 = sphi 0, %s63
    %s85 = sphi 0, %s87
    %s88 = sphi 0, %s85
    %s89 = sphi 0, %s88
    %s105 = sphi 0, %s89
    %s113 = sphi 0, %s115
    %s116 = sphi 0, %s113
    %s117 = sphi 0, %s116
    %s133 = sphi 0, %s117
  $region4: #{latent_array_transformer_forward.33} parent=0 // loop_header_branch
    %12 = sbr.rel (%p10) target = $region8
  $region5: #{latent_array_transformer_forward.33} parent=0 // loop_body
    %s14 = ssub.s32 %s9, 1
    %s15 = ssub.s32 %s9, 2
    %s22 = sadd.s32 1, %s17
    %p23 = scmp.ge.s32.totalorder %s22, 1
    %s24 = scalar_select %p23, 0, %s22
    %s25 = sadd.s32 1, %s16
    %s26 = scalar_select %p23, %s25, %s16
    %p27 = scmp.ge.s32.totalorder %s26, 2
    %s28 = scalar_select %p27, 0, %s26
    %s29 = ssub.s32 %s16, %s28
    %s30 = ssub.s32 %s17, %s24
    %s31 = sor.u32 %s29, %s30
    %p32 = scmp.eq.s32.totalorder %s31, 0
    %s34 = sadd.s32 %s33, 1
    %s35 = scalar_select %p32, %s33, %s34
    %p38 = pneg %p32
    %p39 = scmp.eq.s32.totalorder %s9, 1
    %p40 = por %p38, %p39
    %p41 = scmp.ne.s32.totalorder %s33, %s36
    %p42 = scmp.eq.s32.totalorder %s9, 0
    %p43 = por %p41, %p42
    %p44 = scmp.ne.s32.totalorder %s33, %s36
    %p45 = scmp.eq.s32.totalorder %s14, 1
    %p46 = por %p44, %p45
    %p47 = scmp.ne.s32.totalorder %s36, %s37
    %p48 = scmp.eq.s32.totalorder %s14, 0
    %p49 = por %p47, %p48
    %p50 = scmp.ne.s32.totalorder %s36, %s37
    %p51 = scmp.eq.s32.totalorder %s15, 1
    %p52 = por %p50, %p51
    %p54 = scmp.ne.s32.totalorder %s37, %s53
    %p55 = scmp.eq.s32.totalorder %s15, 0
    %p56 = por %p54, %p55
    %s57 = ssub.s32 %s16, %s28
    %p58 = scmp.eq.s32.totalorder %s57, 0
    %s60 = sadd.s32 %s59, 1
    %s61 = scalar_select %p58, %s59, %s60
    %p64 = pneg %p58
    %p65 = scmp.eq.s32.totalorder %s9, 1
    %p66 = por %p64, %p65
    %p67 = scmp.ne.s32.totalorder %s59, %s62
    %p68 = scmp.eq.s32.totalorder %s9, 0
    %p69 = por %p67, %p68
    %p70 = scmp.ne.s32.totalorder %s59, %s62
    %p71 = scmp.eq.s32.totalorder %s14, 1
    %p72 = por %p70, %p71
    %p73 = scmp.ne.s32.totalorder %s62, %s63
    %p74 = scmp.eq.s32.totalorder %s14, 0
    %p75 = por %p73, %p74
    %p76 = scmp.ne.s32.totalorder %s62, %s63
    %p77 = scmp.eq.s32.totalorder %s15, 1
    %p78 = por %p76, %p77
    %p80 = scmp.ne.s32.totalorder %s63, %s79
    %p81 = scmp.eq.s32.totalorder %s15, 0
    %p82 = por %p80, %p81
    %s83 = ssub.s32 %s16, %s28
    %p84 = scmp.eq.s32.totalorder %s83, 0
    %s86 = sadd.s32 %s85, 1
    %s87 = scalar_select %p84, %s85, %s86
    %p90 = pneg %p84
    %p91 = scmp.eq.s32.totalorder %s9, 1
    %p92 = por %p90, %p91
    %p93 = scmp.ne.s32.totalorder %s85, %s88
    %p94 = scmp.eq.s32.totalorder %s9, 0
    %p95 = por %p93, %p94
    %p96 = scmp.ne.s32.totalorder %s85, %s88
    %p97 = scmp.eq.s32.totalorder %s14, 1
    %p98 = por %p96, %p97
    %p99 = scmp.ne.s32.totalorder %s88, %s89
    %p100 = scmp.eq.s32.totalorder %s14, 0
    %p101 = por %p99, %p100
    %p102 = scmp.ne.s32.totalorder %s88, %s89
    %p103 = scmp.eq.s32.totalorder %s15, 1
    %p104 = por %p102, %p103
    %p106 = scmp.ne.s32.totalorder %s89, %s105
    %p107 = scmp.eq.s32.totalorder %s15, 0
    %p108 = por %p106, %p107
    %s109 = ssub.s32 %s16, %s28
    %s110 = ssub.s32 %s17, %s24
    %s111 = sor.u32 %s109, %s110
    %p112 = scmp.eq.s32.totalorder %s111, 0
    %s114 = sadd.s32 %s113, 1
    %s115 = scalar_select %p112, %s113, %s114
    %p118 = pneg %p112
    %p119 = scmp.eq.s32.totalorder %s9, 1
    %p120 = por %p118, %p119
    %p121 = scmp.ne.s32.totalorder %s113, %s116
    %p122 = scmp.eq.s32.totalorder %s9, 0
    %p123 = por %p121, %p122
    %p124 = scmp.ne.s32.totalorder %s113, %s116
    %p125 = scmp.eq.s32.totalorder %s14, 1
    %p126 = por %p124, %p125
    %p127 = scmp.ne.s32.totalorder %s116, %s117
    %p128 = scmp.eq.s32.totalorder %s14, 0
    %p129 = por %p127, %p128
    %p130 = scmp.ne.s32.totalorder %s116, %s117
    %p131 = scmp.eq.s32.totalorder %s15, 1
    %p132 = por %p130, %p131
    %p134 = scmp.ne.s32.totalorder %s117, %s133
    %p135 = scmp.eq.s32.totalorder %s15, 0
    %p136 = por %p134, %p135
    %p137 = scmp.le.s32.totalorder 1, %s9
    %p138 = scmp.lt.s32.totalorder %s9, 3
    %p139 = pnand %p137, %p138
    %p140 = pneg %p139
    // Predicated region
    $region9: #{latent_array_transformer_forward.33} parent=5 // pred_check
      _
    $region10: #{latent_array_transformer_forward.33} parent=5 // pred_check_branch
      %142 = sbr.rel (%p139) target = $region12
    $region11: #{latent_array_transformer_forward.33} parent=5 // pred_region
      %s143 = ssub.s32 %s9, 1
    $region12: #{latent_array_transformer_forward.33} parent=5 // pred_fallthru
      _
    %p144 = scmp.lt.s32.totalorder %s9, 2
    // Predicated region
    $region13: #{latent_array_transformer_forward.33} parent=5 // pred_check
      %p145 = pneg %p144
    $region14: #{latent_array_transformer_forward.33} parent=5 // pred_check_branch
      %147 = sbr.rel (%p145) target = $region16
    $region15: #{latent_array_transformer_forward.33} parent=5 // pred_region
      // Predicated region
      $region17: #{latent_array_transformer_forward.33} parent=15 // pred_check
        %p148 = pneg %p43
      $region18: #{latent_array_transformer_forward.33} parent=15 // pred_check_branch
        %150 = sbr.rel (%p148) target = $region20
      $region19: #{latent_array_transformer_forward.33} parent=15 // pred_region
        %p151 = scmp.lt.s32.totalorder %s16, 1
        %s152 = scalar_select %p151, %s16, 1
        %p153 = scmp.lt.s32.totalorder %s17, 0
        %s154 = scalar_select %p153, %s17, 0
        %s155 = sadd.s32 %s154, %s152
        %s156 = smul.addr %s155, 4
        %s157 = scalar_lea.vmem %s0, %s156
      $region20: #{latent_array_transformer_forward.33} parent=15 // pred_fallthru
        _
      // Predicated region
      $region21: #{latent_array_transformer_forward.33} parent=15 // pred_check
        %p158 = pneg %p69
      $region22: #{latent_array_transformer_forward.33} parent=15 // pred_check_branch
        %160 = sbr.rel (%p158) target = $region24
      $region23: #{latent_array_transformer_forward.33} parent=15 // pred_region
        %p161 = scmp.lt.s32.totalorder %s16, 1
        %s162 = scalar_select %p161, %s16, 1
        %s163 = sadd.s32 %s162, 2
        %s164 = smul.addr %s163, 4
        %s165 = scalar_lea.vmem %s1, %s164
      $region24: #{latent_array_transformer_forward.33} parent=15 // pred_fallthru
        _
      // Predicated region
      $region25: #{latent_array_transformer_forward.33} parent=15 // pred_check
        %p166 = pneg %p95
      $region26: #{latent_array_transformer_forward.33} parent=15 // pred_check_branch
        %168 = sbr.rel (%p166) target = $region28
      $region27: #{latent_array_transformer_forward.33} parent=15 // pred_region
        %p169 = scmp.lt.s32.totalorder %s16, 1
        %s170 = scalar_select %p169, %s16, 1
        %s171 = sadd.s32 %s170, 4
        %s172 = smul.addr %s171, 4
        %s173 = scalar_lea.vmem %s2, %s172
      $region28: #{latent_array_transformer_forward.33} parent=15 // pred_fallthru
        _
    $region16: #{latent_array_transformer_forward.33} parent=5 // pred_fallthru
      _
    %p174 = scmp.le.s32.totalorder 1, %s9
    %p175 = scmp.lt.s32.totalorder %s9, 3
    %p176 = pnand %p174, %p175
    %p177 = pneg %p176
    // Predicated region
    $region29: #{latent_array_transformer_forward.33} parent=5 // pred_check
      _
    $region30: #{latent_array_transformer_forward.33} parent=5 // pred_check_branch
      %179 = sbr.rel (%p176) target = $region32
    $region31: #{latent_array_transformer_forward.33} parent=5 // pred_region
      %s180 = ssub.s32 %s9, 1
      %p181 = scmp.lt.s32.totalorder %s18, 1
      %s182 = scalar_select %p181, %s18, 1
      %p183 = scmp.lt.s32.totalorder %s19, 0
      %s184 = scalar_select %p183, %s19, 0
      %s185 = sadd.s32 %s184, %s182
      %s186 = smul.addr %s185, 4
      %s187 = scalar_lea.vmem %s0, %s186
      %p188 = pneg %p49
      %p189 = pneg %p46
      %p190 = scmp.lt.s32.totalorder %s18, 1
      %s191 = scalar_select %p190, %s18, 1
      %s192 = sadd.s32 %s191, 2
      %s193 = smul.addr %s192, 4
      %s194 = scalar_lea.vmem %s1, %s193
      %p195 = pneg %p75
      %p196 = pneg %p72
      %p197 = scmp.lt.s32.totalorder %s18, 1
      %s198 = scalar_select %p197, %s18, 1
      %s199 = sadd.s32 %s198, 4
      %s200 = smul.addr %s199, 4
      %s201 = scalar_lea.vmem %s2, %s200
      %p202 = pneg %p101
      %p203 = pneg %p98
      %p204 = pneg %p129
      %p205 = pneg %p126
      %p206 = scmp.lt.s32.totalorder %s18, 1
      %s207 = scalar_select %p206, %s18, 1
      %p208 = scmp.lt.s32.totalorder %s19, 0
      %s209 = scalar_select %p208, %s19, 0
      %s210 = sadd.s32 %s209, %s207
      %s211 = smul.addr %s210, 4
      %s212 = scalar_lea.vmem %s3, %s211
      %p213 = scmp.lt.s32.totalorder %s18, 1
      %s214 = scalar_select %p213, %s18, 1
      %p215 = scmp.lt.s32.totalorder %s19, 0
      %s216 = scalar_select %p215, %s19, 0
      %s217 = sadd.s32 %s216, %s214
      %s218 = smul.addr %s217, 4
      %s219 = scalar_lea.vmem %s0, %s218
      %p220 = scmp.lt.s32.totalorder %s18, 1
      %s221 = scalar_select %p220, %s18, 1
      %s222 = sadd.s32 %s221, 2
      %s223 = smul.addr %s222, 4
      %s224 = scalar_lea.vmem %s1, %s223
      %p225 = scmp.lt.s32.totalorder %s18, 1
      %s226 = scalar_select %p225, %s18, 1
      %s227 = sadd.s32 %s226, 4
      %s228 = smul.addr %s227, 4
      %s229 = scalar_lea.vmem %s2, %s228
      %p230 = scmp.lt.s32.totalorder %s18, 1
      %s231 = scalar_select %p230, %s18, 1
      %p232 = scmp.lt.s32.totalorder %s19, 0
      %s233 = scalar_select %p232, %s19, 0
      %s234 = sadd.s32 %s233, %s231
      %s235 = smul.addr %s234, 4
      %s236 = scalar_lea.vmem %s3, %s235
      %v238 = vld [vmem:[%s219] sm:$0xf]
      %v239 = vld [vmem:[%s224] sm:$0xf]
      %v240 = vld [vmem:[%s229] sm:$0xf]
      %v241 = vunpack.c.l.bf16 %v238
      %v242 = vmul.f32 %v241, 0.25
      %v243 = vpack.c.bf16 %v242, %v242
      %vm244 = vcmask 130048
      %v246 = vsel %vm244, %v243, 0
      %v249 = vsel %vm244, %v239, 0
      %251 = vmatprep.subr.bf16.mxu0 0
      %252 = vmatpush1.bf16.xpose.msra.mxu0 %v249
      %253 = vmatprep.subr.bf16.mxu0 0
      %254 = vmatpush1.bf16.xpose.msra.mxu0 0
      %255 = vmatprep.subr.bf16.mxu0 0
      %256 = vmatpush1.bf16.xpose.msra.mxu0 0
      %257 = vmatprep.subr.bf16.mxu0 0
      %258 = vmatpush1.bf16.xpose.msra.mxu0 0
      %259 = vmatprep.subr.bf16.mxu0 0
      %260 = vmatpush1.bf16.xpose.msra.mxu0 0
      %261 = vmatprep.subr.bf16.mxu0 0
      %262 = vmatpush1.bf16.xpose.msra.mxu0 0
      %263 = vmatprep.subr.bf16.mxu0 0
      %264 = vmatpush1.bf16.xpose.msra.mxu0 0
      %265 = vmatprep.subr.bf16.mxu0 0
      %266 = vmatpush1.bf16.xpose.msra.mxu0 0
      %267 = vmatprep.subr.bf16.mxu0 0
      %268 = vmatpush1.bf16.xpose.msra.mxu0 0
      %269 = vmatprep.subr.bf16.mxu0 0
      %270 = vmatpush1.bf16.xpose.msra.mxu0 0
      %271 = vmatprep.subr.bf16.mxu0 0
      %272 = vmatpush1.bf16.xpose.msra.mxu0 0
      %273 = vmatprep.subr.bf16.mxu0 0
      %274 = vmatpush1.bf16.xpose.msra.mxu0 0
      %275 = vmatprep.subr.bf16.mxu0 0
      %276 = vmatpush1.bf16.xpose.msra.mxu0 0
      %277 = vmatprep.subr.bf16.mxu0 0
      %278 = vmatpush1.bf16.xpose.msra.mxu0 0
      %279 = vmatprep.subr.bf16.mxu0 0
      %280 = vmatpush1.bf16.xpose.msra.mxu0 0
      %281 = vmatprep.subr.bf16.mxu0 0
      %282 = vmatpush1.bf16.xpose.msra.mxu0 0
      %283 = vmatprep.mubr.bf16.mxu0 0
      %284 = vmatmul.mubr.bf16.gmra.mrb[0].mxu0 %v246
      %v285 = vpop.f32.mrb[0].mxu0
      %v286 = vadd.f32 0.0, %v285
      %v287 = vpop.f32.mrb[0].mxu0
      %v288 = vpop.f32.mrb[0].mxu0
      %v289 = vpop.f32.mrb[0].mxu0
      %290 = vdwg.mxu0
      %vm291 = vcmask 64512
      %v292 = vsel %vm291, %v286, -inf
      %293 = vmax.xlane.f32.xlu0 %v292
      %v294 = vpop.xlane.xlu0 %293
      %v295 = vsub.f32 %v286, %v294
      %v296 = vmul.f32 %v295, 1.442695
      %v297 = vpow.pop %v296
      %v298 = vsel %vm291, %v297, 0.0
      %299 = vadd.xlane.f32.xlu0 %v298
      %v300 = vpop.xlane.xlu0 %299
      %v301 = vrcp.pop %v300
      %v302 = vmul.f32 %v297, %v301
      %v303 = vpack.c.bf16 %v302, %v302
      %v305 = vsel %vm291, %v303, 0
      %vm307 = vcmask 1043456
      %v309 = vsel %vm307, %v240, 0
      %311 = vmatprep.subr.bf16.mxu0 0
      %312 = vmatpush1.bf16.msra.mxu0 %v309
      %313 = vmatprep.subr.bf16.mxu0 0
      %314 = vmatpush1.bf16.msra.mxu0 0
      %315 = vmatprep.subr.bf16.mxu0 0
      %316 = vmatpush1.bf16.msra.mxu0 0
      %317 = vmatprep.subr.bf16.mxu0 0
      %318 = vmatpush1.bf16.msra.mxu0 0
      %319 = vmatprep.subr.bf16.mxu0 0
      %320 = vmatpush1.bf16.msra.mxu0 0
      %321 = vmatprep.subr.bf16.mxu0 0
      %322 = vmatpush1.bf16.msra.mxu0 0
      %323 = vmatprep.subr.bf16.mxu0 0
      %324 = vmatpush1.bf16.msra.mxu0 0
      %325 = vmatprep.subr.bf16.mxu0 0
      %326 = vmatpush1.bf16.msra.mxu0 0
      %327 = vmatprep.subr.bf16.mxu0 0
      %328 = vmatpush1.bf16.msra.mxu0 0
      %329 = vmatprep.subr.bf16.mxu0 0
      %330 = vmatpush1.bf16.msra.mxu0 0
      %331 = vmatprep.subr.bf16.mxu0 0
      %332 = vmatpush1.bf16.msra.mxu0 0
      %333 = vmatprep.subr.bf16.mxu0 0
      %334 = vmatpush1.bf16.msra.mxu0 0
      %335 = vmatprep.subr.bf16.mxu0 0
      %336 = vmatpush1.bf16.msra.mxu0 0
      %337 = vmatprep.subr.bf16.mxu0 0
      %338 = vmatpush1.bf16.msra.mxu0 0
      %339 = vmatprep.subr.bf16.mxu0 0
      %340 = vmatpush1.bf16.msra.mxu0 0
      %341 = vmatprep.subr.bf16.mxu0 0
      %342 = vmatpush1.bf16.msra.mxu0 0
      %343 = vmatprep.mubr.bf16.mxu0 0
      %344 = vmatmul.mubr.bf16.gmra.mrb[0].mxu0 %v305
      %v345 = vpop.f32.mrb[0].mxu0
      %v346 = vadd.f32 0.0, %v345
      %v347 = vpop.f32.mrb[0].mxu0
      %v348 = vpop.f32.mrb[0].mxu0
      %v349 = vpop.f32.mrb[0].mxu0
      %350 = vdwg.mxu0
      %v351 = vpack.c.bf16 %v346, %v346
      %vm352 = vcmask 125952
      %353 = vst.msk [vmem:[%s236] sm:$0xf] %vm352, %v351
      %355 = vrot.lane.b32.xlu0 %v243, 112
      %v356 = vpop.permute.xlu0 %355
      %v358 = vunpack.c.l.b16 %v239
      %v359 = vpack.c.b16 %v358, %v358
      %360 = vrot.lane.b32.xlu0 %v359, 112
      %v361 = vpop.permute.xlu0 %360
      %v363 = vsel %vm244, %v356, 0
      %v366 = vsel %vm244, %v361, 0
      %368 = vmatprep.subr.bf16.mxu0 0
      %369 = vmatpush1.bf16.xpose.msra.mxu0 %v366
      %370 = vmatprep.subr.bf16.mxu0 0
      %371 = vmatpush1.bf16.xpose.msra.mxu0 0
      %372 = vmatprep.subr.bf16.mxu0 0
      %373 = vmatpush1.bf16.xpose.msra.mxu0 0
      %374 = vmatprep.subr.bf16.mxu0 0
      %375 = vmatpush1.bf16.xpose.msra.mxu0 0
      %376 = vmatprep.subr.bf16.mxu0 0
      %377 = vmatpush1.bf16.xpose.msra.mxu0 0
      %378 = vmatprep.subr.bf16.mxu0 0
      %379 = vmatpush1.bf16.xpose.msra.mxu0 0
      %380 = vmatprep.subr.bf16.mxu0 0
      %381 = vmatpush1.bf16.xpose.msra.mxu0 0
      %382 = vmatprep.subr.bf16.mxu0 0
      %383 = vmatpush1.bf16.xpose.msra.mxu0 0
      %384 = vmatprep.subr.bf16.mxu0 0
      %385 = vmatpush1.bf16.xpose.msra.mxu0 0
      %386 = vmatprep.subr.bf16.mxu0 0
      %387 = vmatpush1.bf16.xpose.msra.mxu0 0
      %388 = vmatprep.subr.bf16.mxu0 0
      %389 = vmatpush1.bf16.xpose.msra.mxu0 0
      %390 = vmatprep.subr.bf16.mxu0 0
      %391 = vmatpush1.bf16.xpose.msra.mxu0 0
      %392 = vmatprep.subr.bf16.mxu0 0
      %393 = vmatpush1.bf16.xpose.msra.mxu0 0
      %394 = vmatprep.subr.bf16.mxu0 0
      %395 = vmatpush1.bf16.xpose.msra.mxu0 0
      %396 = vmatprep.subr.bf16.mxu0 0
      %397 = vmatpush1.bf16.xpose.msra.mxu0 0
      %398 = vmatprep.subr.bf16.mxu0 0
      %399 = vmatpush1.bf16.xpose.msra.mxu0 0
      %400 = vmatprep.mubr.bf16.mxu0 0
      %401 = vmatmul.mubr.bf16.gmra.mrb[0].mxu0 %v363
      %v402 = vpop.f32.mrb[0].mxu0
      %v403 = vadd.f32 0.0, %v402
      %v404 = vpop.f32.mrb[0].mxu0
      %v405 = vpop.f32.mrb[0].mxu0
      %v406 = vpop.f32.mrb[0].mxu0
      %407 = vdwg.mxu0
      %v408 = vsel %vm291, %v403, -inf
      %409 = vmax.xlane.f32.xlu0 %v408
      %v410 = vpop.xlane.xlu0 %409
      %v411 = vsub.f32 %v403, %v410
      %v412 = vmul.f32 %v411, 1.442695
      %v413 = vpow.pop %v412
      %v414 = vsel %vm291, %v413, 0.0
      %415 = vadd.xlane.f32.xlu0 %v414
      %v416 = vpop.xlane.xlu0 %415
      %v417 = vrcp.pop %v416
      %v418 = vmul.f32 %v413, %v417
      %v419 = vpack.c.bf16 %v418, %v418
      %v421 = vunpack.c.l.b16 %v240
      %v422 = vpack.c.b16 %v421, %v421
      %423 = vrot.lane.b32.xlu0 %v422, 112
      %v424 = vpop.permute.xlu0 %423
      %v426 = vsel %vm291, %v419, 0
      %v429 = vsel %vm307, %v424, 0
      %431 = vmatprep.subr.bf16.mxu0 0
      %432 = vmatpush1.bf16.msra.mxu0 %v429
      %433 = vmatprep.subr.bf16.mxu0 0
      %434 = vmatpush1.bf16.msra.mxu0 0
      %435 = vmatprep.subr.bf16.mxu0 0
      %436 = vmatpush1.bf16.msra.mxu0 0
      %437 = vmatprep.subr.bf16.mxu0 0
      %438 = vmatpush1.bf16.msra.mxu0 0
      %439 = vmatprep.subr.bf16.mxu0 0
      %440 = vmatpush1.bf16.msra.mxu0 0
      %441 = vmatprep.subr.bf16.mxu0 0
      %442 = vmatpush1.bf16.msra.mxu0 0
      %443 = vmatprep.subr.bf16.mxu0 0
      %444 = vmatpush1.bf16.msra.mxu0 0
      %445 = vmatprep.subr.bf16.mxu0 0
      %446 = vmatpush1.bf16.msra.mxu0 0
      %447 = vmatprep.subr.bf16.mxu0 0
      %448 = vmatpush1.bf16.msra.mxu0 0
      %449 = vmatprep.subr.bf16.mxu0 0
      %450 = vmatpush1.bf16.msra.mxu0 0
      %451 = vmatprep.subr.bf16.mxu0 0
      %452 = vmatpush1.bf16.msra.mxu0 0
      %453 = vmatprep.subr.bf16.mxu0 0
      %454 = vmatpush1.bf16.msra.mxu0 0
      %455 = vmatprep.subr.bf16.mxu0 0
      %456 = vmatpush1.bf16.msra.mxu0 0
      %457 = vmatprep.subr.bf16.mxu0 0
      %458 = vmatpush1.bf16.msra.mxu0 0
      %459 = vmatprep.subr.bf16.mxu0 0
      %460 = vmatpush1.bf16.msra.mxu0 0
      %461 = vmatprep.subr.bf16.mxu0 0
      %462 = vmatpush1.bf16.msra.mxu0 0
      %463 = vmatprep.mubr.bf16.mxu0 0
      %464 = vmatmul.mubr.bf16.gmra.mrb[0].mxu0 %v426
      %v465 = vpop.f32.mrb[0].mxu0
      %v466 = vadd.f32 0.0, %v465
      %v467 = vpop.f32.mrb[0].mxu0
      %v468 = vpop.f32.mrb[0].mxu0
      %v469 = vpop.f32.mrb[0].mxu0
      %470 = vdwg.mxu0
      %v471 = vpack.c.bf16 %v466, %v466
      %v473 = vunpack.c.l.b16 %v471
      %v474 = vpack.c.b16 %v473, %v473
      %475 = vrot.lane.b32.xlu0 %v474, 16
      %v476 = vpop.permute.xlu0 %475
      %vm478 = vcmask 257152
      %479 = vst.msk [vmem:[%s236] sm:$0xf] %vm478, %v476
      %p480 = scmp.lt.s32.totalorder %s18, 1
      %s481 = scalar_select %p480, %s18, 1
      %p482 = scmp.lt.s32.totalorder %s19, 0
      %s483 = scalar_select %p482, %s19, 0
      %s484 = sadd.s32 %s483, %s481
      %s485 = smul.addr %s484, 4
      %s486 = scalar_lea.vmem %s3, %s485
      // Predicated region
      $region33: #{latent_array_transformer_forward.33} parent=31 // pred_check
        %p487 = pneg %p126
      $region34: #{latent_array_transformer_forward.33} parent=31 // pred_check_branch
        %489 = sbr.rel (%p487) target = $region36
      $region35: #{latent_array_transformer_forward.33} parent=31 // pred_region
        _
      $region36: #{latent_array_transformer_forward.33} parent=31 // pred_fallthru
        _
    $region32: #{latent_array_transformer_forward.33} parent=5 // pred_fallthru
      _
    %p490 = scmp.le.s32.totalorder 2, %s9
    // Predicated region
    $region37: #{latent_array_transformer_forward.33} parent=5 // pred_check
      %p491 = pneg %p490
    $region38: #{latent_array_transformer_forward.33} parent=5 // pred_check_branch
      %493 = sbr.rel (%p491) target = $region40
    $region39: #{latent_array_transformer_forward.33} parent=5 // pred_region
      %s494 = ssub.s32 %s9, 2
      // Predicated region
      $region41: #{latent_array_transformer_forward.33} parent=39 // pred_check
        %p495 = pneg %p132
      $region42: #{latent_array_transformer_forward.33} parent=39 // pred_check_branch
        %497 = sbr.rel (%p495) target = $region44
      $region43: #{latent_array_transformer_forward.33} parent=39 // pred_region
        %p498 = scmp.lt.s32.totalorder %s20, 1
        %s499 = scalar_select %p498, %s20, 1
        %p500 = scmp.lt.s32.totalorder %s21, 0
        %s501 = scalar_select %p500, %s21, 0
        %s502 = sadd.s32 %s501, %s499
        %s503 = smul.addr %s502, 4
        %s504 = scalar_lea.vmem %s3, %s503
      $region44: #{latent_array_transformer_forward.33} parent=39 // pred_fallthru
        _
    $region40: #{latent_array_transformer_forward.33} parent=5 // pred_fallthru
      _
  $region6: #{latent_array_transformer_forward.33} parent=0 // loop_footer
    %s13 = sadd.s32 1, %s9
  $region7: #{latent_array_transformer_forward.33} parent=0 // loop_footer_branch
    %8 = sbr.rel target = $region3
  $region8: #{latent_array_transformer_forward.33} parent=0 // loop_exit
    _

// kernel: latent_array_transformer_forward.34
$region0: #{latent_array_transformer_forward.34}
  #allocation0 [shape = 'u32[]', space=smem, size = 0x4, offset = 0x4, fixed_abs, tag = 'smem constant byte address 0x4 - core index']
  #allocation1 [shape = 'u32[144,128]{1,0:T(1,128)}', space=vmem, size = 0x12000, scoped, tag = 'internal scratch']
  #allocation2 [shape = 'f32[16,32]{1,0:T(8,128)}', space=vmem, size = 0x2000, scoped, tag = 'scratch operand']
  %s0 = inlined_call_operand.vmem [shape: bf16[16,32], index: 0, kind: input, shape index: {}]
  %s1 = inlined_call_operand.vmem [shape: bf16[32,32], index: 1, kind: input, shape index: {}]
  %s2 = inlined_call_operand.vmem [shape: f32[1,32], index: 2, kind: input, shape index: {}]
  %s3 = inlined_call_operand.vmem [shape: bf16[16,32], index: 3, kind: input, shape index: {}]
  %s4 = inlined_call_operand.vmem [shape: bf16[16,32], index: 4, kind: output, shape index: {}]
  %s5 = sld [smem:[#allocation0]]
  $region34: #{latent_array_transformer_forward.34} parent=0
    _
  %s7 = ssub.s32 1, %s5
  %s8 = scalar_select 0, %s7, %s5
  // Predicated region
  $region2: #{latent_array_transformer_forward.34} parent=0 // pred_check
    _
  $region3: #{latent_array_transformer_forward.34} parent=0 // pred_check_branch
    %10 = sbr.rel (0) target = $region5
  $region4: #{latent_array_transformer_forward.34} parent=0 // pred_region
    _
  $region5: #{latent_array_transformer_forward.34} parent=0 // pred_fallthru
    _
  // Predicated region
  $region6: #{latent_array_transformer_forward.34} parent=0 // pred_check
    _
  $region7: #{latent_array_transformer_forward.34} parent=0 // pred_check_branch
    %12 = sbr.rel (0) target = $region9
  $region8: #{latent_array_transformer_forward.34} parent=0 // pred_region
    _
  $region9: #{latent_array_transformer_forward.34} parent=0 // pred_fallthru
    _
  // Predicated region
  $region10: #{latent_array_transformer_forward.34} parent=0 // pred_check
    _
  $region11: #{latent_array_transformer_forward.34} parent=0 // pred_check_branch
    %14 = sbr.rel (0) target = $region13
  $region12: #{latent_array_transformer_forward.34} parent=0 // pred_region
    _
  $region13: #{latent_array_transformer_forward.34} parent=0 // pred_fallthru
    _
  // Predicated region
  $region14: #{latent_array_transformer_forward.34} parent=0 // pred_check
    _
  $region15: #{latent_array_transformer_forward.34} parent=0 // pred_check_branch
    %16 = sbr.rel (0) target = $region17
  $region16: #{latent_array_transformer_forward.34} parent=0 // pred_region
    _
  $region17: #{latent_array_transformer_forward.34} parent=0 // pred_fallthru
    _
  %p18 = scmp.eq.s32.totalorder 0, 0
  // Predicated region
  $region18: #{latent_array_transformer_forward.34} parent=0 // pred_check
    %p19 = pneg %p18
  $region19: #{latent_array_transformer_forward.34} parent=0 // pred_check_branch
    %21 = sbr.rel (%p19) target = $region21
  $region20: #{latent_array_transformer_forward.34} parent=0 // pred_region
    %vm22 = vcmask 261120
    %23 = vst.msk [vmem:[#allocation2] sm:$0xff] %vm22, 0.0
    %24 = vst.msk [vmem:[#allocation2 + $0x8] sm:$0xff] %vm22, 0.0
  $region21: #{latent_array_transformer_forward.34} parent=0 // pred_fallthru
    _
  %v25 = vld [vmem:[#allocation2] sm:$0xff]
  %v26 = vld [vmem:[#allocation2 + $0x8] sm:$0xff]
  %v27 = vld [vmem:[%s0] sm:$0xf]
  %v28 = vld [vmem:[%s0 + $0x4] sm:$0xf]
  %v29 = vld [vmem:[%s1] sm:$0xf]
  %v30 = vld [vmem:[%s1 + $0x4] sm:$0xf]
  %v31 = vld [vmem:[%s1 + $0x8] sm:$0xf]
  %v32 = vld [vmem:[%s1 + $0xc] sm:$0xf]
  %v35 = vunpack.c.l.b16 %v27
  %v36 = vunpack.c.l.b16 %v28
  %v37 = vpack.c.b16 %v36, %v35
  %v42 = vunpack.c.l.b16 %v29
  %v43 = vunpack.c.l.b16 %v30
  %v44 = vunpack.c.l.b16 %v31
  %v45 = vunpack.c.l.b16 %v32
  %v46 = vpack.c.b16 %v43, %v42
  %v47 = vpack.c.b16 %v45, %v44
  %vm50 = vcmask 261120
  %v52 = vsel %vm50, %v37, 0
  %54 = vmatprep.subr.bf16.mxu0 0
  %55 = vmatpush1.bf16.msra.mxu0 %v46
  %56 = vmatprep.subr.bf16.mxu0 0
  %57 = vmatpush1.bf16.msra.mxu0 %v47
  %58 = vmatprep.subr.bf16.mxu0 0
  %59 = vmatpush1.bf16.msra.mxu0 0
  %60 = vmatprep.subr.bf16.mxu0 0
  %61 = vmatpush1.bf16.msra.mxu0 0
  %62 = vmatprep.subr.bf16.mxu0 0
  %63 = vmatpush1.bf16.msra.mxu0 0
  %64 = vmatprep.subr.bf16.mxu0 0
  %65 = vmatpush1.bf16.msra.mxu0 0
  %66 = vmatprep.subr.bf16.mxu0 0
  %67 = vmatpush1.bf16.msra.mxu0 0
  %68 = vmatprep.subr.bf16.mxu0 0
  %69 = vmatpush1.bf16.msra.mxu0 0
  %70 = vmatprep.subr.bf16.mxu0 0
  %71 = vmatpush1.bf16.msra.mxu0 0
  %72 = vmatprep.subr.bf16.mxu0 0
  %73 = vmatpush1.bf16.msra.mxu0 0
  %74 = vmatprep.subr.bf16.mxu0 0
  %75 = vmatpush1.bf16.msra.mxu0 0
  %76 = vmatprep.subr.bf16.mxu0 0
  %77 = vmatpush1.bf16.msra.mxu0 0
  %78 = vmatprep.subr.bf16.mxu0 0
  %79 = vmatpush1.bf16.msra.mxu0 0
  %80 = vmatprep.subr.bf16.mxu0 0
  %81 = vmatpush1.bf16.msra.mxu0 0
  %82 = vmatprep.subr.bf16.mxu0 0
  %83 = vmatpush1.bf16.msra.mxu0 0
  %84 = vmatprep.subr.bf16.mxu0 0
  %85 = vmatpush1.bf16.msra.mxu0 0
  %86 = vmatprep.mubr.bf16.mxu0 0
  %87 = vmatmul.mubr.bf16.gmra.mrb[0].mxu0 %v52
  %v88 = vpop.f32.mrb[0].mxu0
  %v89 = vadd.f32 0.0, %v88
  %v90 = vpop.f32.mrb[0].mxu0
  %v91 = vpop.f32.mrb[0].mxu0
  %v92 = vadd.f32 0.0, %v91
  %v93 = vpop.f32.mrb[0].mxu0
  %94 = vdwg.mxu0
  %v95 = vadd.f32 %v25, %v89
  %v96 = vadd.f32 %v26, %v92
  %97 = vst.msk [vmem:[#allocation2] sm:$0xff] %vm50, %v95
  %98 = vst.msk [vmem:[#allocation2 + $0x8] sm:$0xff] %vm50, %v96
  // Predicated region
  $region22: #{latent_array_transformer_forward.34} parent=0 // pred_check
    %p99 = pneg %p18
  $region23: #{latent_array_transformer_forward.34} parent=0 // pred_check_branch
    %101 = sbr.rel (%p99) target = $region25
  $region24: #{latent_array_transformer_forward.34} parent=0 // pred_region
    %v102 = vld [vmem:[#allocation2] sm:$0xff]
    %v103 = vld [vmem:[#allocation2 + $0x8] sm:$0xff]
    %v104 = vld [vmem:[%s2] sm:$0x1]
    %v106 = vlaneseq
    %v107 = vshrl.u32 %v106, 7
    %v108 = vsub.s32 0, %v107
    %v109 = vrot.slane %v104, %v108
    %v111 = vadd.f32 %v102, %v109
    %v112 = vadd.f32 %v103, %v109
    %v113 = vld [vmem:[%s3] sm:$0xf]
    %v114 = vld [vmem:[%s3 + $0x4] sm:$0xf]
    %v115 = vunpack.c.l.bf16 %v113
    %v116 = vunpack.c.l.bf16 %v114
    %v117 = vadd.f32 %v111, %v115
    %v118 = vadd.f32 %v112, %v116
    %v119 = vpack.c.bf16 %v118, %v117
    %v121 = vunpack.c.l.b16 %v119
    %v122 = vunpack.c.h.b16 %v119
    %v123 = vpack.c.b16 %v121, %v121
    %v124 = vpack.c.b16 %v122, %v122
    %vm127 = vcmask 257024
    %128 = vst.msk [vmem:[%s4] sm:$0xf] %vm127, %v123
    %129 = vst.msk [vmem:[%s4 + $0x4] sm:$0xf] %vm127, %v124
  $region25: #{latent_array_transformer_forward.34} parent=0 // pred_fallthru
    _
  // Predicated region
  $region26: #{latent_array_transformer_forward.34} parent=0 // pred_check
    _
  $region27: #{latent_array_transformer_forward.34} parent=0 // pred_check_branch
    %131 = sbr.rel (0) target = $region29
  $region28: #{latent_array_transformer_forward.34} parent=0 // pred_region
    _
  $region29: #{latent_array_transformer_forward.34} parent=0 // pred_fallthru
    _
  // Predicated region
  $region30: #{latent_array_transformer_forward.34} parent=0 // pred_check
    _
  $region31: #{latent_array_transformer_forward.34} parent=0 // pred_check_branch
    %133 = sbr.rel (0) target = $region33
  $region32: #{latent_array_transformer_forward.34} parent=0 // pred_region
    _
  $region33: #{latent_array_transformer_forward.34} parent=0 // pred_fallthru
    _

// kernel: latent_array_transformer_forward.36
$region0: #{latent_array_transformer_forward.36}
  #allocation0 [shape = 'u32[]', space=smem, size = 0x4, offset = 0x4, fixed_abs, tag = 'smem constant byte address 0x4 - core index']
  #allocation1 [shape = 'u32[144,128]{1,0:T(1,128)}', space=vmem, size = 0x12000, scoped, tag = 'internal scratch']
  #allocation2 [shape = 'bf16[8,32]{1,0:T(8,128)(2,1)}', space=vmem, size = 0x800, scoped, tag = 'scratch operand']
  %s0 = inlined_call_operand.vmem [shape: bf16[2,8,32], index: 0, kind: input, shape index: {}]
  %s1 = inlined_call_operand.vmem [shape: f32[2,1,32], index: 1, kind: input, shape index: {}]
  %s2 = inlined_call_operand.vmem [shape: f32[2,1,32], index: 2, kind: input, shape index: {}]
  %s3 = inlined_call_operand.vmem [shape: bf16[1,32,32], index: 3, kind: input, shape index: {}]
  %s4 = inlined_call_operand.vmem [shape: bf16[1,2,8,32], index: 4, kind: output, shape index: {}]
  %s5 = sld [smem:[#allocation0]]
  $region53: #{latent_array_transformer_forward.36} parent=0
    _
  %s7 = ssub.s32 1, %s5
  %s8 = scalar_select 0, %s7, %s5
  loop: start=0, step=1, limit=4
  $region2: #{latent_array_transformer_forward.36} parent=0 // loop_pre_header
    _
  $region3: #{latent_array_transformer_forward.36} parent=0 // loop_header
    %s10 = sphi 0, %s14
    %p11 = scmp.ge.s32.totalorder %s10, 4
    %s17 = sphi 0, %s43
    %s18 = sphi 0, %s39
    %s19 = sphi 0, %s35
    %s20 = sphi 0, %s31
    %s21 = sphi 0, %s17
    %s22 = sphi 0, %s18
    %s23 = sphi 0, %s19
    %s24 = sphi 0, %s20
    %s25 = sphi 0, %s21
    %s26 = sphi 0, %s22
    %s27 = sphi 0, %s23
    %s28 = sphi 0, %s24
    %s48 = sphi 0, %s50
    %s51 = sphi 0, %s48
    %s52 = sphi 0, %s51
    %s68 = sphi 0, %s52
    %s74 = sphi 0, %s76
    %s77 = sphi 0, %s74
    %s78 = sphi 0, %s77
    %s94 = sphi 0, %s78
    %s100 = sphi 0, %s102
    %s103 = sphi 0, %s100
    %s104 = sphi 0, %s103
    %s120 = sphi 0, %s104
    %s128 = sphi 0, %s130
    %s131 = sphi 0, %s128
    %s132 = sphi 0, %s131
    %s148 = sphi 0, %s132
    %s160 = sphi 0, %s162
    %s163 = sphi 0, %s160
    %s164 = sphi 0, %s163
    %s180 = sphi 0, %s164
  $region4: #{latent_array_transformer_forward.36} parent=0 // loop_header_branch
    %13 = sbr.rel (%p11) target = $region8
  $region5: #{latent_array_transformer_forward.36} parent=0 // loop_body
    %s15 = ssub.s32 %s10, 1
    %s16 = ssub.s32 %s10, 2
    %s29 = sadd.s32 1, %s20
    %p30 = scmp.ge.s32.totalorder %s29, 1
    %s31 = scalar_select %p30, 0, %s29
    %s32 = sadd.s32 1, %s19
    %s33 = scalar_select %p30, %s32, %s19
    %p34 = scmp.ge.s32.totalorder %s33, 1
    %s35 = scalar_select %p34, 0, %s33
    %s36 = sadd.s32 1, %s18
    %s37 = scalar_select %p34, %s36, %s18
    %p38 = scmp.ge.s32.totalorder %s37, 1
    %s39 = scalar_select %p38, 0, %s37
    %s40 = sadd.s32 1, %s17
    %s41 = scalar_select %p38, %s40, %s17
    %p42 = scmp.ge.s32.totalorder %s41, 2
    %s43 = scalar_select %p42, 0, %s41
    %s44 = ssub.s32 %s17, %s43
    %s45 = ssub.s32 %s18, %s39
    %s46 = sor.u32 %s44, %s45
    %p47 = scmp.eq.s32.totalorder %s46, 0
    %s49 = sadd.s32 %s48, 1
    %s50 = scalar_select %p47, %s48, %s49
    %p53 = pneg %p47
    %p54 = scmp.eq.s32.totalorder %s10, 1
    %p55 = por %p53, %p54
    %p56 = scmp.ne.s32.totalorder %s48, %s51
    %p57 = scmp.eq.s32.totalorder %s10, 0
    %p58 = por %p56, %p57
    %p59 = scmp.ne.s32.totalorder %s48, %s51
    %p60 = scmp.eq.s32.totalorder %s15, 1
    %p61 = por %p59, %p60
    %p62 = scmp.ne.s32.totalorder %s51, %s52
    %p63 = scmp.eq.s32.totalorder %s15, 0
    %p64 = por %p62, %p63
    %p65 = scmp.ne.s32.totalorder %s51, %s52
    %p66 = scmp.eq.s32.totalorder %s16, 1
    %p67 = por %p65, %p66
    %p69 = scmp.ne.s32.totalorder %s52, %s68
    %p70 = scmp.eq.s32.totalorder %s16, 0
    %p71 = por %p69, %p70
    %s72 = ssub.s32 %s17, %s43
    %p73 = scmp.eq.s32.totalorder %s72, 0
    %s75 = sadd.s32 %s74, 1
    %s76 = scalar_select %p73, %s74, %s75
    %p79 = pneg %p73
    %p80 = scmp.eq.s32.totalorder %s10, 1
    %p81 = por %p79, %p80
    %p82 = scmp.ne.s32.totalorder %s74, %s77
    %p83 = scmp.eq.s32.totalorder %s10, 0
    %p84 = por %p82, %p83
    %p85 = scmp.ne.s32.totalorder %s74, %s77
    %p86 = scmp.eq.s32.totalorder %s15, 1
    %p87 = por %p85, %p86
    %p88 = scmp.ne.s32.totalorder %s77, %s78
    %p89 = scmp.eq.s32.totalorder %s15, 0
    %p90 = por %p88, %p89
    %p91 = scmp.ne.s32.totalorder %s77, %s78
    %p92 = scmp.eq.s32.totalorder %s16, 1
    %p93 = por %p91, %p92
    %p95 = scmp.ne.s32.totalorder %s78, %s94
    %p96 = scmp.eq.s32.totalorder %s16, 0
    %p97 = por %p95, %p96
    %s98 = ssub.s32 %s17, %s43
    %p99 = scmp.eq.s32.totalorder %s98, 0
    %s101 = sadd.s32 %s100, 1
    %s102 = scalar_select %p99, %s100, %s101
    %p105 = pneg %p99
    %p106 = scmp.eq.s32.totalorder %s10, 1
    %p107 = por %p105, %p106
    %p108 = scmp.ne.s32.totalorder %s100, %s103
    %p109 = scmp.eq.s32.totalorder %s10, 0
    %p110 = por %p108, %p109
    %p111 = scmp.ne.s32.totalorder %s100, %s103
    %p112 = scmp.eq.s32.totalorder %s15, 1
    %p113 = por %p111, %p112
    %p114 = scmp.ne.s32.totalorder %s103, %s104
    %p115 = scmp.eq.s32.totalorder %s15, 0
    %p116 = por %p114, %p115
    %p117 = scmp.ne.s32.totalorder %s103, %s104
    %p118 = scmp.eq.s32.totalorder %s16, 1
    %p119 = por %p117, %p118
    %p121 = scmp.ne.s32.totalorder %s104, %s120
    %p122 = scmp.eq.s32.totalorder %s16, 0
    %p123 = por %p121, %p122
    %s124 = ssub.s32 %s19, %s35
    %s125 = ssub.s32 %s20, %s31
    %s126 = sor.u32 %s124, %s125
    %p127 = scmp.eq.s32.totalorder %s126, 0
    %s129 = sadd.s32 %s128, 1
    %s130 = scalar_select %p127, %s128, %s129
    %p133 = pneg %p127
    %p134 = scmp.eq.s32.totalorder %s10, 1
    %p135 = por %p133, %p134
    %p136 = scmp.ne.s32.totalorder %s128, %s131
    %p137 = scmp.eq.s32.totalorder %s10, 0
    %p138 = por %p136, %p137
    %p139 = scmp.ne.s32.totalorder %s128, %s131
    %p140 = scmp.eq.s32.totalorder %s15, 1
    %p141 = por %p139, %p140
    %p142 = scmp.ne.s32.totalorder %s131, %s132
    %p143 = scmp.eq.s32.totalorder %s15, 0
    %p144 = por %p142, %p143
    %p145 = scmp.ne.s32.totalorder %s131, %s132
    %p146 = scmp.eq.s32.totalorder %s16, 1
    %p147 = por %p145, %p146
    %p149 = scmp.ne.s32.totalorder %s132, %s148
    %p150 = scmp.eq.s32.totalorder %s16, 0
    %p151 = por %p149, %p150
    %s152 = ssub.s32 %s19, %s35
    %s153 = ssub.s32 %s17, %s43
    %s154 = sor.u32 %s152, %s153
    %s155 = ssub.s32 %s18, %s39
    %s156 = sor.u32 %s154, %s155
    %s157 = ssub.s32 %s20, %s31
    %s158 = sor.u32 %s156, %s157
    %p159 = scmp.eq.s32.totalorder %s158, 0
    %s161 = sadd.s32 %s160, 1
    %s162 = scalar_select %p159, %s160, %s161
    %p165 = pneg %p159
    %p166 = scmp.eq.s32.totalorder %s10, 1
    %p167 = por %p165, %p166
    %p168 = scmp.ne.s32.totalorder %s160, %s163
    %p169 = scmp.eq.s32.totalorder %s10, 0
    %p170 = por %p168, %p169
    %p171 = scmp.ne.s32.totalorder %s160, %s163
    %p172 = scmp.eq.s32.totalorder %s15, 1
    %p173 = por %p171, %p172
    %p174 = scmp.ne.s32.totalorder %s163, %s164
    %p175 = scmp.eq.s32.totalorder %s15, 0
    %p176 = por %p174, %p175
    %p177 = scmp.ne.s32.totalorder %s163, %s164
    %p178 = scmp.eq.s32.totalorder %s16, 1
    %p179 = por %p177, %p178
    %p181 = scmp.ne.s32.totalorder %s164, %s180
    %p182 = scmp.eq.s32.totalorder %s16, 0
    %p183 = por %p181, %p182
    %p184 = scmp.le.s32.totalorder 1, %s10
    %p185 = scmp.lt.s32.totalorder %s10, 3
    %p186 = pnand %p184, %p185
    %p187 = pneg %p186
    // Predicated region
    $region9: #{latent_array_transformer_forward.36} parent=5 // pred_check
      _
    $region10: #{latent_array_transformer_forward.36} parent=5 // pred_check_branch
      %189 = sbr.rel (%p186) target = $region12
    $region11: #{latent_array_transformer_forward.36} parent=5 // pred_region
      %s190 = ssub.s32 %s10, 1
      // Predicated region
      $region13: #{latent_array_transformer_forward.36} parent=11 // pred_check
        %p191 = pneg %p144
      $region14: #{latent_array_transformer_forward.36} parent=11 // pred_check_branch
        %193 = sbr.rel (%p191) target = $region16
      $region15: #{latent_array_transformer_forward.36} parent=11 // pred_region
        %p194 = scmp.lt.s32.totalorder %s23, 0
        %s195 = scalar_select %p194, %s23, 0
        %p196 = scmp.lt.s32.totalorder %s24, 0
        %s197 = scalar_select %p196, %s24, 0
        %s198 = smul.addr %s195, 4
        %s199 = sadd.s32 %s197, %s198
        %s200 = smul.addr %s199, 4
        %s201 = scalar_lea.vmem %s3, %s200
      $region16: #{latent_array_transformer_forward.36} parent=11 // pred_fallthru
        _
    $region12: #{latent_array_transformer_forward.36} parent=5 // pred_fallthru
      _
    %p202 = scmp.lt.s32.totalorder %s10, 2
    // Predicated region
    $region17: #{latent_array_transformer_forward.36} parent=5 // pred_check
      %p203 = pneg %p202
    $region18: #{latent_array_transformer_forward.36} parent=5 // pred_check_branch
      %205 = sbr.rel (%p203) target = $region20
    $region19: #{latent_array_transformer_forward.36} parent=5 // pred_region
      // Predicated region
      $region21: #{latent_array_transformer_forward.36} parent=19 // pred_check
        %p206 = pneg %p58
      $region22: #{latent_array_transformer_forward.36} parent=19 // pred_check_branch
        %208 = sbr.rel (%p206) target = $region24
      $region23: #{latent_array_transformer_forward.36} parent=19 // pred_region
        %p209 = scmp.lt.s32.totalorder %s17, 1
        %s210 = scalar_select %p209, %s17, 1
        %p211 = scmp.lt.s32.totalorder %s18, 0
        %s212 = scalar_select %p211, %s18, 0
        %s213 = sadd.s32 %s212, %s210
        %s214 = smul.addr %s213, 4
        %s215 = scalar_lea.vmem %s0, %s214
      $region24: #{latent_array_transformer_forward.36} parent=19 // pred_fallthru
        _
      // Predicated region
      $region25: #{latent_array_transformer_forward.36} parent=19 // pred_check
        %p216 = pneg %p84
      $region26: #{latent_array_transformer_forward.36} parent=19 // pred_check_branch
        %218 = sbr.rel (%p216) target = $region28
      $region27: #{latent_array_transformer_forward.36} parent=19 // pred_region
        %p219 = scmp.lt.s32.totalorder %s17, 1
        %s220 = scalar_select %p219, %s17, 1
        %s221 = scalar_lea.vmem %s1, %s220
      $region28: #{latent_array_transformer_forward.36} parent=19 // pred_fallthru
        _
      // Predicated region
      $region29: #{latent_array_transformer_forward.36} parent=19 // pred_check
        %p222 = pneg %p110
      $region30: #{latent_array_transformer_forward.36} parent=19 // pred_check_branch
        %224 = sbr.rel (%p222) target = $region32
      $region31: #{latent_array_transformer_forward.36} parent=19 // pred_region
        %p225 = scmp.lt.s32.totalorder %s17, 1
        %s226 = scalar_select %p225, %s17, 1
        %s227 = scalar_lea.vmem %s2, %s226
      $region32: #{latent_array_transformer_forward.36} parent=19 // pred_fallthru
        _
    $region20: #{latent_array_transformer_forward.36} parent=5 // pred_fallthru
      _
    %p228 = scmp.le.s32.totalorder 1, %s10
    %p229 = scmp.lt.s32.totalorder %s10, 3
    %p230 = pnand %p228, %p229
    %p231 = pneg %p230
    // Predicated region
    $region33: #{latent_array_transformer_forward.36} parent=5 // pred_check
      _
    $region34: #{latent_array_transformer_forward.36} parent=5 // pred_check_branch
      %233 = sbr.rel (%p230) target = $region36
    $region35: #{latent_array_transformer_forward.36} parent=5 // pred_region
      %s234 = ssub.s32 %s10, 1
      %p235 = scmp.lt.s32.totalorder %s21, 1
      %s236 = scalar_select %p235, %s21, 1
      %p237 = scmp.lt.s32.totalorder %s22, 0
      %s238 = scalar_select %p237, %s22, 0
      %s239 = sadd.s32 %s238, %s236
      %s240 = smul.addr %s239, 4
      %s241 = scalar_lea.vmem %s0, %s240
      %p242 = pneg %p64
      %p243 = pneg %p61
      %p244 = scmp.lt.s32.totalorder %s21, 1
      %s245 = scalar_select %p244, %s21, 1
      %s246 = scalar_lea.vmem %s1, %s245
      %p247 = pneg %p90
      %p248 = pneg %p87
      %p249 = scmp.lt.s32.totalorder %s21, 1
      %s250 = scalar_select %p249, %s21, 1
      %s251 = scalar_lea.vmem %s2, %s250
      %p252 = pneg %p116
      %p253 = pneg %p113
      %p254 = scmp.lt.s32.totalorder %s23, 0
      %s255 = scalar_select %p254, %s23, 0
      %p256 = scmp.lt.s32.totalorder %s24, 0
      %s257 = scalar_select %p256, %s24, 0
      %s258 = smul.addr %s255, 4
      %s259 = sadd.s32 %s257, %s258
      %s260 = smul.addr %s259, 4
      %s261 = scalar_lea.vmem %s3, %s260
      %p262 = pneg %p144
      %p263 = pneg %p141
      %p264 = pneg %p176
      %p265 = pneg %p173
      %p266 = scmp.lt.s32.totalorder %s23, 0
      %s267 = scalar_select %p266, %s23, 0
      %p268 = scmp.lt.s32.totalorder %s21, 1
      %s269 = scalar_select %p268, %s21, 1
      %p270 = scmp.lt.s32.totalorder %s22, 0
      %s271 = scalar_select %p270, %s22, 0
      %p272 = scmp.lt.s32.totalorder %s24, 0
      %s273 = scalar_select %p272, %s24, 0
      %s274 = sadd.s32 %s273, %s271
      %s275 = sadd.s32 %s274, %s269
      %s276 = smul.addr %s267, 2
      %s277 = sadd.s32 %s275, %s276
      %s278 = smul.addr %s277, 4
      %s279 = scalar_lea.vmem %s4, %s278
      %p280 = scmp.lt.s32.totalorder %s21, 1
      %s281 = scalar_select %p280, %s21, 1
      %p282 = scmp.lt.s32.totalorder %s22, 0
      %s283 = scalar_select %p282, %s22, 0
      %s284 = sadd.s32 %s283, %s281
      %s285 = smul.addr %s284, 4
      %s286 = scalar_lea.vmem %s0, %s285
      %p287 = scmp.lt.s32.totalorder %s21, 1
      %s288 = scalar_select %p287, %s21, 1
      %s289 = scalar_lea.vmem %s1, %s288
      %p290 = scmp.lt.s32.totalorder %s21, 1
      %s291 = scalar_select %p290, %s21, 1
      %s292 = scalar_lea.vmem %s2, %s291
      %p293 = scmp.lt.s32.totalorder %s23, 0
      %s294 = scalar_select %p293, %s23, 0
      %p295 = scmp.lt.s32.totalorder %s24, 0
      %s296 = scalar_select %p295, %s24, 0
      %s297 = smul.addr %s294, 4
      %s298 = sadd.s32 %s296, %s297
      %s299 = smul.addr %s298, 4
      %s300 = scalar_lea.vmem %s3, %s299
      %p301 = scmp.lt.s32.totalorder %s23, 0
      %s302 = scalar_select %p301, %s23, 0
      %p303 = scmp.lt.s32.totalorder %s21, 1
      %s304 = scalar_select %p303, %s21, 1
      %p305 = scmp.lt.s32.totalorder %s22, 0
      %s306 = scalar_select %p305, %s22, 0
      %p307 = scmp.lt.s32.totalorder %s24, 0
      %s308 = scalar_select %p307, %s24, 0
      %s309 = sadd.s32 %s308, %s306
      %s310 = sadd.s32 %s309, %s304
      %s311 = smul.addr %s302, 2
      %s312 = sadd.s32 %s310, %s311
      %s313 = smul.addr %s312, 4
      %s314 = scalar_lea.vmem %s4, %s313
      %p316 = scmp.eq.s32.totalorder %s23, 0
      %p317 = scmp.eq.s32.totalorder %s24, 0
      %p318 = pnand %p316, %p317
      %p319 = pneg %p318
      // Predicated region
      $region37: #{latent_array_transformer_forward.36} parent=35 // pred_check
        _
      $region38: #{latent_array_transformer_forward.36} parent=35 // pred_check_branch
        %321 = sbr.rel (%p318) target = $region40
      $region39: #{latent_array_transformer_forward.36} parent=35 // pred_region
        %v322 = vld [vmem:[%s286] sm:$0xf]
        %v323 = vunpack.c.l.bf16 %v322
        %vm324 = vcmask 261120
        %v325 = vsel %vm324, %v323, 0.0
        %326 = vadd.xlane.f32.xlu0 %v325
        %v327 = vpop.xlane.xlu0 %326
        %v328 = vrcp.pop 32.0
        %v329 = vmul.f32 %v327, %v328
        %v330 = vsub.f32 %v323, %v329
        %v331 = vmul.f32 %v330, %v330
        %v332 = vsel %vm324, %v331, 0.0
        %333 = vadd.xlane.f32.xlu0 %v332
        %v334 = vpop.xlane.xlu0 %333
        %v335 = vmul.f32 %v334, %v328
        %v336 = vadd.f32 %v335, 1e-05
        %v337 = vrsqrt.pop %v336
        %v338 = vmul.f32 %v330, %v337
        %v339 = vld [vmem:[%s289] sm:$0x1]
        %v340 = vadd.f32 %v339, 1.0
        %v342 = vlaneseq
        %v343 = vshrl.u32 %v342, 7
        %v344 = vsub.s32 0, %v343
        %v345 = vrot.slane %v340, %v344
        %v347 = vmul.f32 %v338, %v345
        %v348 = vld [vmem:[%s292] sm:$0x1]
        %v350 = vlaneseq
        %v351 = vshrl.u32 %v350, 7
        %v352 = vsub.s32 0, %v351
        %v353 = vrot.slane %v348, %v352
        %v355 = vadd.f32 %v347, %v353
        %v356 = vpack.c.bf16 %v355, %v355
        %vm357 = vcmask 257024
        %358 = vst.msk [vmem:[#allocation2] sm:$0xf] %vm357, %v356
      $region40: #{latent_array_transformer_forward.36} parent=35 // pred_fallthru
        _
      %v359 = vld [vmem:[#allocation2] sm:$0xf]
      %v360 = vld [vmem:[%s300] sm:$0xf]
      %v361 = vld [vmem:[%s300 + $0x4] sm:$0xf]
      %v362 = vld [vmem:[%s300 + $0x8] sm:$0xf]
      %v363 = vld [vmem:[%s300 + $0xc] sm:$0xf]
      %v368 = vunpack.c.l.b16 %v360
      %v369 = vunpack.c.l.b16 %v361
      %v370 = vunpack.c.l.b16 %v362
      %v371 = vunpack.c.l.b16 %v363
      %v372 = vpack.c.b16 %v369, %v368
      %v373 = vpack.c.b16 %v371, %v370
      %vm376 = vcmask 261120
      %v378 = vsel %vm376, %v359, 0
      %380 = vmatprep.subr.bf16.mxu0 0
      %381 = vmatpush1.bf16.msra.mxu0 %v372
      %382 = vmatprep.subr.bf16.mxu0 0
      %383 = vmatpush1.bf16.msra.mxu0 %v373
      %384 = vmatprep.subr.bf16.mxu0 0
      %385 = vmatpush1.bf16.msra.mxu0 0
      %386 = vmatprep.subr.bf16.mxu0 0
      %387 = vmatpush1.bf16.msra.mxu0 0
      %388 = vmatprep.subr.bf16.mxu0 0
      %389 = vmatpush1.bf16.msra.mxu0 0
      %390 = vmatprep.subr.bf16.mxu0 0
      %391 = vmatpush1.bf16.msra.mxu0 0
      %392 = vmatprep.subr.bf16.mxu0 0
      %393 = vmatpush1.bf16.msra.mxu0 0
      %394 = vmatprep.subr.bf16.mxu0 0
      %395 = vmatpush1.bf16.msra.mxu0 0
      %396 = vmatprep.subr.bf16.mxu0 0
      %397 = vmatpush1.bf16.msra.mxu0 0
      %398 = vmatprep.subr.bf16.mxu0 0
      %399 = vmatpush1.bf16.msra.mxu0 0
      %400 = vmatprep.subr.bf16.mxu0 0
      %401 = vmatpush1.bf16.msra.mxu0 0
      %402 = vmatprep.subr.bf16.mxu0 0
      %403 = vmatpush1.bf16.msra.mxu0 0
      %404 = vmatprep.subr.bf16.mxu0 0
      %405 = vmatpush1.bf16.msra.mxu0 0
      %406 = vmatprep.subr.bf16.mxu0 0
      %407 = vmatpush1.bf16.msra.mxu0 0
      %408 = vmatprep.subr.bf16.mxu0 0
      %409 = vmatpush1.bf16.msra.mxu0 0
      %410 = vmatprep.subr.bf16.mxu0 0
      %411 = vmatpush1.bf16.msra.mxu0 0
      %412 = vmatprep.mubr.bf16.mxu0 0
      %413 = vmatmul.mubr.bf16.gmra.mrb[0].mxu0 %v378
      %v414 = vpop.f32.mrb[0].mxu0
      %v415 = vadd.f32 0.0, %v414
      %v416 = vpop.f32.mrb[0].mxu0
      %v417 = vpop.f32.mrb[0].mxu0
      %v418 = vpop.f32.mrb[0].mxu0
      %419 = vdwg.mxu0
      %v420 = vpack.c.bf16 %v415, %v415
      %vm421 = vcmask 257024
      %422 = vst.msk [vmem:[%s314] sm:$0xf] %vm421, %v420
      %p423 = scmp.lt.s32.totalorder %s23, 0
      %s424 = scalar_select %p423, %s23, 0
      %p425 = scmp.lt.s32.totalorder %s21, 1
      %s426 = scalar_select %p425, %s21, 1
      %p427 = scmp.lt.s32.totalorder %s22, 0
      %s428 = scalar_select %p427, %s22, 0
      %p429 = scmp.lt.s32.totalorder %s24, 0
      %s430 = scalar_select %p429, %s24, 0
      %s431 = sadd.s32 %s430, %s428
      %s432 = sadd.s32 %s431, %s426
      %s433 = smul.addr %s424, 2
      %s434 = sadd.s32 %s432, %s433
      %s435 = smul.addr %s434, 4
      %s436 = scalar_lea.vmem %s4, %s435
      // Predicated region
      $region41: #{latent_array_transformer_forward.36} parent=35 // pred_check
        %p437 = pneg %p173
      $region42: #{latent_array_transformer_forward.36} parent=35 // pred_check_branch
        %439 = sbr.rel (%p437) target = $region44
      $region43: #{latent_array_transformer_forward.36} parent=35 // pred_region
        _
      $region44: #{latent_array_transformer_forward.36} parent=35 // pred_fallthru
        _
    $region36: #{latent_array_transformer_forward.36} parent=5 // pred_fallthru
      _
    %p440 = scmp.le.s32.totalorder 2, %s10
    // Predicated region
    $region45: #{latent_array_transformer_forward.36} parent=5 // pred_check
      %p441 = pneg %p440
    $region46: #{latent_array_transformer_forward.36} parent=5 // pred_check_branch
      %443 = sbr.rel (%p441) target = $region48
    $region47: #{latent_array_transformer_forward.36} parent=5 // pred_region
      %s444 = ssub.s32 %s10, 2
      // Predicated region
      $region49: #{latent_array_transformer_forward.36} parent=47 // pred_check
        %p445 = pneg %p179
      $region50: #{latent_array_transformer_forward.36} parent=47 // pred_check_branch
        %447 = sbr.rel (%p445) target = $region52
      $region51: #{latent_array_transformer_forward.36} parent=47 // pred_region
        %p448 = scmp.lt.s32.totalorder %s27, 0
        %s449 = scalar_select %p448, %s27, 0
        %p450 = scmp.lt.s32.totalorder %s25, 1
        %s451 = scalar_select %p450, %s25, 1
        %p452 = scmp.lt.s32.totalorder %s26, 0
        %s453 = scalar_select %p452, %s26, 0
        %p454 = scmp.lt.s32.totalorder %s28, 0
        %s455 = scalar_select %p454, %s28, 0
        %s456 = sadd.s32 %s455, %s453
        %s457 = sadd.s32 %s456, %s451
        %s458 = smul.addr %s449, 2
        %s459 = sadd.s32 %s457, %s458
        %s460 = smul.addr %s459, 4
        %s461 = scalar_lea.vmem %s4, %s460
      $region52: #{latent_array_transformer_forward.36} parent=47 // pred_fallthru
        _
    $region48: #{latent_array_transformer_forward.36} parent=5 // pred_fallthru
      _
  $region6: #{latent_array_transformer_forward.36} parent=0 // loop_footer
    %s14 = sadd.s32 1, %s10
  $region7: #{latent_array_transformer_forward.36} parent=0 // loop_footer_branch
    %9 = sbr.rel target = $region3
  $region8: #{latent_array_transformer_forward.36} parent=0 // loop_exit
    _

// kernel: latent_array_transformer_forward.37
$region0: #{latent_array_transformer_forward.37}
  #allocation0 [shape = 'u32[]', space=smem, size = 0x4, offset = 0x4, fixed_abs, tag = 'smem constant byte address 0x4 - core index']
  #allocation1 [shape = 'u32[144,128]{1,0:T(1,128)}', space=vmem, size = 0x12000, scoped, tag = 'internal scratch']
  %s0 = inlined_call_operand.vmem [shape: bf16[2,6,16], index: 0, kind: input, shape index: {}]
  %s1 = inlined_call_operand.vmem [shape: bf16[2,16,32], index: 1, kind: input, shape index: {}]
  %s2 = inlined_call_operand.vmem [shape: bf16[2,2,6,32], index: 2, kind: output, shape index: {}]
  %s3 = sld [smem:[#allocation0]]
  $region41: #{latent_array_transformer_forward.37} parent=0
    _
  %s5 = ssub.s32 1, %s3
  %s6 = scalar_select 0, %s5, %s3
  loop: start=0, step=1, limit=6
  $region2: #{latent_array_transformer_forward.37} parent=0 // loop_pre_header
    _
  $region3: #{latent_array_transformer_forward.37} parent=0 // loop_header
    %s8 = sphi 0, %s12
    %p9 = scmp.ge.s32.totalorder %s8, 6
    %s15 = sphi 0, %s41
    %s16 = sphi 0, %s37
    %s17 = sphi 0, %s33
    %s18 = sphi 0, %s29
    %s19 = sphi 0, %s15
    %s20 = sphi 0, %s16
    %s21 = sphi 0, %s17
    %s22 = sphi 0, %s18
    %s23 = sphi 0, %s19
    %s24 = sphi 0, %s20
    %s25 = sphi 0, %s21
    %s26 = sphi 0, %s22
    %s46 = sphi 0, %s48
    %s49 = sphi 0, %s46
    %s50 = sphi 0, %s49
    %s66 = sphi 0, %s50
    %s74 = sphi 0, %s76
    %s77 = sphi 0, %s74
    %s78 = sphi 0, %s77
    %s94 = sphi 0, %s78
    %s106 = sphi 0, %s108
    %s109 = sphi 0, %s106
    %s110 = sphi 0, %s109
    %s126 = sphi 0, %s110
  $region4: #{latent_array_transformer_forward.37} parent=0 // loop_header_branch
    %11 = sbr.rel (%p9) target = $region8
  $region5: #{latent_array_transformer_forward.37} parent=0 // loop_body
    %s13 = ssub.s32 %s8, 1
    %s14 = ssub.s32 %s8, 2
    %s27 = sadd.s32 1, %s18
    %p28 = scmp.ge.s32.totalorder %s27, 1
    %s29 = scalar_select %p28, 0, %s27
    %s30 = sadd.s32 1, %s17
    %s31 = scalar_select %p28, %s30, %s17
    %p32 = scmp.ge.s32.totalorder %s31, 2
    %s33 = scalar_select %p32, 0, %s31
    %s34 = sadd.s32 1, %s16
    %s35 = scalar_select %p32, %s34, %s16
    %p36 = scmp.ge.s32.totalorder %s35, 1
    %s37 = scalar_select %p36, 0, %s35
    %s38 = sadd.s32 1, %s15
    %s39 = scalar_select %p36, %s38, %s15
    %p40 = scmp.ge.s32.totalorder %s39, 2
    %s41 = scalar_select %p40, 0, %s39
    %s42 = ssub.s32 %s15, %s41
    %s43 = ssub.s32 %s16, %s37
    %s44 = sor.u32 %s42, %s43
    %p45 = scmp.eq.s32.totalorder %s44, 0
    %s47 = sadd.s32 %s46, 1
    %s48 = scalar_select %p45, %s46, %s47
    %p51 = pneg %p45
    %p52 = scmp.eq.s32.totalorder %s8, 3
    %p53 = por %p51, %p52
    %p54 = scmp.ne.s32.totalorder %s46, %s49
    %p55 = scmp.eq.s32.totalorder %s8, 0
    %p56 = por %p54, %p55
    %p57 = scmp.ne.s32.totalorder %s46, %s49
    %p58 = scmp.eq.s32.totalorder %s13, 3
    %p59 = por %p57, %p58
    %p60 = scmp.ne.s32.totalorder %s49, %s50
    %p61 = scmp.eq.s32.totalorder %s13, 0
    %p62 = por %p60, %p61
    %p63 = scmp.ne.s32.totalorder %s49, %s50
    %p64 = scmp.eq.s32.totalorder %s14, 3
    %p65 = por %p63, %p64
    %p67 = scmp.ne.s32.totalorder %s50, %s66
    %p68 = scmp.eq.s32.totalorder %s14, 0
    %p69 = por %p67, %p68
    %s70 = ssub.s32 %s17, %s33
    %s71 = ssub.s32 %s18, %s29
    %s72 = sor.u32 %s70, %s71
    %p73 = scmp.eq.s32.totalorder %s72, 0
    %s75 = sadd.s32 %s74, 1
    %s76 = scalar_select %p73, %s74, %s75
    %p79 = pneg %p73
    %p80 = scmp.eq.s32.totalorder %s8, 3
    %p81 = por %p79, %p80
    %p82 = scmp.ne.s32.totalorder %s74, %s77
    %p83 = scmp.eq.s32.totalorder %s8, 0
    %p84 = por %p82, %p83
    %p85 = scmp.ne.s32.totalorder %s74, %s77
    %p86 = scmp.eq.s32.totalorder %s13, 3
    %p87 = por %p85, %p86
    %p88 = scmp.ne.s32.totalorder %s77, %s78
    %p89 = scmp.eq.s32.totalorder %s13, 0
    %p90 = por %p88, %p89
    %p91 = scmp.ne.s32.totalorder %s77, %s78
    %p92 = scmp.eq.s32.totalorder %s14, 3
    %p93 = por %p91, %p92
    %p95 = scmp.ne.s32.totalorder %s78, %s94
    %p96 = scmp.eq.s32.totalorder %s14, 0
    %p97 = por %p95, %p96
    %s98 = ssub.s32 %s17, %s33
    %s99 = ssub.s32 %s15, %s41
    %s100 = sor.u32 %s98, %s99
    %s101 = ssub.s32 %s16, %s37
    %s102 = sor.u32 %s100, %s101
    %s103 = ssub.s32 %s18, %s29
    %s104 = sor.u32 %s102, %s103
    %p105 = scmp.eq.s32.totalorder %s104, 0
    %s107 = sadd.s32 %s106, 1
    %s108 = scalar_select %p105, %s106, %s107
    %p111 = pneg %p105
    %p112 = scmp.eq.s32.totalorder %s8, 3
    %p113 = por %p111, %p112
    %p114 = scmp.ne.s32.totalorder %s106, %s109
    %p115 = scmp.eq.s32.totalorder %s8, 0
    %p116 = por %p114, %p115
    %p117 = scmp.ne.s32.totalorder %s106, %s109
    %p118 = scmp.eq.s32.totalorder %s13, 3
    %p119 = por %p117, %p118
    %p120 = scmp.ne.s32.totalorder %s109, %s110
    %p121 = scmp.eq.s32.totalorder %s13, 0
    %p122 = por %p120, %p121
    %p123 = scmp.ne.s32.totalorder %s109, %s110
    %p124 = scmp.eq.s32.totalorder %s14, 3
    %p125 = por %p123, %p124
    %p127 = scmp.ne.s32.totalorder %s110, %s126
    %p128 = scmp.eq.s32.totalorder %s14, 0
    %p129 = por %p127, %p128
    %p130 = scmp.le.s32.totalorder 1, %s8
    %p131 = scmp.lt.s32.totalorder %s8, 5
    %p132 = pnand %p130, %p131
    %p133 = pneg %p132
    // Predicated region
    $region9: #{latent_array_transformer_forward.37} parent=5 // pred_check
      _
    $region10: #{latent_array_transformer_forward.37} parent=5 // pred_check_branch
      %135 = sbr.rel (%p132) target = $region12
    $region11: #{latent_array_transformer_forward.37} parent=5 // pred_region
      %s136 = ssub.s32 %s8, 1
    $region12: #{latent_array_transformer_forward.37} parent=5 // pred_fallthru
      _
    %p137 = scmp.lt.s32.totalorder %s8, 4
    // Predicated region
    $region13: #{latent_array_transformer_forward.37} parent=5 // pred_check
      %p138 = pneg %p137
    $region14: #{latent_array_transformer_forward.37} parent=5 // pred_check_branch
      %140 = sbr.rel (%p138) target = $region16
    $region15: #{latent_array_transformer_forward.37} parent=5 // pred_region
      // Predicated region
      $region17: #{latent_array_transformer_forward.37} parent=15 // pred_check
        %p141 = pneg %p56
      $region18: #{latent_array_transformer_forward.37} parent=15 // pred_check_branch
        %143 = sbr.rel (%p141) target = $region20
      $region19: #{latent_array_transformer_forward.37} parent=15 // pred_region
        %p144 = scmp.lt.s32.totalorder %s15, 1
        %s145 = scalar_select %p144, %s15, 1
        %p146 = scmp.lt.s32.totalorder %s16, 0
        %s147 = scalar_select %p146, %s16, 0
        %s148 = sadd.s32 %s147, %s145
        %s149 = smul.addr %s148, 4
        %s150 = scalar_lea.vmem %s0, %s149
      $region20: #{latent_array_transformer_forward.37} parent=15 // pred_fallthru
        _
      // Predicated region
      $region21: #{latent_array_transformer_forward.37} parent=15 // pred_check
        %p151 = pneg %p84
      $region22: #{latent_array_transformer_forward.37} parent=15 // pred_check_branch
        %153 = sbr.rel (%p151) target = $region24
      $region23: #{latent_array_transformer_forward.37} parent=15 // pred_region
        %p154 = scmp.lt.s32.totalorder %s17, 1
        %s155 = scalar_select %p154, %s17, 1
        %p156 = scmp.lt.s32.totalorder %s18, 0
        %s157 = scalar_select %p156, %s18, 0
        %s158 = smul.addr %s155, 2
        %s159 = sadd.s32 %s157, %s158
        %s160 = smul.addr %s159, 4
        %s161 = scalar_lea.vmem %s1, %s160
      $region24: #{latent_array_transformer_forward.37} parent=15 // pred_fallthru
        _
    $region16: #{latent_array_transformer_forward.37} parent=5 // pred_fallthru
      _
    %p162 = scmp.le.s32.totalorder 1, %s8
    %p163 = scmp.lt.s32.totalorder %s8, 5
    %p164 = pnand %p162, %p163
    %p165 = pneg %p164
    // Predicated region
    $region25: #{latent_array_transformer_forward.37} parent=5 // pred_check
      _
    $region26: #{latent_array_transformer_forward.37} parent=5 // pred_check_branch
      %167 = sbr.rel (%p164) target = $region28
    $region27: #{latent_array_transformer_forward.37} parent=5 // pred_region
      %s168 = ssub.s32 %s8, 1
      %p169 = scmp.lt.s32.totalorder %s19, 1
      %s170 = scalar_select %p169, %s19, 1
      %p171 = scmp.lt.s32.totalorder %s20, 0
      %s172 = scalar_select %p171, %s20, 0
      %s173 = sadd.s32 %s172, %s170
      %s174 = smul.addr %s173, 4
      %s175 = scalar_lea.vmem %s0, %s174
      %p176 = pneg %p62
      %p177 = pneg %p59
      %p178 = scmp.lt.s32.totalorder %s21, 1
      %s179 = scalar_select %p178, %s21, 1
      %p180 = scmp.lt.s32.totalorder %s22, 0
      %s181 = scalar_select %p180, %s22, 0
      %s182 = smul.addr %s179, 2
      %s183 = sadd.s32 %s181, %s182
      %s184 = smul.addr %s183, 4
      %s185 = scalar_lea.vmem %s1, %s184
      %p186 = pneg %p90
      %p187 = pneg %p87
      %p188 = pneg %p122
      %p189 = pneg %p119
      %p190 = scmp.lt.s32.totalorder %s21, 1
      %s191 = scalar_select %p190, %s21, 1
      %p192 = scmp.lt.s32.totalorder %s19, 1
      %s193 = scalar_select %p192, %s19, 1
      %p194 = scmp.lt.s32.totalorder %s20, 0
      %s195 = scalar_select %p194, %s20, 0
      %p196 = scmp.lt.s32.totalorder %s22, 0
      %s197 = scalar_select %p196, %s22, 0
      %s198 = sadd.s32 %s197, %s195
      %s199 = sadd.s32 %s198, %s193
      %s200 = smul.addr %s191, 2
      %s201 = sadd.s32 %s199, %s200
      %s202 = smul.addr %s201, 4
      %s203 = scalar_lea.vmem %s2, %s202
      %p204 = scmp.lt.s32.totalorder %s19, 1
      %s205 = scalar_select %p204, %s19, 1
      %p206 = scmp.lt.s32.totalorder %s20, 0
      %s207 = scalar_select %p206, %s20, 0
      %s208 = sadd.s32 %s207, %s205
      %s209 = smul.addr %s208, 4
      %s210 = scalar_lea.vmem %s0, %s209
      %p211 = scmp.lt.s32.totalorder %s21, 1
      %s212 = scalar_select %p211, %s21, 1
      %p213 = scmp.lt.s32.totalorder %s22, 0
      %s214 = scalar_select %p213, %s22, 0
      %s215 = smul.addr %s212, 2
      %s216 = sadd.s32 %s214, %s215
      %s217 = smul.addr %s216, 4
      %s218 = scalar_lea.vmem %s1, %s217
      %p219 = scmp.lt.s32.totalorder %s21, 1
      %s220 = scalar_select %p219, %s21, 1
      %p221 = scmp.lt.s32.totalorder %s19, 1
      %s222 = scalar_select %p221, %s19, 1
      %p223 = scmp.lt.s32.totalorder %s20, 0
      %s224 = scalar_select %p223, %s20, 0
      %p225 = scmp.lt.s32.totalorder %s22, 0
      %s226 = scalar_select %p225, %s22, 0
      %s227 = sadd.s32 %s226, %s224
      %s228 = sadd.s32 %s227, %s222
      %s229 = smul.addr %s220, 2
      %s230 = sadd.s32 %s228, %s229
      %s231 = smul.addr %s230, 4
      %s232 = scalar_lea.vmem %s2, %s231
      %v234 = vld [vmem:[%s210] sm:$0x7]
      %v235 = vld [vmem:[%s218] sm:$0xf]
      %v236 = vld [vmem:[%s218 + $0x4] sm:$0xf]
      %v239 = vunpack.c.l.b16 %v235
      %v240 = vunpack.c.l.b16 %v236
      %v241 = vpack.c.b16 %v240, %v239
      %vm243 = vcmask 130048
      %v245 = vsel %vm243, %v234, 0
      %247 = vmatprep.subr.bf16.mxu0 0
      %248 = vmatpush1.bf16.msra.mxu0 %v241
      %249 = vmatprep.subr.bf16.mxu0 0
      %250 = vmatpush1.bf16.msra.mxu0 0
      %251 = vmatprep.subr.bf16.mxu0 0
      %252 = vmatpush1.bf16.msra.mxu0 0
      %253 = vmatprep.subr.bf16.mxu0 0
      %254 = vmatpush1.bf16.msra.mxu0 0
      %255 = vmatprep.subr.bf16.mxu0 0
      %256 = vmatpush1.bf16.msra.mxu0 0
      %257 = vmatprep.subr.bf16.mxu0 0
      %258 = vmatpush1.bf16.msra.mxu0 0
      %259 = vmatprep.subr.bf16.mxu0 0
      %260 = vmatpush1.bf16.msra.mxu0 0
      %261 = vmatprep.subr.bf16.mxu0 0
      %262 = vmatpush1.bf16.msra.mxu0 0
      %263 = vmatprep.subr.bf16.mxu0 0
      %264 = vmatpush1.bf16.msra.mxu0 0
      %265 = vmatprep.subr.bf16.mxu0 0
      %266 = vmatpush1.bf16.msra.mxu0 0
      %267 = vmatprep.subr.bf16.mxu0 0
      %268 = vmatpush1.bf16.msra.mxu0 0
      %269 = vmatprep.subr.bf16.mxu0 0
      %270 = vmatpush1.bf16.msra.mxu0 0
      %271 = vmatprep.subr.bf16.mxu0 0
      %272 = vmatpush1.bf16.msra.mxu0 0
      %273 = vmatprep.subr.bf16.mxu0 0
      %274 = vmatpush1.bf16.msra.mxu0 0
      %275 = vmatprep.subr.bf16.mxu0 0
      %276 = vmatpush1.bf16.msra.mxu0 0
      %277 = vmatprep.subr.bf16.mxu0 0
      %278 = vmatpush1.bf16.msra.mxu0 0
      %279 = vmatprep.mubr.bf16.mxu0 0
      %280 = vmatmul.mubr.bf16.gmra.mrb[0].mxu0 %v245
      %v281 = vpop.f32.mrb[0].mxu0
      %v282 = vadd.f32 0.0, %v281
      %v283 = vpop.f32.mrb[0].mxu0
      %v284 = vpop.f32.mrb[0].mxu0
      %v285 = vpop.f32.mrb[0].mxu0
      %286 = vdwg.mxu0
      %v287 = vpack.c.bf16 %v282, %v282
      %vm288 = vcmask 256000
      %289 = vst.msk [vmem:[%s232] sm:$0x7] %vm288, %v287
      %p290 = scmp.lt.s32.totalorder %s21, 1
      %s291 = scalar_select %p290, %s21, 1
      %p292 = scmp.lt.s32.totalorder %s19, 1
      %s293 = scalar_select %p292, %s19, 1
      %p294 = scmp.lt.s32.totalorder %s20, 0
      %s295 = scalar_select %p294, %s20, 0
      %p296 = scmp.lt.s32.totalorder %s22, 0
      %s297 = scalar_select %p296, %s22, 0
      %s298 = sadd.s32 %s297, %s295
      %s299 = sadd.s32 %s298, %s293
      %s300 = smul.addr %s291, 2
      %s301 = sadd.s32 %s299, %s300
      %s302 = smul.addr %s301, 4
      %s303 = scalar_lea.vmem %s2, %s302
      // Predicated region
      $region29: #{latent_array_transformer_forward.37} parent=27 // pred_check
        %p304 = pneg %p119
      $region30: #{latent_array_transformer_forward.37} parent=27 // pred_check_branch
        %306 = sbr.rel (%p304) target = $region32
      $region31: #{latent_array_transformer_forward.37} parent=27 // pred_region
        _
      $region32: #{latent_array_transformer_forward.37} parent=27 // pred_fallthru
        _
    $region28: #{latent_array_transformer_forward.37} parent=5 // pred_fallthru
      _
    %p307 = scmp.le.s32.totalorder 2, %s8
    // Predicated region
    $region33: #{latent_array_transformer_forward.37} parent=5 // pred_check
      %p308 = pneg %p307
    $region34: #{latent_array_transformer_forward.37} parent=5 // pred_check_branch
      %310 = sbr.rel (%p308) target = $region36
    $region35: #{latent_array_transformer_forward.37} parent=5 // pred_region
      %s311 = ssub.s32 %s8, 2
      // Predicated region
      $region37: #{latent_array_transformer_forward.37} parent=35 // pred_check
        %p312 = pneg %p125
      $region38: #{latent_array_transformer_forward.37} parent=35 // pred_check_branch
        %314 = sbr.rel (%p312) target = $region40
      $region39: #{latent_array_transformer_forward.37} parent=35 // pred_region
        %p315 = scmp.lt.s32.totalorder %s25, 1
        %s316 = scalar_select %p315, %s25, 1
        %p317 = scmp.lt.s32.totalorder %s23, 1
        %s318 = scalar_select %p317, %s23, 1
        %p319 = scmp.lt.s32.totalorder %s24, 0
        %s320 = scalar_select %p319, %s24, 0
        %p321 = scmp.lt.s32.totalorder %s26, 0
        %s322 = scalar_select %p321, %s26, 0
        %s323 = sadd.s32 %s322, %s320
        %s324 = sadd.s32 %s323, %s318
        %s325 = smul.addr %s316, 2
        %s326 = sadd.s32 %s324, %s325
        %s327 = smul.addr %s326, 4
        %s328 = scalar_lea.vmem %s2, %s327
      $region40: #{latent_array_transformer_forward.37} parent=35 // pred_fallthru
        _
    $region36: #{latent_array_transformer_forward.37} parent=5 // pred_fallthru
      _
  $region6: #{latent_array_transformer_forward.37} parent=0 // loop_footer
    %s12 = sadd.s32 1, %s8
  $region7: #{latent_array_transformer_forward.37} parent=0 // loop_footer_branch
    %7 = sbr.rel target = $region3
  $region8: #{latent_array_transformer_forward.37} parent=0 // loop_exit
    _

// kernel: latent_array_transformer_forward.38
$region0: #{latent_array_transformer_forward.38}
  #allocation0 [shape = 'u32[]', space=smem, size = 0x4, offset = 0x4, fixed_abs, tag = 'smem constant byte address 0x4 - core index']
  #allocation1 [shape = 'u32[144,128]{1,0:T(1,128)}', space=vmem, size = 0x12000, scoped, tag = 'internal scratch']
  %s0 = inlined_call_operand.vmem [shape: bf16[1,2,8,32], index: 0, kind: input, shape index: {}]
  %s1 = inlined_call_operand.vmem [shape: bf16[2,2,6,32], index: 1, kind: input, shape index: {}, may-alias: {1,2}]
  %s2 = inlined_call_operand.vmem [shape: bf16[2,2,6,32], index: 2, kind: input, shape index: {}, may-alias: {1,2}]
  %s3 = inlined_call_operand.vmem [shape: bf16[2,8,32], index: 3, kind: output, shape index: {}]
  %s4 = sld [smem:[#allocation0]]
  $region45: #{latent_array_transformer_forward.38} parent=0
    _
  %s6 = ssub.s32 1, %s4
  %s7 = scalar_select 0, %s6, %s4
  loop: start=0, step=1, limit=4
  $region2: #{latent_array_transformer_forward.38} parent=0 // loop_pre_header
    _
  $region3: #{latent_array_transformer_forward.38} parent=0 // loop_header
    %s9 = sphi 0, %s13
    %p10 = scmp.ge.s32.totalorder %s9, 4
    %s16 = sphi 0, %s28
    %s17 = sphi 0, %s24
    %s18 = sphi 0, %s16
    %s19 = sphi 0, %s17
    %s20 = sphi 0, %s18
    %s21 = sphi 0, %s19
    %s33 = sphi 0, %s35
    %s36 = sphi 0, %s33
    %s37 = sphi 0, %s36
    %s53 = sphi 0, %s37
    %s59 = sphi 0, %s61
    %s62 = sphi 0, %s59
    %s63 = sphi 0, %s62
    %s79 = sphi 0, %s63
    %s85 = sphi 0, %s87
    %s88 = sphi 0, %s85
    %s89 = sphi 0, %s88
    %s105 = sphi 0, %s89
    %s113 = sphi 0, %s115
    %s116 = sphi 0, %s113
    %s117 = sphi 0, %s116
    %s133 = sphi 0, %s117
  $region4: #{latent_array_transformer_forward.38} parent=0 // loop_header_branch
    %12 = sbr.rel (%p10) target = $region8
  $region5: #{latent_array_transformer_forward.38} parent=0 // loop_body
    %s14 = ssub.s32 %s9, 1
    %s15 = ssub.s32 %s9, 2
    %s22 = sadd.s32 1, %s17
    %p23 = scmp.ge.s32.totalorder %s22, 1
    %s24 = scalar_select %p23, 0, %s22
    %s25 = sadd.s32 1, %s16
    %s26 = scalar_select %p23, %s25, %s16
    %p27 = scmp.ge.s32.totalorder %s26, 2
    %s28 = scalar_select %p27, 0, %s26
    %s29 = ssub.s32 %s16, %s28
    %s30 = ssub.s32 %s17, %s24
    %s31 = sor.u32 %s29, %s30
    %p32 = scmp.eq.s32.totalorder %s31, 0
    %s34 = sadd.s32 %s33, 1
    %s35 = scalar_select %p32, %s33, %s34
    %p38 = pneg %p32
    %p39 = scmp.eq.s32.totalorder %s9, 1
    %p40 = por %p38, %p39
    %p41 = scmp.ne.s32.totalorder %s33, %s36
    %p42 = scmp.eq.s32.totalorder %s9, 0
    %p43 = por %p41, %p42
    %p44 = scmp.ne.s32.totalorder %s33, %s36
    %p45 = scmp.eq.s32.totalorder %s14, 1
    %p46 = por %p44, %p45
    %p47 = scmp.ne.s32.totalorder %s36, %s37
    %p48 = scmp.eq.s32.totalorder %s14, 0
    %p49 = por %p47, %p48
    %p50 = scmp.ne.s32.totalorder %s36, %s37
    %p51 = scmp.eq.s32.totalorder %s15, 1
    %p52 = por %p50, %p51
    %p54 = scmp.ne.s32.totalorder %s37, %s53
    %p55 = scmp.eq.s32.totalorder %s15, 0
    %p56 = por %p54, %p55
    %s57 = ssub.s32 %s16, %s28
    %p58 = scmp.eq.s32.totalorder %s57, 0
    %s60 = sadd.s32 %s59, 1
    %s61 = scalar_select %p58, %s59, %s60
    %p64 = pneg %p58
    %p65 = scmp.eq.s32.totalorder %s9, 1
    %p66 = por %p64, %p65
    %p67 = scmp.ne.s32.totalorder %s59, %s62
    %p68 = scmp.eq.s32.totalorder %s9, 0
    %p69 = por %p67, %p68
    %p70 = scmp.ne.s32.totalorder %s59, %s62
    %p71 = scmp.eq.s32.totalorder %s14, 1
    %p72 = por %p70, %p71
    %p73 = scmp.ne.s32.totalorder %s62, %s63
    %p74 = scmp.eq.s32.totalorder %s14, 0
    %p75 = por %p73, %p74
    %p76 = scmp.ne.s32.totalorder %s62, %s63
    %p77 = scmp.eq.s32.totalorder %s15, 1
    %p78 = por %p76, %p77
    %p80 = scmp.ne.s32.totalorder %s63, %s79
    %p81 = scmp.eq.s32.totalorder %s15, 0
    %p82 = por %p80, %p81
    %s83 = ssub.s32 %s16, %s28
    %p84 = scmp.eq.s32.totalorder %s83, 0
    %s86 = sadd.s32 %s85, 1
    %s87 = scalar_select %p84, %s85, %s86
    %p90 = pneg %p84
    %p91 = scmp.eq.s32.totalorder %s9, 1
    %p92 = por %p90, %p91
    %p93 = scmp.ne.s32.totalorder %s85, %s88
    %p94 = scmp.eq.s32.totalorder %s9, 0
    %p95 = por %p93, %p94
    %p96 = scmp.ne.s32.totalorder %s85, %s88
    %p97 = scmp.eq.s32.totalorder %s14, 1
    %p98 = por %p96, %p97
    %p99 = scmp.ne.s32.totalorder %s88, %s89
    %p100 = scmp.eq.s32.totalorder %s14, 0
    %p101 = por %p99, %p100
    %p102 = scmp.ne.s32.totalorder %s88, %s89
    %p103 = scmp.eq.s32.totalorder %s15, 1
    %p104 = por %p102, %p103
    %p106 = scmp.ne.s32.totalorder %s89, %s105
    %p107 = scmp.eq.s32.totalorder %s15, 0
    %p108 = por %p106, %p107
    %s109 = ssub.s32 %s16, %s28
    %s110 = ssub.s32 %s17, %s24
    %s111 = sor.u32 %s109, %s110
    %p112 = scmp.eq.s32.totalorder %s111, 0
    %s114 = sadd.s32 %s113, 1
    %s115 = scalar_select %p112, %s113, %s114
    %p118 = pneg %p112
    %p119 = scmp.eq.s32.totalorder %s9, 1
    %p120 = por %p118, %p119
    %p121 = scmp.ne.s32.totalorder %s113, %s116
    %p122 = scmp.eq.s32.totalorder %s9, 0
    %p123 = por %p121, %p122
    %p124 = scmp.ne.s32.totalorder %s113, %s116
    %p125 = scmp.eq.s32.totalorder %s14, 1
    %p126 = por %p124, %p125
    %p127 = scmp.ne.s32.totalorder %s116, %s117
    %p128 = scmp.eq.s32.totalorder %s14, 0
    %p129 = por %p127, %p128
    %p130 = scmp.ne.s32.totalorder %s116, %s117
    %p131 = scmp.eq.s32.totalorder %s15, 1
    %p132 = por %p130, %p131
    %p134 = scmp.ne.s32.totalorder %s117, %s133
    %p135 = scmp.eq.s32.totalorder %s15, 0
    %p136 = por %p134, %p135
    %p137 = scmp.le.s32.totalorder 1, %s9
    %p138 = scmp.lt.s32.totalorder %s9, 3
    %p139 = pnand %p137, %p138
    %p140 = pneg %p139
    // Predicated region
    $region9: #{latent_array_transformer_forward.38} parent=5 // pred_check
      _
    $region10: #{latent_array_transformer_forward.38} parent=5 // pred_check_branch
      %142 = sbr.rel (%p139) target = $region12
    $region11: #{latent_array_transformer_forward.38} parent=5 // pred_region
      %s143 = ssub.s32 %s9, 1
    $region12: #{latent_array_transformer_forward.38} parent=5 // pred_fallthru
      _
    %p144 = scmp.lt.s32.totalorder %s9, 2
    // Predicated region
    $region13: #{latent_array_transformer_forward.38} parent=5 // pred_check
      %p145 = pneg %p144
    $region14: #{latent_array_transformer_forward.38} parent=5 // pred_check_branch
      %147 = sbr.rel (%p145) target = $region16
    $region15: #{latent_array_transformer_forward.38} parent=5 // pred_region
      // Predicated region
      $region17: #{latent_array_transformer_forward.38} parent=15 // pred_check
        %p148 = pneg %p43
      $region18: #{latent_array_transformer_forward.38} parent=15 // pred_check_branch
        %150 = sbr.rel (%p148) target = $region20
      $region19: #{latent_array_transformer_forward.38} parent=15 // pred_region
        %p151 = scmp.lt.s32.totalorder %s16, 1
        %s152 = scalar_select %p151, %s16, 1
        %p153 = scmp.lt.s32.totalorder %s17, 0
        %s154 = scalar_select %p153, %s17, 0
        %s155 = sadd.s32 %s154, %s152
        %s156 = smul.addr %s155, 4
        %s157 = scalar_lea.vmem %s0, %s156
      $region20: #{latent_array_transformer_forward.38} parent=15 // pred_fallthru
        _
      // Predicated region
      $region21: #{latent_array_transformer_forward.38} parent=15 // pred_check
        %p158 = pneg %p69
      $region22: #{latent_array_transformer_forward.38} parent=15 // pred_check_branch
        %160 = sbr.rel (%p158) target = $region24
      $region23: #{latent_array_transformer_forward.38} parent=15 // pred_region
        %p161 = scmp.lt.s32.totalorder %s16, 1
        %s162 = scalar_select %p161, %s16, 1
        %s163 = smul.addr %s162, 4
        %s164 = scalar_lea.vmem %s1, %s163
      $region24: #{latent_array_transformer_forward.38} parent=15 // pred_fallthru
        _
      // Predicated region
      $region25: #{latent_array_transformer_forward.38} parent=15 // pred_check
        %p165 = pneg %p95
      $region26: #{latent_array_transformer_forward.38} parent=15 // pred_check_branch
        %167 = sbr.rel (%p165) target = $region28
      $region27: #{latent_array_transformer_forward.38} parent=15 // pred_region
        %p168 = scmp.lt.s32.totalorder %s16, 1
        %s169 = scalar_select %p168, %s16, 1
        %s170 = sadd.s32 %s169, 2
        %s171 = smul.addr %s170, 4
        %s172 = scalar_lea.vmem %s2, %s171
      $region28: #{latent_array_transformer_forward.38} parent=15 // pred_fallthru
        _
    $region16: #{latent_array_transformer_forward.38} parent=5 // pred_fallthru
      _
    %p173 = scmp.le.s32.totalorder 1, %s9
    %p174 = scmp.lt.s32.totalorder %s9, 3
    %p175 = pnand %p173, %p174
    %p176 = pneg %p175
    // Predicated region
    $region29: #{latent_array_transformer_forward.38} parent=5 // pred_check
      _
    $region30: #{latent_array_transformer_forward.38} parent=5 // pred_check_branch
      %178 = sbr.rel (%p175) target = $region32
    $region31: #{latent_array_transformer_forward.38} parent=5 // pred_region
      %s179 = ssub.s32 %s9, 1
      %p180 = scmp.lt.s32.totalorder %s18, 1
      %s181 = scalar_select %p180, %s18, 1
      %p182 = scmp.lt.s32.totalorder %s19, 0
      %s183 = scalar_select %p182, %s19, 0
      %s184 = sadd.s32 %s183, %s181
      %s185 = smul.addr %s184, 4
      %s186 = scalar_lea.vmem %s0, %s185
      %p187 = pneg %p49
      %p188 = pneg %p46
      %p189 = scmp.lt.s32.totalorder %s18, 1
      %s190 = scalar_select %p189, %s18, 1
      %s191 = smul.addr %s190, 4
      %s192 = scalar_lea.vmem %s1, %s191
      %p193 = pneg %p75
      %p194 = pneg %p72
      %p195 = scmp.lt.s32.totalorder %s18, 1
      %s196 = scalar_select %p195, %s18, 1
      %s197 = sadd.s32 %s196, 2
      %s198 = smul.addr %s197, 4
      %s199 = scalar_lea.vmem %s2, %s198
      %p200 = pneg %p101
      %p201 = pneg %p98
      %p202 = pneg %p129
      %p203 = pneg %p126
      %p204 = scmp.lt.s32.totalorder %s18, 1
      %s205 = scalar_select %p204, %s18, 1
      %p206 = scmp.lt.s32.totalorder %s19, 0
      %s207 = scalar_select %p206, %s19, 0
      %s208 = sadd.s32 %s207, %s205
      %s209 = smul.addr %s208, 4
      %s210 = scalar_lea.vmem %s3, %s209
      %p211 = scmp.lt.s32.totalorder %s18, 1
      %s212 = scalar_select %p211, %s18, 1
      %p213 = scmp.lt.s32.totalorder %s19, 0
      %s214 = scalar_select %p213, %s19, 0
      %s215 = sadd.s32 %s214, %s212
      %s216 = smul.addr %s215, 4
      %s217 = scalar_lea.vmem %s0, %s216
      %p218 = scmp.lt.s32.totalorder %s18, 1
      %s219 = scalar_select %p218, %s18, 1
      %s220 = smul.addr %s219, 4
      %s221 = scalar_lea.vmem %s1, %s220
      %p222 = scmp.lt.s32.totalorder %s18, 1
      %s223 = scalar_select %p222, %s18, 1
      %s224 = sadd.s32 %s223, 2
      %s225 = smul.addr %s224, 4
      %s226 = scalar_lea.vmem %s2, %s225
      %p227 = scmp.lt.s32.totalorder %s18, 1
      %s228 = scalar_select %p227, %s18, 1
      %p229 = scmp.lt.s32.totalorder %s19, 0
      %s230 = scalar_select %p229, %s19, 0
      %s231 = sadd.s32 %s230, %s228
      %s232 = smul.addr %s231, 4
      %s233 = scalar_lea.vmem %s3, %s232
      %v235 = vld [vmem:[%s217] sm:$0xf]
      %v236 = vld [vmem:[%s221] sm:$0x7]
      %v237 = vld [vmem:[%s226] sm:$0x7]
      %v238 = vunpack.c.l.bf16 %v235
      %v239 = vmul.f32 %v238, 0.25
      %v240 = vpack.c.bf16 %v239, %v239
      %vm241 = vcmask 130048
      %v243 = vsel %vm241, %v240, 0
      %v246 = vsel %vm241, %v236, 0
      %248 = vmatprep.subr.bf16.mxu0 0
      %249 = vmatpush1.bf16.xpose.msra.mxu0 %v246
      %250 = vmatprep.subr.bf16.mxu0 0
      %251 = vmatpush1.bf16.xpose.msra.mxu0 0
      %252 = vmatprep.subr.bf16.mxu0 0
      %253 = vmatpush1.bf16.xpose.msra.mxu0 0
      %254 = vmatprep.subr.bf16.mxu0 0
      %255 = vmatpush1.bf16.xpose.msra.mxu0 0
      %256 = vmatprep.subr.bf16.mxu0 0
      %257 = vmatpush1.bf16.xpose.msra.mxu0 0
      %258 = vmatprep.subr.bf16.mxu0 0
      %259 = vmatpush1.bf16.xpose.msra.mxu0 0
      %260 = vmatprep.subr.bf16.mxu0 0
      %261 = vmatpush1.bf16.xpose.msra.mxu0 0
      %262 = vmatprep.subr.bf16.mxu0 0
      %263 = vmatpush1.bf16.xpose.msra.mxu0 0
      %264 = vmatprep.subr.bf16.mxu0 0
      %265 = vmatpush1.bf16.xpose.msra.mxu0 0
      %266 = vmatprep.subr.bf16.mxu0 0
      %267 = vmatpush1.bf16.xpose.msra.mxu0 0
      %268 = vmatprep.subr.bf16.mxu0 0
      %269 = vmatpush1.bf16.xpose.msra.mxu0 0
      %270 = vmatprep.subr.bf16.mxu0 0
      %271 = vmatpush1.bf16.xpose.msra.mxu0 0
      %272 = vmatprep.subr.bf16.mxu0 0
      %273 = vmatpush1.bf16.xpose.msra.mxu0 0
      %274 = vmatprep.subr.bf16.mxu0 0
      %275 = vmatpush1.bf16.xpose.msra.mxu0 0
      %276 = vmatprep.subr.bf16.mxu0 0
      %277 = vmatpush1.bf16.xpose.msra.mxu0 0
      %278 = vmatprep.subr.bf16.mxu0 0
      %279 = vmatpush1.bf16.xpose.msra.mxu0 0
      %280 = vmatprep.mubr.bf16.mxu0 0
      %281 = vmatmul.mubr.bf16.gmra.mrb[0].mxu0 %v243
      %v282 = vpop.f32.mrb[0].mxu0
      %v283 = vadd.f32 0.0, %v282
      %v284 = vpop.f32.mrb[0].mxu0
      %v285 = vpop.f32.mrb[0].mxu0
      %v286 = vpop.f32.mrb[0].mxu0
      %287 = vdwg.mxu0
      %vm288 = vcmask 48128
      %v289 = vsel %vm288, %v283, -inf
      %290 = vmax.xlane.f32.xlu0 %v289
      %v291 = vpop.xlane.xlu0 %290
      %v292 = vsub.f32 %v283, %v291
      %v293 = vmul.f32 %v292, 1.442695
      %v294 = vpow.pop %v293
      %v295 = vsel %vm288, %v294, 0.0
      %296 = vadd.xlane.f32.xlu0 %v295
      %v297 = vpop.xlane.xlu0 %296
      %v298 = vrcp.pop %v297
      %v299 = vmul.f32 %v294, %v298
      %v300 = vpack.c.bf16 %v299, %v299
      %v302 = vsel %vm288, %v300, 0
      %vm304 = vcmask 1042432
      %v306 = vsel %vm304, %v237, 0
      %308 = vmatprep.subr.bf16.mxu0 0
      %309 = vmatpush1.bf16.msra.mxu0 %v306
      %310 = vmatprep.subr.bf16.mxu0 0
      %311 = vmatpush1.bf16.msra.mxu0 0
      %312 = vmatprep.subr.bf16.mxu0 0
      %313 = vmatpush1.bf16.msra.mxu0 0
      %314 = vmatprep.subr.bf16.mxu0 0
      %315 = vmatpush1.bf16.msra.mxu0 0
      %316 = vmatprep.subr.bf16.mxu0 0
      %317 = vmatpush1.bf16.msra.mxu0 0
      %318 = vmatprep.subr.bf16.mxu0 0
      %319 = vmatpush1.bf16.msra.mxu0 0
      %320 = vmatprep.subr.bf16.mxu0 0
      %321 = vmatpush1.bf16.msra.mxu0 0
      %322 = vmatprep.subr.bf16.mxu0 0
      %323 = vmatpush1.bf16.msra.mxu0 0
      %324 = vmatprep.subr.bf16.mxu0 0
      %325 = vmatpush1.bf16.msra.mxu0 0
      %326 = vmatprep.subr.bf16.mxu0 0
      %327 = vmatpush1.bf16.msra.mxu0 0
      %328 = vmatprep.subr.bf16.mxu0 0
      %329 = vmatpush1.bf16.msra.mxu0 0
      %330 = vmatprep.subr.bf16.mxu0 0
      %331 = vmatpush1.bf16.msra.mxu0 0
      %332 = vmatprep.subr.bf16.mxu0 0
      %333 = vmatpush1.bf16.msra.mxu0 0
      %334 = vmatprep.subr.bf16.mxu0 0
      %335 = vmatpush1.bf16.msra.mxu0 0
      %336 = vmatprep.subr.bf16.mxu0 0
      %337 = vmatpush1.bf16.msra.mxu0 0
      %338 = vmatprep.subr.bf16.mxu0 0
      %339 = vmatpush1.bf16.msra.mxu0 0
      %340 = vmatprep.mubr.bf16.mxu0 0
      %341 = vmatmul.mubr.bf16.gmra.mrb[0].mxu0 %v302
      %v342 = vpop.f32.mrb[0].mxu0
      %v343 = vadd.f32 0.0, %v342
      %v344 = vpop.f32.mrb[0].mxu0
      %v345 = vpop.f32.mrb[0].mxu0
      %v346 = vpop.f32.mrb[0].mxu0
      %347 = vdwg.mxu0
      %v348 = vpack.c.bf16 %v343, %v343
      %vm349 = vcmask 125952
      %350 = vst.msk [vmem:[%s233] sm:$0xf] %vm349, %v348
      %352 = vrot.lane.b32.xlu0 %v240, 112
      %v353 = vpop.permute.xlu0 %352
      %v355 = vunpack.c.l.b16 %v236
      %v356 = vpack.c.b16 %v355, %v355
      %357 = vrot.lane.b32.xlu0 %v356, 112
      %v358 = vpop.permute.xlu0 %357
      %v360 = vsel %vm241, %v353, 0
      %v363 = vsel %vm241, %v358, 0
      %365 = vmatprep.subr.bf16.mxu0 0
      %366 = vmatpush1.bf16.xpose.msra.mxu0 %v363
      %367 = vmatprep.subr.bf16.mxu0 0
      %368 = vmatpush1.bf16.xpose.msra.mxu0 0
      %369 = vmatprep.subr.bf16.mxu0 0
      %370 = vmatpush1.bf16.xpose.msra.mxu0 0
      %371 = vmatprep.subr.bf16.mxu0 0
      %372 = vmatpush1.bf16.xpose.msra.mxu0 0
      %373 = vmatprep.subr.bf16.mxu0 0
      %374 = vmatpush1.bf16.xpose.msra.mxu0 0
      %375 = vmatprep.subr.bf16.mxu0 0
      %376 = vmatpush1.bf16.xpose.msra.mxu0 0
      %377 = vmatprep.subr.bf16.mxu0 0
      %378 = vmatpush1.bf16.xpose.msra.mxu0 0
      %379 = vmatprep.subr.bf16.mxu0 0
      %380 = vmatpush1.bf16.xpose.msra.mxu0 0
      %381 = vmatprep.subr.bf16.mxu0 0
      %382 = vmatpush1.bf16.xpose.msra.mxu0 0
      %383 = vmatprep.subr.bf16.mxu0 0
      %384 = vmatpush1.bf16.xpose.msra.mxu0 0
      %385 = vmatprep.subr.bf16.mxu0 0
      %386 = vmatpush1.bf16.xpose.msra.mxu0 0
      %387 = vmatprep.subr.bf16.mxu0 0
      %388 = vmatpush1.bf16.xpose.msra.mxu0 0
      %389 = vmatprep.subr.bf16.mxu0 0
      %390 = vmatpush1.bf16.xpose.msra.mxu0 0
      %391 = vmatprep.subr.bf16.mxu0 0
      %392 = vmatpush1.bf16.xpose.msra.mxu0 0
      %393 = vmatprep.subr.bf16.mxu0 0
      %394 = vmatpush1.bf16.xpose.msra.mxu0 0
      %395 = vmatprep.subr.bf16.mxu0 0
      %396 = vmatpush1.bf16.xpose.msra.mxu0 0
      %397 = vmatprep.mubr.bf16.mxu0 0
      %398 = vmatmul.mubr.bf16.gmra.mrb[0].mxu0 %v360
      %v399 = vpop.f32.mrb[0].mxu0
      %v400 = vadd.f32 0.0, %v399
      %v401 = vpop.f32.mrb[0].mxu0
      %v402 = vpop.f32.mrb[0].mxu0
      %v403 = vpop.f32.mrb[0].mxu0
      %404 = vdwg.mxu0
      %v405 = vsel %vm288, %v400, -inf
      %406 = vmax.xlane.f32.xlu0 %v405
      %v407 = vpop.xlane.xlu0 %406
      %v408 = vsub.f32 %v400, %v407
      %v409 = vmul.f32 %v408, 1.442695
      %v410 = vpow.pop %v409
      %v411 = vsel %vm288, %v410, 0.0
      %412 = vadd.xlane.f32.xlu0 %v411
      %v413 = vpop.xlane.xlu0 %412
      %v414 = vrcp.pop %v413
      %v415 = vmul.f32 %v410, %v414
      %v416 = vpack.c.bf16 %v415, %v415
      %v418 = vunpack.c.l.b16 %v237
      %v419 = vpack.c.b16 %v418, %v418
      %420 = vrot.lane.b32.xlu0 %v419, 112
      %v421 = vpop.permute.xlu0 %420
      %v423 = vsel %vm288, %v416, 0
      %v426 = vsel %vm304, %v421, 0
      %428 = vmatprep.subr.bf16.mxu0 0
      %429 = vmatpush1.bf16.msra.mxu0 %v426
      %430 = vmatprep.subr.bf16.mxu0 0
      %431 = vmatpush1.bf16.msra.mxu0 0
      %432 = vmatprep.subr.bf16.mxu0 0
      %433 = vmatpush1.bf16.msra.mxu0 0
      %434 = vmatprep.subr.bf16.mxu0 0
      %435 = vmatpush1.bf16.msra.mxu0 0
      %436 = vmatprep.subr.bf16.mxu0 0
      %437 = vmatpush1.bf16.msra.mxu0 0
      %438 = vmatprep.subr.bf16.mxu0 0
      %439 = vmatpush1.bf16.msra.mxu0 0
      %440 = vmatprep.subr.bf16.mxu0 0
      %441 = vmatpush1.bf16.msra.mxu0 0
      %442 = vmatprep.subr.bf16.mxu0 0
      %443 = vmatpush1.bf16.msra.mxu0 0
      %444 = vmatprep.subr.bf16.mxu0 0
      %445 = vmatpush1.bf16.msra.mxu0 0
      %446 = vmatprep.subr.bf16.mxu0 0
      %447 = vmatpush1.bf16.msra.mxu0 0
      %448 = vmatprep.subr.bf16.mxu0 0
      %449 = vmatpush1.bf16.msra.mxu0 0
      %450 = vmatprep.subr.bf16.mxu0 0
      %451 = vmatpush1.bf16.msra.mxu0 0
      %452 = vmatprep.subr.bf16.mxu0 0
      %453 = vmatpush1.bf16.msra.mxu0 0
      %454 = vmatprep.subr.bf16.mxu0 0
      %455 = vmatpush1.bf16.msra.mxu0 0
      %456 = vmatprep.subr.bf16.mxu0 0
      %457 = vmatpush1.bf16.msra.mxu0 0
      %458 = vmatprep.subr.bf16.mxu0 0
      %459 = vmatpush1.bf16.msra.mxu0 0
      %460 = vmatprep.mubr.bf16.mxu0 0
      %461 = vmatmul.mubr.bf16.gmra.mrb[0].mxu0 %v423
      %v462 = vpop.f32.mrb[0].mxu0
      %v463 = vadd.f32 0.0, %v462
      %v464 = vpop.f32.mrb[0].mxu0
      %v465 = vpop.f32.mrb[0].mxu0
      %v466 = vpop.f32.mrb[0].mxu0
      %467 = vdwg.mxu0
      %v468 = vpack.c.bf16 %v463, %v463
      %v470 = vunpack.c.l.b16 %v468
      %v471 = vpack.c.b16 %v470, %v470
      %472 = vrot.lane.b32.xlu0 %v471, 16
      %v473 = vpop.permute.xlu0 %472
      %vm475 = vcmask 257152
      %476 = vst.msk [vmem:[%s233] sm:$0xf] %vm475, %v473
      %p477 = scmp.lt.s32.totalorder %s18, 1
      %s478 = scalar_select %p477, %s18, 1
      %p479 = scmp.lt.s32.totalorder %s19, 0
      %s480 = scalar_select %p479, %s19, 0
      %s481 = sadd.s32 %s480, %s478
      %s482 = smul.addr %s481, 4
      %s483 = scalar_lea.vmem %s3, %s482
      // Predicated region
      $region33: #{latent_array_transformer_forward.38} parent=31 // pred_check
        %p484 = pneg %p126
      $region34: #{latent_array_transformer_forward.38} parent=31 // pred_check_branch
        %486 = sbr.rel (%p484) target = $region36
      $region35: #{latent_array_transformer_forward.38} parent=31 // pred_region
        _
      $region36: #{latent_array_transformer_forward.38} parent=31 // pred_fallthru
        _
    $region32: #{latent_array_transformer_forward.38} parent=5 // pred_fallthru
      _
    %p487 = scmp.le.s32.totalorder 2, %s9
    // Predicated region
    $region37: #{latent_array_transformer_forward.38} parent=5 // pred_check
      %p488 = pneg %p487
    $region38: #{latent_array_transformer_forward.38} parent=5 // pred_check_branch
      %490 = sbr.rel (%p488) target = $region40
    $region39: #{latent_array_transformer_forward.38} parent=5 // pred_region
      %s491 = ssub.s32 %s9, 2
      // Predicated region
      $region41: #{latent_array_transformer_forward.38} parent=39 // pred_check
        %p492 = pneg %p132
      $region42: #{latent_array_transformer_forward.38} parent=39 // pred_check_branch
        %494 = sbr.rel (%p492) target = $region44
      $region43: #{latent_array_transformer_forward.38} parent=39 // pred_region
        %p495 = scmp.lt.s32.totalorder %s20, 1
        %s496 = scalar_select %p495, %s20, 1
        %p497 = scmp.lt.s32.totalorder %s21, 0
        %s498 = scalar_select %p497, %s21, 0
        %s499 = sadd.s32 %s498, %s496
        %s500 = smul.addr %s499, 4
        %s501 = scalar_lea.vmem %s3, %s500
      $region44: #{latent_array_transformer_forward.38} parent=39 // pred_fallthru
        _
    $region40: #{latent_array_transformer_forward.38} parent=5 // pred_fallthru
      _
  $region6: #{latent_array_transformer_forward.38} parent=0 // loop_footer
    %s13 = sadd.s32 1, %s9
  $region7: #{latent_array_transformer_forward.38} parent=0 // loop_footer_branch
    %8 = sbr.rel target = $region3
  $region8: #{latent_array_transformer_forward.38} parent=0 // loop_exit
    _

// kernel: latent_array_transformer_forward.42
$region0: #{latent_array_transformer_forward.42}
  #allocation0 [shape = 'u32[]', space=smem, size = 0x4, offset = 0x4, fixed_abs, tag = 'smem constant byte address 0x4 - core index']
  #allocation1 [shape = 'u32[144,128]{1,0:T(1,128)}', space=vmem, size = 0x12000, scoped, tag = 'internal scratch']
  #allocation2 [shape = 'f32[16,32]{1,0:T(8,128)}', space=vmem, size = 0x2000, scoped, tag = 'scratch operand']
  %s0 = inlined_call_operand.vmem [shape: bf16[16,128], index: 0, kind: input, shape index: {}]
  %s1 = inlined_call_operand.vmem [shape: bf16[128,32], index: 1, kind: input, shape index: {}]
  %s2 = inlined_call_operand.vmem [shape: f32[1,32], index: 2, kind: input, shape index: {}]
  %s3 = inlined_call_operand.vmem [shape: bf16[16,32], index: 3, kind: input, shape index: {}]
  %s4 = inlined_call_operand.vmem [shape: bf16[16,32], index: 4, kind: output, shape index: {}]
  %s5 = sld [smem:[#allocation0]]
  $region34: #{latent_array_transformer_forward.42} parent=0
    _
  %s7 = ssub.s32 1, %s5
  %s8 = scalar_select 0, %s7, %s5
  // Predicated region
  $region2: #{latent_array_transformer_forward.42} parent=0 // pred_check
    _
  $region3: #{latent_array_transformer_forward.42} parent=0 // pred_check_branch
    %10 = sbr.rel (0) target = $region5
  $region4: #{latent_array_transformer_forward.42} parent=0 // pred_region
    _
  $region5: #{latent_array_transformer_forward.42} parent=0 // pred_fallthru
    _
  // Predicated region
  $region6: #{latent_array_transformer_forward.42} parent=0 // pred_check
    _
  $region7: #{latent_array_transformer_forward.42} parent=0 // pred_check_branch
    %12 = sbr.rel (0) target = $region9
  $region8: #{latent_array_transformer_forward.42} parent=0 // pred_region
    _
  $region9: #{latent_array_transformer_forward.42} parent=0 // pred_fallthru
    _
  // Predicated region
  $region10: #{latent_array_transformer_forward.42} parent=0 // pred_check
    _
  $region11: #{latent_array_transformer_forward.42} parent=0 // pred_check_branch
    %14 = sbr.rel (0) target = $region13
  $region12: #{latent_array_transformer_forward.42} parent=0 // pred_region
    _
  $region13: #{latent_array_transformer_forward.42} parent=0 // pred_fallthru
    _
  // Predicated region
  $region14: #{latent_array_transformer_forward.42} parent=0 // pred_check
    _
  $region15: #{latent_array_transformer_forward.42} parent=0 // pred_check_branch
    %16 = sbr.rel (0) target = $region17
  $region16: #{latent_array_transformer_forward.42} parent=0 // pred_region
    _
  $region17: #{latent_array_transformer_forward.42} parent=0 // pred_fallthru
    _
  %p18 = scmp.eq.s32.totalorder 0, 0
  // Predicated region
  $region18: #{latent_array_transformer_forward.42} parent=0 // pred_check
    %p19 = pneg %p18
  $region19: #{latent_array_transformer_forward.42} parent=0 // pred_check_branch
    %21 = sbr.rel (%p19) target = $region21
  $region20: #{latent_array_transformer_forward.42} parent=0 // pred_region
    %vm22 = vcmask 261120
    %23 = vst.msk [vmem:[#allocation2] sm:$0xff] %vm22, 0.0
    %24 = vst.msk [vmem:[#allocation2 + $0x8] sm:$0xff] %vm22, 0.0
  $region21: #{latent_array_transformer_forward.42} parent=0 // pred_fallthru
    _
  %v25 = vld [vmem:[#allocation2] sm:$0xff]
  %v26 = vld [vmem:[#allocation2 + $0x8] sm:$0xff]
  %v27 = vld [vmem:[%s0] sm:$0xf]
  %v28 = vld [vmem:[%s0 + $0x4] sm:$0xf]
  %v29 = vld [vmem:[%s1] sm:$0xf]
  %v30 = vld [vmem:[%s1 + $0x4] sm:$0xf]
  %v31 = vld [vmem:[%s1 + $0x8] sm:$0xf]
  %v32 = vld [vmem:[%s1 + $0xc] sm:$0xf]
  %v33 = vld [vmem:[%s1 + $0x10] sm:$0xf]
  %v34 = vld [vmem:[%s1 + $0x14] sm:$0xf]
  %v35 = vld [vmem:[%s1 + $0x18] sm:$0xf]
  %v36 = vld [vmem:[%s1 + $0x1c] sm:$0xf]
  %v37 = vld [vmem:[%s1 + $0x20] sm:$0xf]
  %v38 = vld [vmem:[%s1 + $0x24] sm:$0xf]
  %v39 = vld [vmem:[%s1 + $0x28] sm:$0xf]
  %v40 = vld [vmem:[%s1 + $0x2c] sm:$0xf]
  %v41 = vld [vmem:[%s1 + $0x30] sm:$0xf]
  %v42 = vld [vmem:[%s1 + $0x34] sm:$0xf]
  %v43 = vld [vmem:[%s1 + $0x38] sm:$0xf]
  %v44 = vld [vmem:[%s1 + $0x3c] sm:$0xf]
  %v47 = vunpack.c.l.b16 %v27
  %v48 = vunpack.c.l.b16 %v28
  %v49 = vpack.c.b16 %v48, %v47
  %v67 = vunpack.c.l.b16 %v29
  %v68 = vunpack.c.l.b16 %v30
  %v69 = vunpack.c.l.b16 %v31
  %v70 = vunpack.c.l.b16 %v32
  %v71 = vunpack.c.l.b16 %v33
  %v72 = vunpack.c.l.b16 %v34
  %v73 = vunpack.c.l.b16 %v35
  %v74 = vunpack.c.l.b16 %v36
  %v75 = vunpack.c.l.b16 %v37
  %v76 = vunpack.c.l.b16 %v38
  %v77 = vunpack.c.l.b16 %v39
  %v78 = vunpack.c.l.b16 %v40
  %v79 = vunpack.c.l.b16 %v41
  %v80 = vunpack.c.l.b16 %v42
  %v81 = vunpack.c.l.b16 %v43
  %v82 = vunpack.c.l.b16 %v44
  %v83 = vpack.c.b16 %v68, %v67
  %v84 = vpack.c.b16 %v70, %v69
  %v85 = vpack.c.b16 %v72, %v71
  %v86 = vpack.c.b16 %v74, %v73
  %v87 = vpack.c.b16 %v76, %v75
  %v88 = vpack.c.b16 %v78, %v77
  %v89 = vpack.c.b16 %v80, %v79
  %v90 = vpack.c.b16 %v82, %v81
  %99 = vmatprep.subr.bf16.mxu0 0
  %100 = vmatpush1.bf16.msra.mxu0 %v83
  %101 = vmatprep.subr.bf16.mxu0 0
  %102 = vmatpush1.bf16.msra.mxu0 %v84
  %103 = vmatprep.subr.bf16.mxu0 0
  %104 = vmatpush1.bf16.msra.mxu0 %v85
  %105 = vmatprep.subr.bf16.mxu0 0
  %106 = vmatpush1.bf16.msra.mxu0 %v86
  %107 = vmatprep.subr.bf16.mxu0 0
  %108 = vmatpush1.bf16.msra.mxu0 %v87
  %109 = vmatprep.subr.bf16.mxu0 0
  %110 = vmatpush1.bf16.msra.mxu0 %v88
  %111 = vmatprep.subr.bf16.mxu0 0
  %112 = vmatpush1.bf16.msra.mxu0 %v89
  %113 = vmatprep.subr.bf16.mxu0 0
  %114 = vmatpush1.bf16.msra.mxu0 %v90
  %115 = vmatprep.subr.bf16.mxu0 0
  %116 = vmatpush1.bf16.msra.mxu0 0
  %117 = vmatprep.subr.bf16.mxu0 0
  %118 = vmatpush1.bf16.msra.mxu0 0
  %119 = vmatprep.subr.bf16.mxu0 0
  %120 = vmatpush1.bf16.msra.mxu0 0
  %121 = vmatprep.subr.bf16.mxu0 0
  %122 = vmatpush1.bf16.msra.mxu0 0
  %123 = vmatprep.subr.bf16.mxu0 0
  %124 = vmatpush1.bf16.msra.mxu0 0
  %125 = vmatprep.subr.bf16.mxu0 0
  %126 = vmatpush1.bf16.msra.mxu0 0
  %127 = vmatprep.subr.bf16.mxu0 0
  %128 = vmatpush1.bf16.msra.mxu0 0
  %129 = vmatprep.subr.bf16.mxu0 0
  %130 = vmatpush1.bf16.msra.mxu0 0
  %131 = vmatprep.mubr.bf16.mxu0 0
  %132 = vmatmul.mubr.bf16.gmra.mrb[0].mxu0 %v49
  %v133 = vpop.f32.mrb[0].mxu0
  %v134 = vadd.f32 0.0, %v133
  %v135 = vpop.f32.mrb[0].mxu0
  %v136 = vpop.f32.mrb[0].mxu0
  %v137 = vadd.f32 0.0, %v136
  %v138 = vpop.f32.mrb[0].mxu0
  %139 = vdwg.mxu0
  %v140 = vadd.f32 %v25, %v134
  %v141 = vadd.f32 %v26, %v137
  %vm142 = vcmask 261120
  %143 = vst.msk [vmem:[#allocation2] sm:$0xff] %vm142, %v140
  %144 = vst.msk [vmem:[#allocation2 + $0x8] sm:$0xff] %vm142, %v141
  // Predicated region
  $region22: #{latent_array_transformer_forward.42} parent=0 // pred_check
    %p145 = pneg %p18
  $region23: #{latent_array_transformer_forward.42} parent=0 // pred_check_branch
    %147 = sbr.rel (%p145) target = $region25
  $region24: #{latent_array_transformer_forward.42} parent=0 // pred_region
    %v148 = vld [vmem:[#allocation2] sm:$0xff]
    %v149 = vld [vmem:[#allocation2 + $0x8] sm:$0xff]
    %v150 = vld [vmem:[%s2] sm:$0x1]
    %v152 = vlaneseq
    %v153 = vshrl.u32 %v152, 7
    %v154 = vsub.s32 0, %v153
    %v155 = vrot.slane %v150, %v154
    %v157 = vadd.f32 %v148, %v155
    %v158 = vadd.f32 %v149, %v155
    %v159 = vld [vmem:[%s3] sm:$0xf]
    %v160 = vld [vmem:[%s3 + $0x4] sm:$0xf]
    %v161 = vunpack.c.l.bf16 %v159
    %v162 = vunpack.c.l.bf16 %v160
    %v163 = vadd.f32 %v157, %v161
    %v164 = vadd.f32 %v158, %v162
    %v165 = vpack.c.bf16 %v164, %v163
    %v167 = vunpack.c.l.b16 %v165
    %v168 = vunpack.c.h.b16 %v165
    %v169 = vpack.c.b16 %v167, %v167
    %v170 = vpack.c.b16 %v168, %v168
    %vm173 = vcmask 257024
    %174 = vst.msk [vmem:[%s4] sm:$0xf] %vm173, %v169
    %175 = vst.msk [vmem:[%s4 + $0x4] sm:$0xf] %vm173, %v170
  $region25: #{latent_array_transformer_forward.42} parent=0 // pred_fallthru
    _
  // Predicated region
  $region26: #{latent_array_transformer_forward.42} parent=0 // pred_check
    _
  $region27: #{latent_array_transformer_forward.42} parent=0 // pred_check_branch
    %177 = sbr.rel (0) target = $region29
  $region28: #{latent_array_transformer_forward.42} parent=0 // pred_region
    _
  $region29: #{latent_array_transformer_forward.42} parent=0 // pred_fallthru
    _
  // Predicated region
  $region30: #{latent_array_transformer_forward.42} parent=0 // pred_check
    _
  $region31: #{latent_array_transformer_forward.42} parent=0 // pred_check_branch
    %179 = sbr.rel (0) target = $region33
  $region32: #{latent_array_transformer_forward.42} parent=0 // pred_region
    _
  $region33: #{latent_array_transformer_forward.42} parent=0 // pred_fallthru
    _

// kernel: latent_array_transformer_forward.41
$region0: #{latent_array_transformer_forward.41}
  #allocation0 [shape = 'u32[]', space=smem, size = 0x4, offset = 0x4, fixed_abs, tag = 'smem constant byte address 0x4 - core index']
  #allocation1 [shape = 'u32[144,128]{1,0:T(1,128)}', space=vmem, size = 0x12000, scoped, tag = 'internal scratch']
  #allocation2 [shape = 'bf16[8,32]{1,0:T(8,128)(2,1)}', space=vmem, size = 0x800, scoped, tag = 'scratch operand']
  %s0 = inlined_call_operand.vmem [shape: bf16[2,8,32], index: 0, kind: input, shape index: {}]
  %s1 = inlined_call_operand.vmem [shape: f32[2,1,32], index: 1, kind: input, shape index: {}]
  %s2 = inlined_call_operand.vmem [shape: f32[2,1,32], index: 2, kind: input, shape index: {}]
  %s3 = inlined_call_operand.vmem [shape: bf16[32,128], index: 3, kind: input, shape index: {}]
  %s4 = inlined_call_operand.vmem [shape: bf16[32,128], index: 4, kind: input, shape index: {}]
  %s5 = inlined_call_operand.vmem [shape: f32[1,128], index: 5, kind: input, shape index: {}]
  %s6 = inlined_call_operand.vmem [shape: f32[1,128], index: 6, kind: input, shape index: {}]
  %s7 = inlined_call_operand.vmem [shape: bf16[2,8,128], index: 7, kind: output, shape index: {}]
  %s8 = sld [smem:[#allocation0]]
  $region65: #{latent_array_transformer_forward.41} parent=0
    _
  %s10 = ssub.s32 1, %s8
  %s11 = scalar_select 0, %s10, %s8
  loop: start=0, step=1, limit=4
  $region2: #{latent_array_transformer_forward.41} parent=0 // loop_pre_header
    _
  $region3: #{latent_array_transformer_forward.41} parent=0 // loop_header
    %s13 = sphi 0, %s17
    %p14 = scmp.ge.s32.totalorder %s13, 4
    %s20 = sphi 0, %s39
    %s21 = sphi 0, %s35
    %s22 = sphi 0, %s31
    %s23 = sphi 0, %s20
    %s24 = sphi 0, %s21
    %s25 = sphi 0, %s22
    %s26 = sphi 0, %s23
    %s27 = sphi 0, %s24
    %s28 = sphi 0, %s25
    %s44 = sphi 0, %s46
    %s47 = sphi 0, %s44
    %s48 = sphi 0, %s47
    %s64 = sphi 0, %s48
    %s70 = sphi 0, %s72
    %s73 = sphi 0, %s70
    %s74 = sphi 0, %s73
    %s90 = sphi 0, %s74
    %s96 = sphi 0, %s98
    %s99 = sphi 0, %s96
    %s100 = sphi 0, %s99
    %s116 = sphi 0, %s100
    %s122 = sphi 0, %s124
    %s125 = sphi 0, %s122
    %s126 = sphi 0, %s125
    %s142 = sphi 0, %s126
    %s148 = sphi 0, %s150
    %s151 = sphi 0, %s148
    %s152 = sphi 0, %s151
    %s168 = sphi 0, %s152
    %s174 = sphi 0, %s176
    %s177 = sphi 0, %s174
    %s178 = sphi 0, %s177
    %s194 = sphi 0, %s178
    %s200 = sphi 0, %s202
    %s203 = sphi 0, %s200
    %s204 = sphi 0, %s203
    %s220 = sphi 0, %s204
    %s230 = sphi 0, %s232
    %s233 = sphi 0, %s230
    %s234 = sphi 0, %s233
    %s250 = sphi 0, %s234
  $region4: #{latent_array_transformer_forward.41} parent=0 // loop_header_branch
    %16 = sbr.rel (%p14) target = $region8
  $region5: #{latent_array_transformer_forward.41} parent=0 // loop_body
    %s18 = ssub.s32 %s13, 1
    %s19 = ssub.s32 %s13, 2
    %s29 = sadd.s32 1, %s22
    %p30 = scmp.ge.s32.totalorder %s29, 1
    %s31 = scalar_select %p30, 0, %s29
    %s32 = sadd.s32 1, %s21
    %s33 = scalar_select %p30, %s32, %s21
    %p34 = scmp.ge.s32.totalorder %s33, 1
    %s35 = scalar_select %p34, 0, %s33
    %s36 = sadd.s32 1, %s20
    %s37 = scalar_select %p34, %s36, %s20
    %p38 = scmp.ge.s32.totalorder %s37, 2
    %s39 = scalar_select %p38, 0, %s37
    %s40 = ssub.s32 %s20, %s39
    %s41 = ssub.s32 %s21, %s35
    %s42 = sor.u32 %s40, %s41
    %p43 = scmp.eq.s32.totalorder %s42, 0
    %s45 = sadd.s32 %s44, 1
    %s46 = scalar_select %p43, %s44, %s45
    %p49 = pneg %p43
    %p50 = scmp.eq.s32.totalorder %s13, 1
    %p51 = por %p49, %p50
    %p52 = scmp.ne.s32.totalorder %s44, %s47
    %p53 = scmp.eq.s32.totalorder %s13, 0
    %p54 = por %p52, %p53
    %p55 = scmp.ne.s32.totalorder %s44, %s47
    %p56 = scmp.eq.s32.totalorder %s18, 1
    %p57 = por %p55, %p56
    %p58 = scmp.ne.s32.totalorder %s47, %s48
    %p59 = scmp.eq.s32.totalorder %s18, 0
    %p60 = por %p58, %p59
    %p61 = scmp.ne.s32.totalorder %s47, %s48
    %p62 = scmp.eq.s32.totalorder %s19, 1
    %p63 = por %p61, %p62
    %p65 = scmp.ne.s32.totalorder %s48, %s64
    %p66 = scmp.eq.s32.totalorder %s19, 0
    %p67 = por %p65, %p66
    %s68 = ssub.s32 %s20, %s39
    %p69 = scmp.eq.s32.totalorder %s68, 0
    %s71 = sadd.s32 %s70, 1
    %s72 = scalar_select %p69, %s70, %s71
    %p75 = pneg %p69
    %p76 = scmp.eq.s32.totalorder %s13, 1
    %p77 = por %p75, %p76
    %p78 = scmp.ne.s32.totalorder %s70, %s73
    %p79 = scmp.eq.s32.totalorder %s13, 0
    %p80 = por %p78, %p79
    %p81 = scmp.ne.s32.totalorder %s70, %s73
    %p82 = scmp.eq.s32.totalorder %s18, 1
    %p83 = por %p81, %p82
    %p84 = scmp.ne.s32.totalorder %s73, %s74
    %p85 = scmp.eq.s32.totalorder %s18, 0
    %p86 = por %p84, %p85
    %p87 = scmp.ne.s32.totalorder %s73, %s74
    %p88 = scmp.eq.s32.totalorder %s19, 1
    %p89 = por %p87, %p88
    %p91 = scmp.ne.s32.totalorder %s74, %s90
    %p92 = scmp.eq.s32.totalorder %s19, 0
    %p93 = por %p91, %p92
    %s94 = ssub.s32 %s20, %s39
    %p95 = scmp.eq.s32.totalorder %s94, 0
    %s97 = sadd.s32 %s96, 1
    %s98 = scalar_select %p95, %s96, %s97
    %p101 = pneg %p95
    %p102 = scmp.eq.s32.totalorder %s13, 1
    %p103 = por %p101, %p102
    %p104 = scmp.ne.s32.totalorder %s96, %s99
    %p105 = scmp.eq.s32.totalorder %s13, 0
    %p106 = por %p104, %p105
    %p107 = scmp.ne.s32.totalorder %s96, %s99
    %p108 = scmp.eq.s32.totalorder %s18, 1
    %p109 = por %p107, %p108
    %p110 = scmp.ne.s32.totalorder %s99, %s100
    %p111 = scmp.eq.s32.totalorder %s18, 0
    %p112 = por %p110, %p111
    %p113 = scmp.ne.s32.totalorder %s99, %s100
    %p114 = scmp.eq.s32.totalorder %s19, 1
    %p115 = por %p113, %p114
    %p117 = scmp.ne.s32.totalorder %s100, %s116
    %p118 = scmp.eq.s32.totalorder %s19, 0
    %p119 = por %p117, %p118
    %s120 = ssub.s32 %s22, %s31
    %p121 = scmp.eq.s32.totalorder %s120, 0
    %s123 = sadd.s32 %s122, 1
    %s124 = scalar_select %p121, %s122, %s123
    %p127 = pneg %p121
    %p128 = scmp.eq.s32.totalorder %s13, 1
    %p129 = por %p127, %p128
    %p130 = scmp.ne.s32.totalorder %s122, %s125
    %p131 = scmp.eq.s32.totalorder %s13, 0
    %p132 = por %p130, %p131
    %p133 = scmp.ne.s32.totalorder %s122, %s125
    %p134 = scmp.eq.s32.totalorder %s18, 1
    %p135 = por %p133, %p134
    %p136 = scmp.ne.s32.totalorder %s125, %s126
    %p137 = scmp.eq.s32.totalorder %s18, 0
    %p138 = por %p136, %p137
    %p139 = scmp.ne.s32.totalorder %s125, %s126
    %p140 = scmp.eq.s32.totalorder %s19, 1
    %p141 = por %p139, %p140
    %p143 = scmp.ne.s32.totalorder %s126, %s142
    %p144 = scmp.eq.s32.totalorder %s19, 0
    %p145 = por %p143, %p144
    %s146 = ssub.s32 %s22, %s31
    %p147 = scmp.eq.s32.totalorder %s146, 0
    %s149 = sadd.s32 %s148, 1
    %s150 = scalar_select %p147, %s148, %s149
    %p153 = pneg %p147
    %p154 = scmp.eq.s32.totalorder %s13, 1
    %p155 = por %p153, %p154
    %p156 = scmp.ne.s32.totalorder %s148, %s151
    %p157 = scmp.eq.s32.totalorder %s13, 0
    %p158 = por %p156, %p157
    %p159 = scmp.ne.s32.totalorder %s148, %s151
    %p160 = scmp.eq.s32.totalorder %s18, 1
    %p161 = por %p159, %p160
    %p162 = scmp.ne.s32.totalorder %s151, %s152
    %p163 = scmp.eq.s32.totalorder %s18, 0
    %p164 = por %p162, %p163
    %p165 = scmp.ne.s32.totalorder %s151, %s152
    %p166 = scmp.eq.s32.totalorder %s19, 1
    %p167 = por %p165, %p166
    %p169 = scmp.ne.s32.totalorder %s152, %s168
    %p170 = scmp.eq.s32.totalorder %s19, 0
    %p171 = por %p169, %p170
    %s172 = ssub.s32 %s22, %s31
    %p173 = scmp.eq.s32.totalorder %s172, 0
    %s175 = sadd.s32 %s174, 1
    %s176 = scalar_select %p173, %s174, %s175
    %p179 = pneg %p173
    %p180 = scmp.eq.s32.totalorder %s13, 1
    %p181 = por %p179, %p180
    %p182 = scmp.ne.s32.totalorder %s174, %s177
    %p183 = scmp.eq.s32.totalorder %s13, 0
    %p184 = por %p182, %p183
    %p185 = scmp.ne.s32.totalorder %s174, %s177
    %p186 = scmp.eq.s32.totalorder %s18, 1
    %p187 = por %p185, %p186
    %p188 = scmp.ne.s32.totalorder %s177, %s178
    %p189 = scmp.eq.s32.totalorder %s18, 0
    %p190 = por %p188, %p189
    %p191 = scmp.ne.s32.totalorder %s177, %s178
    %p192 = scmp.eq.s32.totalorder %s19, 1
    %p193 = por %p191, %p192
    %p195 = scmp.ne.s32.totalorder %s178, %s194
    %p196 = scmp.eq.s32.totalorder %s19, 0
    %p197 = por %p195, %p196
    %s198 = ssub.s32 %s22, %s31
    %p199 = scmp.eq.s32.totalorder %s198, 0
    %s201 = sadd.s32 %s200, 1
    %s202 = scalar_select %p199, %s200, %s201
    %p205 = pneg %p199
    %p206 = scmp.eq.s32.totalorder %s13, 1
    %p207 = por %p205, %p206
    %p208 = scmp.ne.s32.totalorder %s200, %s203
    %p209 = scmp.eq.s32.totalorder %s13, 0
    %p210 = por %p208, %p209
    %p211 = scmp.ne.s32.totalorder %s200, %s203
    %p212 = scmp.eq.s32.totalorder %s18, 1
    %p213 = por %p211, %p212
    %p214 = scmp.ne.s32.totalorder %s203, %s204
    %p215 = scmp.eq.s32.totalorder %s18, 0
    %p216 = por %p214, %p215
    %p217 = scmp.ne.s32.totalorder %s203, %s204
    %p218 = scmp.eq.s32.totalorder %s19, 1
    %p219 = por %p217, %p218
    %p221 = scmp.ne.s32.totalorder %s204, %s220
    %p222 = scmp.eq.s32.totalorder %s19, 0
    %p223 = por %p221, %p222
    %s224 = ssub.s32 %s20, %s39
    %s225 = ssub.s32 %s21, %s35
    %s226 = sor.u32 %s224, %s225
    %s227 = ssub.s32 %s22, %s31
    %s228 = sor.u32 %s226, %s227
    %p229 = scmp.eq.s32.totalorder %s228, 0
    %s231 = sadd.s32 %s230, 1
    %s232 = scalar_select %p229, %s230, %s231
    %p235 = pneg %p229
    %p236 = scmp.eq.s32.totalorder %s13, 1
    %p237 = por %p235, %p236
    %p238 = scmp.ne.s32.totalorder %s230, %s233
    %p239 = scmp.eq.s32.totalorder %s13, 0
    %p240 = por %p238, %p239
    %p241 = scmp.ne.s32.totalorder %s230, %s233
    %p242 = scmp.eq.s32.totalorder %s18, 1
    %p243 = por %p241, %p242
    %p244 = scmp.ne.s32.totalorder %s233, %s234
    %p245 = scmp.eq.s32.totalorder %s18, 0
    %p246 = por %p244, %p245
    %p247 = scmp.ne.s32.totalorder %s233, %s234
    %p248 = scmp.eq.s32.totalorder %s19, 1
    %p249 = por %p247, %p248
    %p251 = scmp.ne.s32.totalorder %s234, %s250
    %p252 = scmp.eq.s32.totalorder %s19, 0
    %p253 = por %p251, %p252
    %p254 = scmp.le.s32.totalorder 1, %s13
    %p255 = scmp.lt.s32.totalorder %s13, 3
    %p256 = pnand %p254, %p255
    %p257 = pneg %p256
    // Predicated region
    $region9: #{latent_array_transformer_forward.41} parent=5 // pred_check
      _
    $region10: #{latent_array_transformer_forward.41} parent=5 // pred_check_branch
      %259 = sbr.rel (%p256) target = $region12
    $region11: #{latent_array_transformer_forward.41} parent=5 // pred_region
      %s260 = ssub.s32 %s13, 1
      // Predicated region
      $region13: #{latent_array_transformer_forward.41} parent=11 // pred_check
        %p261 = pneg %p138
      $region14: #{latent_array_transformer_forward.41} parent=11 // pred_check_branch
        %263 = sbr.rel (%p261) target = $region16
      $region15: #{latent_array_transformer_forward.41} parent=11 // pred_region
        %p264 = scmp.lt.s32.totalorder %s25, 0
        %s265 = scalar_select %p264, %s25, 0
        %s266 = smul.addr %s265, 4
        %s267 = scalar_lea.vmem %s3, %s266
      $region16: #{latent_array_transformer_forward.41} parent=11 // pred_fallthru
        _
      // Predicated region
      $region17: #{latent_array_transformer_forward.41} parent=11 // pred_check
        %p268 = pneg %p164
      $region18: #{latent_array_transformer_forward.41} parent=11 // pred_check_branch
        %270 = sbr.rel (%p268) target = $region20
      $region19: #{latent_array_transformer_forward.41} parent=11 // pred_region
        %p271 = scmp.lt.s32.totalorder %s25, 0
        %s272 = scalar_select %p271, %s25, 0
        %s273 = smul.addr %s272, 4
        %s274 = scalar_lea.vmem %s4, %s273
      $region20: #{latent_array_transformer_forward.41} parent=11 // pred_fallthru
        _
      // Predicated region
      $region21: #{latent_array_transformer_forward.41} parent=11 // pred_check
        %p275 = pneg %p190
      $region22: #{latent_array_transformer_forward.41} parent=11 // pred_check_branch
        %277 = sbr.rel (%p275) target = $region24
      $region23: #{latent_array_transformer_forward.41} parent=11 // pred_region
        %p278 = scmp.lt.s32.totalorder %s25, 0
        %s279 = scalar_select %p278, %s25, 0
        %s280 = scalar_lea.vmem %s5, %s279
      $region24: #{latent_array_transformer_forward.41} parent=11 // pred_fallthru
        _
      // Predicated region
      $region25: #{latent_array_transformer_forward.41} parent=11 // pred_check
        %p281 = pneg %p216
      $region26: #{latent_array_transformer_forward.41} parent=11 // pred_check_branch
        %283 = sbr.rel (%p281) target = $region28
      $region27: #{latent_array_transformer_forward.41} parent=11 // pred_region
        %p284 = scmp.lt.s32.totalorder %s25, 0
        %s285 = scalar_select %p284, %s25, 0
        %s286 = scalar_lea.vmem %s6, %s285
      $region28: #{latent_array_transformer_forward.41} parent=11 // pred_fallthru
        _
    $region12: #{latent_array_transformer_forward.41} parent=5 // pred_fallthru
      _
    %p287 = scmp.lt.s32.totalorder %s13, 2
    // Predicated region
    $region29: #{latent_array_transformer_forward.41} parent=5 // pred_check
      %p288 = pneg %p287
    $region30: #{latent_array_transformer_forward.41} parent=5 // pred_check_branch
      %290 = sbr.rel (%p288) target = $region32
    $region31: #{latent_array_transformer_forward.41} parent=5 // pred_region
      // Predicated region
      $region33: #{latent_array_transformer_forward.41} parent=31 // pred_check
        %p291 = pneg %p54
      $region34: #{latent_array_transformer_forward.41} parent=31 // pred_check_branch
        %293 = sbr.rel (%p291) target = $region36
      $region35: #{latent_array_transformer_forward.41} parent=31 // pred_region
        %p294 = scmp.lt.s32.totalorder %s20, 1
        %s295 = scalar_select %p294, %s20, 1
        %p296 = scmp.lt.s32.totalorder %s21, 0
        %s297 = scalar_select %p296, %s21, 0
        %s298 = sadd.s32 %s297, %s295
        %s299 = smul.addr %s298, 4
        %s300 = scalar_lea.vmem %s0, %s299
      $region36: #{latent_array_transformer_forward.41} parent=31 // pred_fallthru
        _
      // Predicated region
      $region37: #{latent_array_transformer_forward.41} parent=31 // pred_check
        %p301 = pneg %p80
      $region38: #{latent_array_transformer_forward.41} parent=31 // pred_check_branch
        %303 = sbr.rel (%p301) target = $region40
      $region39: #{latent_array_transformer_forward.41} parent=31 // pred_region
        %p304 = scmp.lt.s32.totalorder %s20, 1
        %s305 = scalar_select %p304, %s20, 1
        %s306 = scalar_lea.vmem %s1, %s305
      $region40: #{latent_array_transformer_forward.41} parent=31 // pred_fallthru
        _
      // Predicated region
      $region41: #{latent_array_transformer_forward.41} parent=31 // pred_check
        %p307 = pneg %p106
      $region42: #{latent_array_transformer_forward.41} parent=31 // pred_check_branch
        %309 = sbr.rel (%p307) target = $region44
      $region43: #{latent_array_transformer_forward.41} parent=31 // pred_region
        %p310 = scmp.lt.s32.totalorder %s20, 1
        %s311 = scalar_select %p310, %s20, 1
        %s312 = scalar_lea.vmem %s2, %s311
      $region44: #{latent_array_transformer_forward.41} parent=31 // pred_fallthru
        _
    $region32: #{latent_array_transformer_forward.41} parent=5 // pred_fallthru
      _
    %p313 = scmp.le.s32.totalorder 1, %s13
    %p314 = scmp.lt.s32.totalorder %s13, 3
    %p315 = pnand %p313, %p314
    %p316 = pneg %p315
    // Predicated region
    $region45: #{latent_array_transformer_forward.41} parent=5 // pred_check
      _
    $region46: #{latent_array_transformer_forward.41} parent=5 // pred_check_branch
      %318 = sbr.rel (%p315) target = $region48
    $region47: #{latent_array_transformer_forward.41} parent=5 // pred_region
      %s319 = ssub.s32 %s13, 1
      %p320 = scmp.lt.s32.totalorder %s23, 1
      %s321 = scalar_select %p320, %s23, 1
      %p322 = scmp.lt.s32.totalorder %s24, 0
      %s323 = scalar_select %p322, %s24, 0
      %s324 = sadd.s32 %s323, %s321
      %s325 = smul.addr %s324, 4
      %s326 = scalar_lea.vmem %s0, %s325
      %p327 = pneg %p60
      %p328 = pneg %p57
      %p329 = scmp.lt.s32.totalorder %s23, 1
      %s330 = scalar_select %p329, %s23, 1
      %s331 = scalar_lea.vmem %s1, %s330
      %p332 = pneg %p86
      %p333 = pneg %p83
      %p334 = scmp.lt.s32.totalorder %s23, 1
      %s335 = scalar_select %p334, %s23, 1
      %s336 = scalar_lea.vmem %s2, %s335
      %p337 = pneg %p112
      %p338 = pneg %p109
      %p339 = scmp.lt.s32.totalorder %s25, 0
      %s340 = scalar_select %p339, %s25, 0
      %s341 = smul.addr %s340, 4
      %s342 = scalar_lea.vmem %s3, %s341
      %p343 = pneg %p138
      %p344 = pneg %p135
      %p345 = scmp.lt.s32.totalorder %s25, 0
      %s346 = scalar_select %p345, %s25, 0
      %s347 = smul.addr %s346, 4
      %s348 = scalar_lea.vmem %s4, %s347
      %p349 = pneg %p164
      %p350 = pneg %p161
      %p351 = scmp.lt.s32.totalorder %s25, 0
      %s352 = scalar_select %p351, %s25, 0
      %s353 = scalar_lea.vmem %s5, %s352
      %p354 = pneg %p190
      %p355 = pneg %p187
      %p356 = scmp.lt.s32.totalorder %s25, 0
      %s357 = scalar_select %p356, %s25, 0
      %s358 = scalar_lea.vmem %s6, %s357
      %p359 = pneg %p216
      %p360 = pneg %p213
      %p361 = pneg %p246
      %p362 = pneg %p243
      %p363 = scmp.lt.s32.totalorder %s23, 1
      %s364 = scalar_select %p363, %s23, 1
      %p365 = scmp.lt.s32.totalorder %s24, 0
      %s366 = scalar_select %p365, %s24, 0
      %p367 = scmp.lt.s32.totalorder %s25, 0
      %s368 = scalar_select %p367, %s25, 0
      %s369 = sadd.s32 %s368, %s366
      %s370 = sadd.s32 %s369, %s364
      %s371 = smul.addr %s370, 4
      %s372 = scalar_lea.vmem %s7, %s371
      %p373 = scmp.lt.s32.totalorder %s23, 1
      %s374 = scalar_select %p373, %s23, 1
      %p375 = scmp.lt.s32.totalorder %s24, 0
      %s376 = scalar_select %p375, %s24, 0
      %s377 = sadd.s32 %s376, %s374
      %s378 = smul.addr %s377, 4
      %s379 = scalar_lea.vmem %s0, %s378
      %p380 = scmp.lt.s32.totalorder %s23, 1
      %s381 = scalar_select %p380, %s23, 1
      %s382 = scalar_lea.vmem %s1, %s381
      %p383 = scmp.lt.s32.totalorder %s23, 1
      %s384 = scalar_select %p383, %s23, 1
      %s385 = scalar_lea.vmem %s2, %s384
      %p386 = scmp.lt.s32.totalorder %s25, 0
      %s387 = scalar_select %p386, %s25, 0
      %s388 = smul.addr %s387, 4
      %s389 = scalar_lea.vmem %s3, %s388
      %p390 = scmp.lt.s32.totalorder %s25, 0
      %s391 = scalar_select %p390, %s25, 0
      %s392 = smul.addr %s391, 4
      %s393 = scalar_lea.vmem %s4, %s392
      %p394 = scmp.lt.s32.totalorder %s25, 0
      %s395 = scalar_select %p394, %s25, 0
      %s396 = scalar_lea.vmem %s5, %s395
      %p397 = scmp.lt.s32.totalorder %s25, 0
      %s398 = scalar_select %p397, %s25, 0
      %s399 = scalar_lea.vmem %s6, %s398
      %p400 = scmp.lt.s32.totalorder %s23, 1
      %s401 = scalar_select %p400, %s23, 1
      %p402 = scmp.lt.s32.totalorder %s24, 0
      %s403 = scalar_select %p402, %s24, 0
      %p404 = scmp.lt.s32.totalorder %s25, 0
      %s405 = scalar_select %p404, %s25, 0
      %s406 = sadd.s32 %s405, %s403
      %s407 = sadd.s32 %s406, %s401
      %s408 = smul.addr %s407, 4
      %s409 = scalar_lea.vmem %s7, %s408
      %p411 = scmp.eq.s32.totalorder %s25, 0
      // Predicated region
      $region49: #{latent_array_transformer_forward.41} parent=47 // pred_check
        %p412 = pneg %p411
      $region50: #{latent_array_transformer_forward.41} parent=47 // pred_check_branch
        %414 = sbr.rel (%p412) target = $region52
      $region51: #{latent_array_transformer_forward.41} parent=47 // pred_region
        %v415 = vld [vmem:[%s379] sm:$0xf]
        %v416 = vunpack.c.l.bf16 %v415
        %vm417 = vcmask 261120
        %v418 = vsel %vm417, %v416, 0.0
        %419 = vadd.xlane.f32.xlu0 %v418
        %v420 = vpop.xlane.xlu0 %419
        %v421 = vrcp.pop 32.0
        %v422 = vmul.f32 %v420, %v421
        %v423 = vsub.f32 %v416, %v422
        %v424 = vmul.f32 %v423, %v423
        %v425 = vsel %vm417, %v424, 0.0
        %426 = vadd.xlane.f32.xlu0 %v425
        %v427 = vpop.xlane.xlu0 %426
        %v428 = vmul.f32 %v427, %v421
        %v429 = vadd.f32 %v428, 1e-05
        %v430 = vrsqrt.pop %v429
        %v431 = vmul.f32 %v423, %v430
        %v432 = vld [vmem:[%s382] sm:$0x1]
        %v433 = vadd.f32 %v432, 1.0
        %v435 = vlaneseq
        %v436 = vshrl.u32 %v435, 7
        %v437 = vsub.s32 0, %v436
        %v438 = vrot.slane %v433, %v437
        %v440 = vmul.f32 %v431, %v438
        %v441 = vld [vmem:[%s385] sm:$0x1]
        %v443 = vlaneseq
        %v444 = vshrl.u32 %v443, 7
        %v445 = vsub.s32 0, %v444
        %v446 = vrot.slane %v441, %v445
        %v448 = vadd.f32 %v440, %v446
        %v449 = vpack.c.bf16 %v448, %v448
        %vm450 = vcmask 257024
        %451 = vst.msk [vmem:[#allocation2] sm:$0xf] %vm450, %v449
      $region52: #{latent_array_transformer_forward.41} parent=47 // pred_fallthru
        _
      %v452 = vld [vmem:[#allocation2] sm:$0xf]
      %v453 = vld [vmem:[%s389] sm:$0xf]
      %v454 = vld [vmem:[%s389 + $0x4] sm:$0xf]
      %v455 = vld [vmem:[%s389 + $0x8] sm:$0xf]
      %v456 = vld [vmem:[%s389 + $0xc] sm:$0xf]
      %v457 = vld [vmem:[%s396] sm:$0x1]
      %v459 = vlaneseq
      %v460 = vshrl.u32 %v459, 7
      %v461 = vsub.s32 0, %v460
      %v462 = vrot.slane %v457, %v461
      %v468 = vunpack.c.l.b16 %v453
      %v469 = vunpack.c.l.b16 %v454
      %v470 = vunpack.c.l.b16 %v455
      %v471 = vunpack.c.l.b16 %v456
      %v472 = vpack.c.b16 %v469, %v468
      %v473 = vpack.c.b16 %v471, %v470
      %vm476 = vcmask 261120
      %v478 = vsel %vm476, %v452, 0
      %480 = vmatprep.subr.bf16.mxu0 0
      %481 = vmatpush1.bf16.msra.mxu0 %v472
      %482 = vmatprep.subr.bf16.mxu0 0
      %483 = vmatpush1.bf16.msra.mxu0 %v473
      %484 = vmatprep.subr.bf16.mxu0 0
      %485 = vmatpush1.bf16.msra.mxu0 0
      %486 = vmatprep.subr.bf16.mxu0 0
      %487 = vmatpush1.bf16.msra.mxu0 0
      %488 = vmatprep.subr.bf16.mxu0 0
      %489 = vmatpush1.bf16.msra.mxu0 0
      %490 = vmatprep.subr.bf16.mxu0 0
      %491 = vmatpush1.bf16.msra.mxu0 0
      %492 = vmatprep.subr.bf16.mxu0 0
      %493 = vmatpush1.bf16.msra.mxu0 0
      %494 = vmatprep.subr.bf16.mxu0 0
      %495 = vmatpush1.bf16.msra.mxu0 0
      %496 = vmatprep.subr.bf16.mxu0 0
      %497 = vmatpush1.bf16.msra.mxu0 0
      %498 = vmatprep.subr.bf16.mxu0 0
      %499 = vmatpush1.bf16.msra.mxu0 0
      %500 = vmatprep.subr.bf16.mxu0 0
      %501 = vmatpush1.bf16.msra.mxu0 0
      %502 = vmatprep.subr.bf16.mxu0 0
      %503 = vmatpush1.bf16.msra.mxu0 0
      %504 = vmatprep.subr.bf16.mxu0 0
      %505 = vmatpush1.bf16.msra.mxu0 0
      %506 = vmatprep.subr.bf16.mxu0 0
      %507 = vmatpush1.bf16.msra.mxu0 0
      %508 = vmatprep.subr.bf16.mxu0 0
      %509 = vmatpush1.bf16.msra.mxu0 0
      %510 = vmatprep.subr.bf16.mxu0 0
      %511 = vmatpush1.bf16.msra.mxu0 0
      %512 = vmatprep.mubr.bf16.mxu0 0
      %513 = vmatmul.mubr.bf16.gmra.mrb[0].mxu0 %v478
      %v514 = vpop.f32.mrb[0].mxu0
      %v515 = vadd.f32 %v462, %v514
      %v516 = vpop.f32.mrb[0].mxu0
      %v517 = vpop.f32.mrb[0].mxu0
      %v518 = vpop.f32.mrb[0].mxu0
      %519 = vdwg.mxu0
      %v520 = vld [vmem:[%s393] sm:$0xf]
      %v521 = vld [vmem:[%s393 + $0x4] sm:$0xf]
      %v522 = vld [vmem:[%s393 + $0x8] sm:$0xf]
      %v523 = vld [vmem:[%s393 + $0xc] sm:$0xf]
      %v524 = vld [vmem:[%s399] sm:$0x1]
      %v526 = vlaneseq
      %v527 = vshrl.u32 %v526, 7
      %v528 = vsub.s32 0, %v527
      %v529 = vrot.slane %v524, %v528
      %v535 = vunpack.c.l.b16 %v520
      %v536 = vunpack.c.l.b16 %v521
      %v537 = vunpack.c.l.b16 %v522
      %v538 = vunpack.c.l.b16 %v523
      %v539 = vpack.c.b16 %v536, %v535
      %v540 = vpack.c.b16 %v538, %v537
      %543 = vmatprep.subr.bf16.mxu0 0
      %544 = vmatpush1.bf16.msra.mxu0 %v539
      %545 = vmatprep.subr.bf16.mxu0 0
      %546 = vmatpush1.bf16.msra.mxu0 %v540
      %547 = vmatprep.subr.bf16.mxu0 0
      %548 = vmatpush1.bf16.msra.mxu0 0
      %549 = vmatprep.subr.bf16.mxu0 0
      %550 = vmatpush1.bf16.msra.mxu0 0
      %551 = vmatprep.subr.bf16.mxu0 0
      %552 = vmatpush1.bf16.msra.mxu0 0
      %553 = vmatprep.subr.bf16.mxu0 0
      %554 = vmatpush1.bf16.msra.mxu0 0
      %555 = vmatprep.subr.bf16.mxu0 0
      %556 = vmatpush1.bf16.msra.mxu0 0
      %557 = vmatprep.subr.bf16.mxu0 0
      %558 = vmatpush1.bf16.msra.mxu0 0
      %559 = vmatprep.subr.bf16.mxu0 0
      %560 = vmatpush1.bf16.msra.mxu0 0
      %561 = vmatprep.subr.bf16.mxu0 0
      %562 = vmatpush1.bf16.msra.mxu0 0
      %563 = vmatprep.subr.bf16.mxu0 0
      %564 = vmatpush1.bf16.msra.mxu0 0
      %565 = vmatprep.subr.bf16.mxu0 0
      %566 = vmatpush1.bf16.msra.mxu0 0
      %567 = vmatprep.subr.bf16.mxu0 0
      %568 = vmatpush1.bf16.msra.mxu0 0
      %569 = vmatprep.subr.bf16.mxu0 0
      %570 = vmatpush1.bf16.msra.mxu0 0
      %571 = vmatprep.subr.bf16.mxu0 0
      %572 = vmatpush1.bf16.msra.mxu0 0
      %573 = vmatprep.subr.bf16.mxu0 0
      %574 = vmatpush1.bf16.msra.mxu0 0
      %575 = vmatprep.mubr.bf16.mxu0 0
      %576 = vmatmul.mubr.bf16.gmra.mrb[0].mxu0 %v478
      %v577 = vpop.f32.mrb[0].mxu0
      %v578 = vadd.f32 %v529, %v577
      %v579 = vpop.f32.mrb[0].mxu0
      %v580 = vpop.f32.mrb[0].mxu0
      %v581 = vpop.f32.mrb[0].mxu0
      %582 = vdwg.mxu0
      %v583 = vmul.f32 %v578, 0.5
      %v584 = vmul.f32 %v578, 0.70710677
      %v585 = verf.f32.pop %v584
      %v586 = vadd.f32 %v585, 1.0
      %v587 = vmul.f32 %v583, %v586
      %v588 = vmul.f32 %v515, %v587
      %v589 = vpack.c.bf16 %v588, %v588
      %590 = vst [vmem:[%s409] sm:$0xf] %v589
      %p591 = scmp.lt.s32.totalorder %s23, 1
      %s592 = scalar_select %p591, %s23, 1
      %p593 = scmp.lt.s32.totalorder %s24, 0
      %s594 = scalar_select %p593, %s24, 0
      %p595 = scmp.lt.s32.totalorder %s25, 0
      %s596 = scalar_select %p595, %s25, 0
      %s597 = sadd.s32 %s596, %s594
      %s598 = sadd.s32 %s597, %s592
      %s599 = smul.addr %s598, 4
      %s600 = scalar_lea.vmem %s7, %s599
      // Predicated region
      $region53: #{latent_array_transformer_forward.41} parent=47 // pred_check
        %p601 = pneg %p243
      $region54: #{latent_array_transformer_forward.41} parent=47 // pred_check_branch
        %603 = sbr.rel (%p601) target = $region56
      $region55: #{latent_array_transformer_forward.41} parent=47 // pred_region
        _
      $region56: #{latent_array_transformer_forward.41} parent=47 // pred_fallthru
        _
    $region48: #{latent_array_transformer_forward.41} parent=5 // pred_fallthru
      _
    %p604 = scmp.le.s32.totalorder 2, %s13
    // Predicated region
    $region57: #{latent_array_transformer_forward.41} parent=5 // pred_check
      %p605 = pneg %p604
    $region58: #{latent_array_transformer_forward.41} parent=5 // pred_check_branch
      %607 = sbr.rel (%p605) target = $region60
    $region59: #{latent_array_transformer_forward.41} parent=5 // pred_region
      %s608 = ssub.s32 %s13, 2
      // Predicated region
      $region61: #{latent_array_transformer_forward.41} parent=59 // pred_check
        %p609 = pneg %p249
      $region62: #{latent_array_transformer_forward.41} parent=59 // pred_check_branch
        %611 = sbr.rel (%p609) target = $region64
      $region63: #{latent_array_transformer_forward.41} parent=59 // pred_region
        %p612 = scmp.lt.s32.totalorder %s26, 1
        %s613 = scalar_select %p612, %s26, 1
        %p614 = scmp.lt.s32.totalorder %s27, 0
        %s615 = scalar_select %p614, %s27, 0
        %p616 = scmp.lt.s32.totalorder %s28, 0
        %s617 = scalar_select %p616, %s28, 0
        %s618 = sadd.s32 %s617, %s615
        %s619 = sadd.s32 %s618, %s613
        %s620 = smul.addr %s619, 4
        %s621 = scalar_lea.vmem %s7, %s620
      $region64: #{latent_array_transformer_forward.41} parent=59 // pred_fallthru
        _
    $region60: #{latent_array_transformer_forward.41} parent=5 // pred_fallthru
      _
  $region6: #{latent_array_transformer_forward.41} parent=0 // loop_footer
    %s17 = sadd.s32 1, %s13
  $region7: #{latent_array_transformer_forward.41} parent=0 // loop_footer_branch
    %12 = sbr.rel target = $region3
  $region8: #{latent_array_transformer_forward.41} parent=0 // loop_exit
    _

// kernel: latent_array_transformer_forward.55
$region0: #{latent_array_transformer_forward.55}
  #allocation0 [shape = 'u32[]', space=smem, size = 0x4, offset = 0x4, fixed_abs, tag = 'smem constant byte address 0x4 - core index']
  #allocation1 [shape = 'u32[144,128]{1,0:T(1,128)}', space=vmem, size = 0x12000, scoped, tag = 'internal scratch']
  #allocation2 [shape = 'bf16[8,32]{1,0:T(8,128)(2,1)}', space=vmem, size = 0x800, scoped, tag = 'scratch operand']
  %s0 = inlined_call_operand.vmem [shape: bf16[2,8,32], index: 0, kind: input, shape index: {}]
  %s1 = inlined_call_operand.vmem [shape: f32[1,32], index: 1, kind: input, shape index: {}]
  %s2 = inlined_call_operand.vmem [shape: f32[1,32], index: 2, kind: input, shape index: {}]
  %s3 = inlined_call_operand.vmem [shape: bf16[32,4], index: 3, kind: input, shape index: {}]
  %s4 = inlined_call_operand.vmem [shape: f32[2,8,4], index: 4, kind: output, shape index: {}]
  %s5 = sld [smem:[#allocation0]]
  $region53: #{latent_array_transformer_forward.55} parent=0
    _
  %s7 = ssub.s32 1, %s5
  %s8 = scalar_select 0, %s7, %s5
  loop: start=0, step=1, limit=4
  $region2: #{latent_array_transformer_forward.55} parent=0 // loop_pre_header
    _
  $region3: #{latent_array_transformer_forward.55} parent=0 // loop_header
    %s10 = sphi 0, %s14
    %p11 = scmp.ge.s32.totalorder %s10, 4
    %s17 = sphi 0, %s36
    %s18 = sphi 0, %s32
    %s19 = sphi 0, %s28
    %s20 = sphi 0, %s17
    %s21 = sphi 0, %s18
    %s22 = sphi 0, %s19
    %s23 = sphi 0, %s20
    %s24 = sphi 0, %s21
    %s25 = sphi 0, %s22
    %s41 = sphi 0, %s43
    %s44 = sphi 0, %s41
    %s45 = sphi 0, %s44
    %s61 = sphi 0, %s45
    %s65 = sphi 0, %s65
    %s67 = sphi 0, %s65
    %s68 = sphi 0, %s67
    %s82 = sphi 0, %s68
    %s86 = sphi 0, %s86
    %s88 = sphi 0, %s86
    %s89 = sphi 0, %s88
    %s103 = sphi 0, %s89
    %s109 = sphi 0, %s111
    %s112 = sphi 0, %s109
    %s113 = sphi 0, %s112
    %s129 = sphi 0, %s113
    %s139 = sphi 0, %s141
    %s142 = sphi 0, %s139
    %s143 = sphi 0, %s142
    %s159 = sphi 0, %s143
  $region4: #{latent_array_transformer_forward.55} parent=0 // loop_header_branch
    %13 = sbr.rel (%p11) target = $region8
  $region5: #{latent_array_transformer_forward.55} parent=0 // loop_body
    %s15 = ssub.s32 %s10, 1
    %s16 = ssub.s32 %s10, 2
    %s26 = sadd.s32 1, %s19
    %p27 = scmp.ge.s32.totalorder %s26, 1
    %s28 = scalar_select %p27, 0, %s26
    %s29 = sadd.s32 1, %s18
    %s30 = scalar_select %p27, %s29, %s18
    %p31 = scmp.ge.s32.totalorder %s30, 1
    %s32 = scalar_select %p31, 0, %s30
    %s33 = sadd.s32 1, %s17
    %s34 = scalar_select %p31, %s33, %s17
    %p35 = scmp.ge.s32.totalorder %s34, 2
    %s36 = scalar_select %p35, 0, %s34
    %s37 = ssub.s32 %s17, %s36
    %s38 = ssub.s32 %s18, %s32
    %s39 = sor.u32 %s37, %s38
    %p40 = scmp.eq.s32.totalorder %s39, 0
    %s42 = sadd.s32 %s41, 1
    %s43 = scalar_select %p40, %s41, %s42
    %p46 = pneg %p40
    %p47 = scmp.eq.s32.totalorder %s10, 1
    %p48 = por %p46, %p47
    %p49 = scmp.ne.s32.totalorder %s41, %s44
    %p50 = scmp.eq.s32.totalorder %s10, 0
    %p51 = por %p49, %p50
    %p52 = scmp.ne.s32.totalorder %s41, %s44
    %p53 = scmp.eq.s32.totalorder %s15, 1
    %p54 = por %p52, %p53
    %p55 = scmp.ne.s32.totalorder %s44, %s45
    %p56 = scmp.eq.s32.totalorder %s15, 0
    %p57 = por %p55, %p56
    %p58 = scmp.ne.s32.totalorder %s44, %s45
    %p59 = scmp.eq.s32.totalorder %s16, 1
    %p60 = por %p58, %p59
    %p62 = scmp.ne.s32.totalorder %s45, %s61
    %p63 = scmp.eq.s32.totalorder %s16, 0
    %p64 = por %p62, %p63
    %s66 = sadd.s32 %s65, 1
    %p69 = scmp.eq.s32.totalorder %s10, 1
    %p70 = scmp.ne.s32.totalorder %s65, %s67
    %p71 = scmp.eq.s32.totalorder %s10, 0
    %p72 = por %p70, %p71
    %p73 = scmp.ne.s32.totalorder %s65, %s67
    %p74 = scmp.eq.s32.totalorder %s15, 1
    %p75 = por %p73, %p74
    %p76 = scmp.ne.s32.totalorder %s67, %s68
    %p77 = scmp.eq.s32.totalorder %s15, 0
    %p78 = por %p76, %p77
    %p79 = scmp.ne.s32.totalorder %s67, %s68
    %p80 = scmp.eq.s32.totalorder %s16, 1
    %p81 = por %p79, %p80
    %p83 = scmp.ne.s32.totalorder %s68, %s82
    %p84 = scmp.eq.s32.totalorder %s16, 0
    %p85 = por %p83, %p84
    %s87 = sadd.s32 %s86, 1
    %p90 = scmp.eq.s32.totalorder %s10, 1
    %p91 = scmp.ne.s32.totalorder %s86, %s88
    %p92 = scmp.eq.s32.totalorder %s10, 0
    %p93 = por %p91, %p92
    %p94 = scmp.ne.s32.totalorder %s86, %s88
    %p95 = scmp.eq.s32.totalorder %s15, 1
    %p96 = por %p94, %p95
    %p97 = scmp.ne.s32.totalorder %s88, %s89
    %p98 = scmp.eq.s32.totalorder %s15, 0
    %p99 = por %p97, %p98
    %p100 = scmp.ne.s32.totalorder %s88, %s89
    %p101 = scmp.eq.s32.totalorder %s16, 1
    %p102 = por %p100, %p101
    %p104 = scmp.ne.s32.totalorder %s89, %s103
    %p105 = scmp.eq.s32.totalorder %s16, 0
    %p106 = por %p104, %p105
    %s107 = ssub.s32 %s19, %s28
    %p108 = scmp.eq.s32.totalorder %s107, 0
    %s110 = sadd.s32 %s109, 1
    %s111 = scalar_select %p108, %s109, %s110
    %p114 = pneg %p108
    %p115 = scmp.eq.s32.totalorder %s10, 1
    %p116 = por %p114, %p115
    %p117 = scmp.ne.s32.totalorder %s109, %s112
    %p118 = scmp.eq.s32.totalorder %s10, 0
    %p119 = por %p117, %p118
    %p120 = scmp.ne.s32.totalorder %s109, %s112
    %p121 = scmp.eq.s32.totalorder %s15, 1
    %p122 = por %p120, %p121
    %p123 = scmp.ne.s32.totalorder %s112, %s113
    %p124 = scmp.eq.s32.totalorder %s15, 0
    %p125 = por %p123, %p124
    %p126 = scmp.ne.s32.totalorder %s112, %s113
    %p127 = scmp.eq.s32.totalorder %s16, 1
    %p128 = por %p126, %p127
    %p130 = scmp.ne.s32.totalorder %s113, %s129
    %p131 = scmp.eq.s32.totalorder %s16, 0
    %p132 = por %p130, %p131
    %s133 = ssub.s32 %s17, %s36
    %s134 = ssub.s32 %s18, %s32
    %s135 = sor.u32 %s133, %s134
    %s136 = ssub.s32 %s19, %s28
    %s137 = sor.u32 %s135, %s136
    %p138 = scmp.eq.s32.totalorder %s137, 0
    %s140 = sadd.s32 %s139, 1
    %s141 = scalar_select %p138, %s139, %s140
    %p144 = pneg %p138
    %p145 = scmp.eq.s32.totalorder %s10, 1
    %p146 = por %p144, %p145
    %p147 = scmp.ne.s32.totalorder %s139, %s142
    %p148 = scmp.eq.s32.totalorder %s10, 0
    %p149 = por %p147, %p148
    %p150 = scmp.ne.s32.totalorder %s139, %s142
    %p151 = scmp.eq.s32.totalorder %s15, 1
    %p152 = por %p150, %p151
    %p153 = scmp.ne.s32.totalorder %s142, %s143
    %p154 = scmp.eq.s32.totalorder %s15, 0
    %p155 = por %p153, %p154
    %p156 = scmp.ne.s32.totalorder %s142, %s143
    %p157 = scmp.eq.s32.totalorder %s16, 1
    %p158 = por %p156, %p157
    %p160 = scmp.ne.s32.totalorder %s143, %s159
    %p161 = scmp.eq.s32.totalorder %s16, 0
    %p162 = por %p160, %p161
    %p163 = scmp.le.s32.totalorder 1, %s10
    %p164 = scmp.lt.s32.totalorder %s10, 3
    %p165 = pnand %p163, %p164
    %p166 = pneg %p165
    // Predicated region
    $region9: #{latent_array_transformer_forward.55} parent=5 // pred_check
      _
    $region10: #{latent_array_transformer_forward.55} parent=5 // pred_check_branch
      %168 = sbr.rel (%p165) target = $region12
    $region11: #{latent_array_transformer_forward.55} parent=5 // pred_region
      %s169 = ssub.s32 %s10, 1
      // Predicated region
      $region13: #{latent_array_transformer_forward.55} parent=11 // pred_check
        %p170 = pneg %p78
      $region14: #{latent_array_transformer_forward.55} parent=11 // pred_check_branch
        %172 = sbr.rel (%p170) target = $region16
      $region15: #{latent_array_transformer_forward.55} parent=11 // pred_region
        _
      $region16: #{latent_array_transformer_forward.55} parent=11 // pred_fallthru
        _
      // Predicated region
      $region17: #{latent_array_transformer_forward.55} parent=11 // pred_check
        %p173 = pneg %p99
      $region18: #{latent_array_transformer_forward.55} parent=11 // pred_check_branch
        %175 = sbr.rel (%p173) target = $region20
      $region19: #{latent_array_transformer_forward.55} parent=11 // pred_region
        _
      $region20: #{latent_array_transformer_forward.55} parent=11 // pred_fallthru
        _
      // Predicated region
      $region21: #{latent_array_transformer_forward.55} parent=11 // pred_check
        %p176 = pneg %p125
      $region22: #{latent_array_transformer_forward.55} parent=11 // pred_check_branch
        %178 = sbr.rel (%p176) target = $region24
      $region23: #{latent_array_transformer_forward.55} parent=11 // pred_region
        %p179 = scmp.lt.s32.totalorder %s22, 0
        %s180 = scalar_select %p179, %s22, 0
        %s181 = smul.addr %s180, 4
        %s182 = scalar_lea.vmem %s3, %s181
      $region24: #{latent_array_transformer_forward.55} parent=11 // pred_fallthru
        _
    $region12: #{latent_array_transformer_forward.55} parent=5 // pred_fallthru
      _
    %p183 = scmp.lt.s32.totalorder %s10, 2
    // Predicated region
    $region25: #{latent_array_transformer_forward.55} parent=5 // pred_check
      %p184 = pneg %p183
    $region26: #{latent_array_transformer_forward.55} parent=5 // pred_check_branch
      %186 = sbr.rel (%p184) target = $region28
    $region27: #{latent_array_transformer_forward.55} parent=5 // pred_region
      // Predicated region
      $region29: #{latent_array_transformer_forward.55} parent=27 // pred_check
        %p187 = pneg %p51
      $region30: #{latent_array_transformer_forward.55} parent=27 // pred_check_branch
        %189 = sbr.rel (%p187) target = $region32
      $region31: #{latent_array_transformer_forward.55} parent=27 // pred_region
        %p190 = scmp.lt.s32.totalorder %s17, 1
        %s191 = scalar_select %p190, %s17, 1
        %p192 = scmp.lt.s32.totalorder %s18, 0
        %s193 = scalar_select %p192, %s18, 0
        %s194 = sadd.s32 %s193, %s191
        %s195 = smul.addr %s194, 4
        %s196 = scalar_lea.vmem %s0, %s195
      $region32: #{latent_array_transformer_forward.55} parent=27 // pred_fallthru
        _
    $region28: #{latent_array_transformer_forward.55} parent=5 // pred_fallthru
      _
    %p197 = scmp.le.s32.totalorder 1, %s10
    %p198 = scmp.lt.s32.totalorder %s10, 3
    %p199 = pnand %p197, %p198
    %p200 = pneg %p199
    // Predicated region
    $region33: #{latent_array_transformer_forward.55} parent=5 // pred_check
      _
    $region34: #{latent_array_transformer_forward.55} parent=5 // pred_check_branch
      %202 = sbr.rel (%p199) target = $region36
    $region35: #{latent_array_transformer_forward.55} parent=5 // pred_region
      %s203 = ssub.s32 %s10, 1
      %p204 = scmp.lt.s32.totalorder %s20, 1
      %s205 = scalar_select %p204, %s20, 1
      %p206 = scmp.lt.s32.totalorder %s21, 0
      %s207 = scalar_select %p206, %s21, 0
      %s208 = sadd.s32 %s207, %s205
      %s209 = smul.addr %s208, 4
      %s210 = scalar_lea.vmem %s0, %s209
      %p211 = pneg %p57
      %p212 = pneg %p54
      %p213 = pneg %p78
      %p214 = pneg %p75
      %p215 = pneg %p99
      %p216 = pneg %p96
      %p217 = scmp.lt.s32.totalorder %s22, 0
      %s218 = scalar_select %p217, %s22, 0
      %s219 = smul.addr %s218, 4
      %s220 = scalar_lea.vmem %s3, %s219
      %p221 = pneg %p125
      %p222 = pneg %p122
      %p223 = pneg %p155
      %p224 = pneg %p152
      %p225 = scmp.lt.s32.totalorder %s20, 1
      %s226 = scalar_select %p225, %s20, 1
      %p227 = scmp.lt.s32.totalorder %s21, 0
      %s228 = scalar_select %p227, %s21, 0
      %p229 = scmp.lt.s32.totalorder %s22, 0
      %s230 = scalar_select %p229, %s22, 0
      %s231 = sadd.s32 %s230, %s228
      %s232 = sadd.s32 %s231, %s226
      %s233 = smul.addr %s232, 8
      %s234 = scalar_lea.vmem %s4, %s233
      %p235 = scmp.lt.s32.totalorder %s20, 1
      %s236 = scalar_select %p235, %s20, 1
      %p237 = scmp.lt.s32.totalorder %s21, 0
      %s238 = scalar_select %p237, %s21, 0
      %s239 = sadd.s32 %s238, %s236
      %s240 = smul.addr %s239, 4
      %s241 = scalar_lea.vmem %s0, %s240
      %p242 = scmp.lt.s32.totalorder %s22, 0
      %s243 = scalar_select %p242, %s22, 0
      %s244 = smul.addr %s243, 4
      %s245 = scalar_lea.vmem %s3, %s244
      %p246 = scmp.lt.s32.totalorder %s20, 1
      %s247 = scalar_select %p246, %s20, 1
      %p248 = scmp.lt.s32.totalorder %s21, 0
      %s249 = scalar_select %p248, %s21, 0
      %p250 = scmp.lt.s32.totalorder %s22, 0
      %s251 = scalar_select %p250, %s22, 0
      %s252 = sadd.s32 %s251, %s249
      %s253 = sadd.s32 %s252, %s247
      %s254 = smul.addr %s253, 8
      %s255 = scalar_lea.vmem %s4, %s254
      %p257 = scmp.eq.s32.totalorder %s22, 0
      // Predicated region
      $region37: #{latent_array_transformer_forward.55} parent=35 // pred_check
        %p258 = pneg %p257
      $region38: #{latent_array_transformer_forward.55} parent=35 // pred_check_branch
        %260 = sbr.rel (%p258) target = $region40
      $region39: #{latent_array_transformer_forward.55} parent=35 // pred_region
        %v261 = vld [vmem:[%s241] sm:$0xf]
        %v262 = vunpack.c.l.bf16 %v261
        %vm263 = vcmask 261120
        %v264 = vsel %vm263, %v262, 0.0
        %265 = vadd.xlane.f32.xlu0 %v264
        %v266 = vpop.xlane.xlu0 %265
        %v267 = vrcp.pop 32.0
        %v268 = vmul.f32 %v266, %v267
        %v269 = vsub.f32 %v262, %v268
        %v270 = vmul.f32 %v269, %v269
        %v271 = vsel %vm263, %v270, 0.0
        %272 = vadd.xlane.f32.xlu0 %v271
        %v273 = vpop.xlane.xlu0 %272
        %v274 = vmul.f32 %v273, %v267
        %v275 = vadd.f32 %v274, 1e-05
        %v276 = vrsqrt.pop %v275
        %v277 = vmul.f32 %v269, %v276
        %v278 = vld [vmem:[%s1] sm:$0x1]
        %v280 = vlaneseq
        %v281 = vshrl.u32 %v280, 7
        %v282 = vsub.s32 0, %v281
        %v283 = vrot.slane %v278, %v282
        %v285 = vmul.f32 %v277, %v283
        %v286 = vld [vmem:[%s2] sm:$0x1]
        %v288 = vlaneseq
        %v289 = vshrl.u32 %v288, 7
        %v290 = vsub.s32 0, %v289
        %v291 = vrot.slane %v286, %v290
        %v293 = vadd.f32 %v285, %v291
        %v294 = vpack.c.bf16 %v293, %v293
        %vm295 = vcmask 257024
        %296 = vst.msk [vmem:[#allocation2] sm:$0xf] %vm295, %v294
      $region40: #{latent_array_transformer_forward.55} parent=35 // pred_fallthru
        _
      %v297 = vld [vmem:[#allocation2] sm:$0xf]
      %v298 = vld [vmem:[%s245] sm:$0xf]
      %v299 = vld [vmem:[%s245 + $0x4] sm:$0xf]
      %v300 = vld [vmem:[%s245 + $0x8] sm:$0xf]
      %v301 = vld [vmem:[%s245 + $0xc] sm:$0xf]
      %v306 = vunpack.c.l.b16 %v298
      %v307 = vunpack.c.l.b16 %v299
      %v308 = vunpack.c.l.b16 %v300
      %v309 = vunpack.c.l.b16 %v301
      %v310 = vpack.c.b16 %v307, %v306
      %v311 = vpack.c.b16 %v309, %v308
      %vm314 = vcmask 261120
      %v316 = vsel %vm314, %v297, 0
      %318 = vmatprep.subr.bf16.mxu0 0
      %319 = vmatpush1.bf16.msra.mxu0 %v310
      %320 = vmatprep.subr.bf16.mxu0 0
      %321 = vmatpush1.bf16.msra.mxu0 %v311
      %322 = vmatprep.subr.bf16.mxu0 0
      %323 = vmatpush1.bf16.msra.mxu0 0
      %324 = vmatprep.subr.bf16.mxu0 0
      %325 = vmatpush1.bf16.msra.mxu0 0
      %326 = vmatprep.subr.bf16.mxu0 0
      %327 = vmatpush1.bf16.msra.mxu0 0
      %328 = vmatprep.subr.bf16.mxu0 0
      %329 = vmatpush1.bf16.msra.mxu0 0
      %330 = vmatprep.subr.bf16.mxu0 0
      %331 = vmatpush1.bf16.msra.mxu0 0
      %332 = vmatprep.subr.bf16.mxu0 0
      %333 = vmatpush1.bf16.msra.mxu0 0
      %334 = vmatprep.subr.bf16.mxu0 0
      %335 = vmatpush1.bf16.msra.mxu0 0
      %336 = vmatprep.subr.bf16.mxu0 0
      %337 = vmatpush1.bf16.msra.mxu0 0
      %338 = vmatprep.subr.bf16.mxu0 0
      %339 = vmatpush1.bf16.msra.mxu0 0
      %340 = vmatprep.subr.bf16.mxu0 0
      %341 = vmatpush1.bf16.msra.mxu0 0
      %342 = vmatprep.subr.bf16.mxu0 0
      %343 = vmatpush1.bf16.msra.mxu0 0
      %344 = vmatprep.subr.bf16.mxu0 0
      %345 = vmatpush1.bf16.msra.mxu0 0
      %346 = vmatprep.subr.bf16.mxu0 0
      %347 = vmatpush1.bf16.msra.mxu0 0
      %348 = vmatprep.subr.bf16.mxu0 0
      %349 = vmatpush1.bf16.msra.mxu0 0
      %350 = vmatprep.mubr.bf16.mxu0 0
      %351 = vmatmul.mubr.bf16.gmra.mrb[0].mxu0 %v316
      %v352 = vpop.f32.mrb[0].mxu0
      %v353 = vadd.f32 0.0, %v352
      %v354 = vpop.f32.mrb[0].mxu0
      %v355 = vpop.f32.mrb[0].mxu0
      %v356 = vpop.f32.mrb[0].mxu0
      %357 = vdwg.mxu0
      %vm358 = vcmask 31744
      %359 = vst.msk [vmem:[%s255] sm:$0xff] %vm358, %v353
      %p360 = scmp.lt.s32.totalorder %s20, 1
      %s361 = scalar_select %p360, %s20, 1
      %p362 = scmp.lt.s32.totalorder %s21, 0
      %s363 = scalar_select %p362, %s21, 0
      %p364 = scmp.lt.s32.totalorder %s22, 0
      %s365 = scalar_select %p364, %s22, 0
      %s366 = sadd.s32 %s365, %s363
      %s367 = sadd.s32 %s366, %s361
      %s368 = smul.addr %s367, 8
      %s369 = scalar_lea.vmem %s4, %s368
      // Predicated region
      $region41: #{latent_array_transformer_forward.55} parent=35 // pred_check
        %p370 = pneg %p152
      $region42: #{latent_array_transformer_forward.55} parent=35 // pred_check_branch
        %372 = sbr.rel (%p370) target = $region44
      $region43: #{latent_array_transformer_forward.55} parent=35 // pred_region
        _
      $region44: #{latent_array_transformer_forward.55} parent=35 // pred_fallthru
        _
    $region36: #{latent_array_transformer_forward.55} parent=5 // pred_fallthru
      _
    %p373 = scmp.le.s32.totalorder 2, %s10
    // Predicated region
    $region45: #{latent_array_transformer_forward.55} parent=5 // pred_check
      %p374 = pneg %p373
    $region46: #{latent_array_transformer_forward.55} parent=5 // pred_check_branch
      %376 = sbr.rel (%p374) target = $region48
    $region47: #{latent_array_transformer_forward.55} parent=5 // pred_region
      %s377 = ssub.s32 %s10, 2
      // Predicated region
      $region49: #{latent_array_transformer_forward.55} parent=47 // pred_check
        %p378 = pneg %p158
      $region50: #{latent_array_transformer_forward.55} parent=47 // pred_check_branch
        %380 = sbr.rel (%p378) target = $region52
      $region51: #{latent_array_transformer_forward.55} parent=47 // pred_region
        %p381 = scmp.lt.s32.totalorder %s23, 1
        %s382 = scalar_select %p381, %s23, 1
        %p383 = scmp.lt.s32.totalorder %s24, 0
        %s384 = scalar_select %p383, %s24, 0
        %p385 = scmp.lt.s32.totalorder %s25, 0
        %s386 = scalar_select %p385, %s25, 0
        %s387 = sadd.s32 %s386, %s384
        %s388 = sadd.s32 %s387, %s382
        %s389 = smul.addr %s388, 8
        %s390 = scalar_lea.vmem %s4, %s389
      $region52: #{latent_array_transformer_forward.55} parent=47 // pred_fallthru
        _
    $region48: #{latent_array_transformer_forward.55} parent=5 // pred_fallthru
      _
  $region6: #{latent_array_transformer_forward.55} parent=0 // loop_footer
    %s14 = sadd.s32 1, %s10
  $region7: #{latent_array_transformer_forward.55} parent=0 // loop_footer_branch
    %9 = sbr.rel target = $region3
  $region8: #{latent_array_transformer_forward.55} parent=0 // loop_exit
    _

</llo_original>
